<compile_context>
chip_gen: v7x
topology: tpu7x:2x2x1
jax: 0.10.0
libtpu: 0.0.40
codegen_flags: <defaults>
</compile_context>

<pallas_src>
import jax
import jax.numpy as jnp
from jax.experimental import pallas as pl
from jax.experimental.pallas import tpu as pltpu

BN_EPS = 1e-5


# ---------------------------------------------------------------------------
# Pallas kernels
# ---------------------------------------------------------------------------
def _conv_affine_leaky_kernel(p_ref, w_ref, b_ref, o_ref):
    """One ConvBlock: patches @ W_folded + b_folded, then LeakyReLU(0.2)."""
    y = jnp.dot(p_ref[...], w_ref[...], preferred_element_type=jnp.float32)
    y = y + b_ref[...]
    o_ref[...] = jnp.maximum(y, 0.2 * y).astype(o_ref.dtype)   # LeakyReLU(0.2)


def _fc_head_kernel(f_ref, w1_ref, b1_ref, w2_ref, b2_ref, w3t_ref, b3_ref,
                    o_ref):
    """fc1+BN+ReLU -> fc2+BN+ReLU -> fc3+sigmoid, fully fused (BN folded)."""
    f = f_ref[...]                                                  # (B, 2048)
    h = jnp.dot(f, w1_ref[...], preferred_element_type=jnp.float32) + b1_ref[...]
    h = jnp.maximum(h, 0.0)                                         # ReLU
    h = jnp.dot(h, w2_ref[...], preferred_element_type=jnp.float32) + b2_ref[...]
    h = jnp.maximum(h, 0.0)                                         # ReLU
    # fc3 has a single output unit -> elementwise mul + lane reduce (avoids a
    # degenerate N=1 MXU matmul).
    z = jnp.sum(h * w3t_ref[...], axis=-1, keepdims=True) + b3_ref[...]  # (B,1)
    o_ref[...] = (1.0 / (1.0 + jnp.exp(-z))).astype(o_ref.dtype)    # Sigmoid


# ---------------------------------------------------------------------------
# Pallas-call wrappers
# ---------------------------------------------------------------------------
def _conv_block_pallas(patches, w_eff, b_eff):
    M, K = patches.shape
    N = w_eff.shape[1]
    # Two independent row blocks when cleanly possible so dual-TC chips (v7x)
    # both get work; otherwise a single collapsed grid step.
    grid_m = 2 if (M % 2 == 0 and (M // 2) % 8 == 0) else 1
    tm = M // grid_m
    return pl.pallas_call(
        _conv_affine_leaky_kernel,
        out_shape=jax.ShapeDtypeStruct((M, N), jnp.float32),
        grid_spec=pltpu.PrefetchScalarGridSpec(
            num_scalar_prefetch=0,
            grid=(grid_m,),
            in_specs=[
                pl.BlockSpec((tm, K), lambda i: (i, 0)),
                pl.BlockSpec((K, N), lambda i: (0, 0)),
                pl.BlockSpec((1, N), lambda i: (0, 0)),
            ],
            out_specs=pl.BlockSpec((tm, N), lambda i: (i, 0)),
        ),
        compiler_params=pltpu.CompilerParams(
            dimension_semantics=("parallel",)),
    )(patches, w_eff, b_eff.reshape(1, N))


def _fc_head_pallas(feat, w1, b1, w2, b2, w3, b3):
    B, D = feat.shape
    H1 = w1.shape[1]
    H2 = w2.shape[1]
    w3t = w3.reshape(1, H2)                       # (64, 1) -> (1, 64) row vec
    return pl.pallas_call(
        _fc_head_kernel,
        out_shape=jax.ShapeDtypeStruct((B, 1), jnp.float32),
        grid_spec=pltpu.PrefetchScalarGridSpec(
            num_scalar_prefetch=0,
            grid=(1,),
            in_specs=[
                pl.BlockSpec((B, D), lambda i: (0, 0)),
                pl.BlockSpec((D, H1), lambda i: (0, 0)),
                pl.BlockSpec((1, H1), lambda i: (0, 0)),
                pl.BlockSpec((H1, H2), lambda i: (0, 0)),
                pl.BlockSpec((1, H2), lambda i: (0, 0)),
                pl.BlockSpec((1, H2), lambda i: (0, 0)),
                pl.BlockSpec((1, 1), lambda i: (0, 0)),
            ],
            out_specs=pl.BlockSpec((B, 1), lambda i: (0, 0)),
        ),
        compiler_params=pltpu.CompilerParams(
            dimension_semantics=("arbitrary",)),
    )(feat, w1, b1.reshape(1, H1), w2, b2.reshape(1, H2), w3t,
      b3.reshape(1, 1))


# ---------------------------------------------------------------------------
# Wrapper-side helpers (pure data movement / weight folding)
# ---------------------------------------------------------------------------
def _adaptive_max_pool(x, out_hw):
    """AdaptiveMaxPool2d(out_hw) for NCHW inputs with H, W multiples of out_hw."""
    b, c, h, w = x.shape
    return x.reshape(b, c, out_hw, h // out_hw, out_hw, w // out_hw).max(
        axis=(3, 5))


def _extract_patches_s2(h):
    """3x3 / stride-2 / pad-1 im2col: NHWC (B,H,W,C) -> ((B*Ho*Wo, 9*C), dims)."""
    b, hh, ww, c = h.shape
    ho, wo = hh // 2, ww // 2
    hp = jnp.pad(h, ((0, 0), (1, 1), (1, 1), (0, 0)))
    taps = [hp[:, dh:dh + 2 * ho:2, dw:dw + 2 * wo:2, :]
            for dh in range(3) for dw in range(3)]
    patches = jnp.concatenate(taps, axis=-1)               # (B, Ho, Wo, 9*C)
    return patches.reshape(b * ho * wo, 9 * c), (b, ho, wo)


def _fold_conv_bn(p):
    """Fold Conv2d bias + inference BatchNorm2d into (9*Cin, Cout) weight/bias."""
    cout, cin = p["w"].shape[0], p["w"].shape[1]
    scale = p["gamma"] / jnp.sqrt(p["var"] + BN_EPS)        # (Cout,)
    # (Cout, Cin, kh, kw) -> (kh, kw, Cin, Cout) -> (9*Cin, Cout); row order
    # matches the tap order used by _extract_patches_s2.
    w_eff = p["w"].transpose(2, 3, 1, 0).reshape(9 * cin, cout) * scale[None, :]
    b_eff = (p["b"] - p["mean"]) * scale + p["beta"]
    return w_eff, b_eff


def _fold_fc_bn(p):
    """Fold Linear bias + inference BatchNorm1d into (Din, Dout) weight/bias."""
    scale = p["gamma"] / jnp.sqrt(p["var"] + BN_EPS)
    return p["w"] * scale[None, :], (p["b"] - p["mean"]) * scale + p["beta"]


# ---------------------------------------------------------------------------
# Full forward (Pallas path) and pure-JAX reference
# ---------------------------------------------------------------------------
@jax.jit
def discriminator_forward(x, params):
    """x: (B, 1, H, W) f32 with H, W multiples of 128. Returns (score, feat)."""
    B = x.shape[0]
    x = _adaptive_max_pool(x, 128)
    x = _adaptive_max_pool(x, 64)                          # (B, 1, 64, 64)
    h = jnp.transpose(x, (0, 2, 3, 1))                     # NHWC (B, 64, 64, 1)
    for p in params["conv"]:
        w_eff, b_eff = _fold_conv_bn(p)
        patches, (b_, ho, wo) = _extract_patches_s2(h)
        y = _conv_block_pallas(patches, w_eff, b_eff)      # (B*Ho*Wo, Cout)
        h = y.reshape(b_, ho, wo, w_eff.shape[1])
    # PyTorch flatten(1, 3) works on NCHW -> channel-major feature ordering.
    feat = jnp.transpose(h, (0, 3, 1, 2)).reshape(B, -1)   # (B, 4*4*emb)
    w1, b1 = _fold_fc_bn(params["fc"][0])
    w2, b2 = _fold_fc_bn(params["fc"][1])
    w3, b3 = params["fc"][2]["w"], params["fc"][2]["b"]
    out = _fc_head_pallas(feat, w1, b1, w2, b2, w3, b3)
    return out, feat


def discriminator_reference(x, params):
    """Pure-JAX reference mirroring the PyTorch module (eval-mode BN)."""
    x = _adaptive_max_pool(x, 128)
    x = _adaptive_max_pool(x, 64)
    h = x
    for p in params["conv"]:
        h = jax.lax.conv_general_dilated(
            h, p["w"], window_strides=(2, 2), padding=((1, 1), (1, 1)),
            dimension_numbers=("NCHW", "OIHW", "NCHW"))
        h = h + p["b"][None, :, None, None]
        inv = 1.0 / jnp.sqrt(p["var"] + BN_EPS)
        h = (h - p["mean"][None, :, None, None]) \
            * (p["gamma"] * inv)[None, :, None, None] \
            + p["beta"][None, :, None, None]
        h = jnp.where(h >= 0, h, 0.2 * h)                  # LeakyReLU(0.2)
    feat = h.reshape(h.shape[0], -1)
    y = feat
    for p in params["fc"]:
        y = y @ p["w"] + p["b"]
        if p["gamma"] is not None:
            inv = 1.0 / jnp.sqrt(p["var"] + BN_EPS)
            y = (y - p["mean"]) * (p["gamma"] * inv) + p["beta"]
            y = jnp.maximum(y, 0.0)                        # ReLU
        else:
            y = 1.0 / (1.0 + jnp.exp(-y))                  # Sigmoid
    return y, feat


def _init_params(key, emb_dims=128):
    chans = [1, 16, 32, 64, emb_dims]
    params = {"conv": [], "fc": []}
    for i in range(4):
        key, kw, kb, kg, kbe, km, kv = jax.random.split(key, 7)
        cin, cout = chans[i], chans[i + 1]
        params["conv"].append(dict(
            w=jax.random.normal(kw, (cout, cin, 3, 3), jnp.float32)
              / jnp.sqrt(9.0 * cin),
            b=0.1 * jax.random.normal(kb, (cout,), jnp.float32),
            gamma=1.0 + 0.1 * jax.random.normal(kg, (cout,), jnp.float32),
            beta=0.1 * jax.random.normal(kbe, (cout,), jnp.float32),
            mean=0.1 * jax.random.normal(km, (cout,), jnp.float32),
            var=jax.random.uniform(kv, (cout,), jnp.float32, 0.5, 1.5),
        ))
    dims = [4 * 4 * emb_dims, 128, 64, 1]
    for i in range(3):
        key, kw, kb, kg, kbe, km, kv = jax.random.split(key, 7)
        din, dout = dims[i], dims[i + 1]
        has_bn = i < 2
        params["fc"].append(dict(
            w=jax.random.normal(kw, (din, dout), jnp.float32)
              / jnp.sqrt(float(din)),
            b=0.1 * jax.random.normal(kb, (dout,), jnp.float32),
            gamma=(1.0 + 0.1 * jax.random.normal(kg, (dout,), jnp.float32))
                  if has_bn else None,
            beta=0.1 * jax.random.normal(kbe, (dout,), jnp.float32)
                 if has_bn else None,
            mean=0.1 * jax.random.normal(km, (dout,), jnp.float32)
                 if has_bn else None,
            var=jax.random.uniform(kv, (dout,), jnp.float32, 0.5, 1.5)
                if has_bn else None,
        ))
    return params


if __name__ == "__main__":
    B, H, W = 2, 256, 256          # pooled to 128x128 then 64x64 by the model
    emb_dims = 128

    key = jax.random.PRNGKey(0)
    key, kx = jax.random.split(key)
    x = jax.random.normal(kx, (B, 1, H, W), dtype=jnp.float32)
    params = _init_params(key, emb_dims=emb_dims)

    out, feat = discriminator_forward(x, params)
    out, feat = jax.block_until_ready((out, feat))

    out_ref, feat_ref = discriminator_reference(x, params)

    assert out.shape == (B, 1)
    assert feat.shape == (B, 4 * 4 * emb_dims)
    feat_err = float(jnp.max(jnp.abs(feat - feat_ref))
                     / (1e-6 + jnp.max(jnp.abs(feat_ref))))
    out_err = float(jnp.max(jnp.abs(out - out_ref)))
    assert feat_err < 3e-2, f"feat mismatch vs reference: {feat_err}"
    assert out_err < 5e-2, f"output mismatch vs reference: {out_err}"

    print("KERNEL_OK")
</pallas_src>

<mosaic_0001>
module attributes {stable_mosaic.version = 11 : i64} {
  func.func @_conv_affine_leaky_kernel(%arg0: i32, %arg1: memref<1024x9xf32, #tpu.memory_space<vmem>>, %arg2: memref<9x16xf32, #tpu.memory_space<vmem>>, %arg3: memref<1x16xf32, #tpu.memory_space<vmem>>, %arg4: memref<1024x16xf32, #tpu.memory_space<vmem>>) attributes {dimension_semantics = [#tpu.dimension_semantics<parallel>], iteration_bounds = array<i64: 2>, scalar_prefetch = 0 : i64, scratch_operands = 0 : i64, tpu.core_type = #tpu.core_type<tc>, window_params = [{transform_indices = @transform_0, window_bounds = array<i64: 1024, 9>}, {pipeline_mode = #tpu.pipeline_mode<synchronous>, transform_indices = @transform_1, window_bounds = array<i64: 9, 16>}, {pipeline_mode = #tpu.pipeline_mode<synchronous>, transform_indices = @transform_2, window_bounds = array<i64: 1, 16>}, {transform_indices = @transform_3, window_bounds = array<i64: 1024, 16>}]} {
    %c0 = arith.constant 0 : index
    %c0_0 = arith.constant 0 : index
    %0 = vector.load %arg1[%c0, %c0_0] : memref<1024x9xf32, #tpu.memory_space<vmem>>, vector<1024x9xf32>
    %c0_1 = arith.constant 0 : index
    %c0_2 = arith.constant 0 : index
    %1 = vector.load %arg2[%c0_1, %c0_2] : memref<9x16xf32, #tpu.memory_space<vmem>>, vector<9x16xf32>
    %cst = arith.constant dense<0.000000e+00> : vector<1024x16xf32>
    %2 = tpu.matmul %0, %1, %cst {dimension_numbers = #tpu.dot_dimension_numbers<[1], [0], [0], [1], [0, 0, 1, 1], [], []>} : vector<1024x9xf32>, vector<9x16xf32>, vector<1024x16xf32> -> vector<1024x16xf32>
    %c0_3 = arith.constant 0 : index
    %c0_4 = arith.constant 0 : index
    %3 = vector.load %arg3[%c0_3, %c0_4] : memref<1x16xf32, #tpu.memory_space<vmem>>, vector<1x16xf32>
    %4 = vector.broadcast %3 : vector<1x16xf32> to vector<1024x16xf32>
    %5 = arith.addf %2, %4 : vector<1024x16xf32>
    %cst_5 = arith.constant 2.000000e-01 : f32
    %6 = vector.broadcast %cst_5 : f32 to vector<1024x16xf32>
    %7 = arith.mulf %6, %5 : vector<1024x16xf32>
    %8 = arith.maximumf %5, %7 : vector<1024x16xf32>
    %c0_6 = arith.constant 0 : index
    %c0_7 = arith.constant 0 : index
    %9 = vector.load %arg4[%c0_6, %c0_7] : memref<1024x16xf32, #tpu.memory_space<vmem>>, vector<1024x16xf32>
    tpu.vector_store %arg4[%c0_6, %c0_7], %8 {strides = array<i32>} : memref<1024x16xf32, #tpu.memory_space<vmem>>, vector<1024x16xf32>,
    return
  }
  func.func @transform_0(%arg0: i32) -> (i32, i32) {
    %c0_i32 = arith.constant 0 : i32
    %c0_i32_0 = arith.constant 0 : i32
    return %arg0, %c0_i32 : i32, i32
  }
  func.func @transform_1(%arg0: i32) -> (i32, i32) {
    %c0_i32 = arith.constant 0 : i32
    %c0_i32_0 = arith.constant 0 : i32
    %c0_i32_1 = arith.constant 0 : i32
    return %c0_i32, %c0_i32_0 : i32, i32
  }
  func.func @transform_2(%arg0: i32) -> (i32, i32) {
    %c0_i32 = arith.constant 0 : i32
    %c0_i32_0 = arith.constant 0 : i32
    %c0_i32_1 = arith.constant 0 : i32
    return %c0_i32, %c0_i32_0 : i32, i32
  }
  func.func @transform_3(%arg0: i32) -> (i32, i32) {
    %c0_i32 = arith.constant 0 : i32
    %c0_i32_0 = arith.constant 0 : i32
    return %arg0, %c0_i32 : i32, i32
  }
}

module attributes {stable_mosaic.version = 11 : i64} {
  func.func @_conv_affine_leaky_kernel(%arg0: i32, %arg1: memref<256x144xf32, #tpu.memory_space<vmem>>, %arg2: memref<144x32xf32, #tpu.memory_space<vmem>>, %arg3: memref<1x32xf32, #tpu.memory_space<vmem>>, %arg4: memref<256x32xf32, #tpu.memory_space<vmem>>) attributes {dimension_semantics = [#tpu.dimension_semantics<parallel>], iteration_bounds = array<i64: 2>, scalar_prefetch = 0 : i64, scratch_operands = 0 : i64, tpu.core_type = #tpu.core_type<tc>, window_params = [{transform_indices = @transform_0, window_bounds = array<i64: 256, 144>}, {pipeline_mode = #tpu.pipeline_mode<synchronous>, transform_indices = @transform_1, window_bounds = array<i64: 144, 32>}, {pipeline_mode = #tpu.pipeline_mode<synchronous>, transform_indices = @transform_2, window_bounds = array<i64: 1, 32>}, {transform_indices = @transform_3, window_bounds = array<i64: 256, 32>}]} {
    %c0 = arith.constant 0 : index
    %c0_0 = arith.constant 0 : index
    %0 = vector.load %arg1[%c0, %c0_0] : memref<256x144xf32, #tpu.memory_space<vmem>>, vector<256x144xf32>
    %c0_1 = arith.constant 0 : index
    %c0_2 = arith.constant 0 : index
    %1 = vector.load %arg2[%c0_1, %c0_2] : memref<144x32xf32, #tpu.memory_space<vmem>>, vector<144x32xf32>
    %cst = arith.constant dense<0.000000e+00> : vector<256x32xf32>
    %2 = tpu.matmul %0, %1, %cst {dimension_numbers = #tpu.dot_dimension_numbers<[1], [0], [0], [1], [0, 0, 1, 1], [], []>} : vector<256x144xf32>, vector<144x32xf32>, vector<256x32xf32> -> vector<256x32xf32>
    %c0_3 = arith.constant 0 : index
    %c0_4 = arith.constant 0 : index
    %3 = vector.load %arg3[%c0_3, %c0_4] : memref<1x32xf32, #tpu.memory_space<vmem>>, vector<1x32xf32>
    %4 = vector.broadcast %3 : vector<1x32xf32> to vector<256x32xf32>
    %5 = arith.addf %2, %4 : vector<256x32xf32>
    %cst_5 = arith.constant 2.000000e-01 : f32
    %6 = vector.broadcast %cst_5 : f32 to vector<256x32xf32>
    %7 = arith.mulf %6, %5 : vector<256x32xf32>
    %8 = arith.maximumf %5, %7 : vector<256x32xf32>
    %c0_6 = arith.constant 0 : index
    %c0_7 = arith.constant 0 : index
    %9 = vector.load %arg4[%c0_6, %c0_7] : memref<256x32xf32, #tpu.memory_space<vmem>>, vector<256x32xf32>
    tpu.vector_store %arg4[%c0_6, %c0_7], %8 {strides = array<i32>} : memref<256x32xf32, #tpu.memory_space<vmem>>, vector<256x32xf32>,
    return
  }
  func.func @transform_0(%arg0: i32) -> (i32, i32) {
    %c0_i32 = arith.constant 0 : i32
    %c0_i32_0 = arith.constant 0 : i32
    return %arg0, %c0_i32 : i32, i32
  }
  func.func @transform_1(%arg0: i32) -> (i32, i32) {
    %c0_i32 = arith.constant 0 : i32
    %c0_i32_0 = arith.constant 0 : i32
    %c0_i32_1 = arith.constant 0 : i32
    return %c0_i32, %c0_i32_0 : i32, i32
  }
  func.func @transform_2(%arg0: i32) -> (i32, i32) {
    %c0_i32 = arith.constant 0 : i32
    %c0_i32_0 = arith.constant 0 : i32
    %c0_i32_1 = arith.constant 0 : i32
    return %c0_i32, %c0_i32_0 : i32, i32
  }
  func.func @transform_3(%arg0: i32) -> (i32, i32) {
    %c0_i32 = arith.constant 0 : i32
    %c0_i32_0 = arith.constant 0 : i32
    return %arg0, %c0_i32 : i32, i32
  }
}

module attributes {stable_mosaic.version = 11 : i64} {
  func.func @_conv_affine_leaky_kernel(%arg0: i32, %arg1: memref<64x288xf32, #tpu.memory_space<vmem>>, %arg2: memref<288x64xf32, #tpu.memory_space<vmem>>, %arg3: memref<1x64xf32, #tpu.memory_space<vmem>>, %arg4: memref<64x64xf32, #tpu.memory_space<vmem>>) attributes {dimension_semantics = [#tpu.dimension_semantics<parallel>], iteration_bounds = array<i64: 2>, scalar_prefetch = 0 : i64, scratch_operands = 0 : i64, tpu.core_type = #tpu.core_type<tc>, window_params = [{transform_indices = @transform_0, window_bounds = array<i64: 64, 288>}, {pipeline_mode = #tpu.pipeline_mode<synchronous>, transform_indices = @transform_1, window_bounds = array<i64: 288, 64>}, {pipeline_mode = #tpu.pipeline_mode<synchronous>, transform_indices = @transform_2, window_bounds = array<i64: 1, 64>}, {transform_indices = @transform_3, window_bounds = array<i64: 64, 64>}]} {
    %c0 = arith.constant 0 : index
    %c0_0 = arith.constant 0 : index
    %0 = vector.load %arg1[%c0, %c0_0] : memref<64x288xf32, #tpu.memory_space<vmem>>, vector<64x288xf32>
    %c0_1 = arith.constant 0 : index
    %c0_2 = arith.constant 0 : index
    %1 = vector.load %arg2[%c0_1, %c0_2] : memref<288x64xf32, #tpu.memory_space<vmem>>, vector<288x64xf32>
    %cst = arith.constant dense<0.000000e+00> : vector<64x64xf32>
    %2 = tpu.matmul %0, %1, %cst {dimension_numbers = #tpu.dot_dimension_numbers<[1], [0], [0], [1], [0, 0, 1, 1], [], []>} : vector<64x288xf32>, vector<288x64xf32>, vector<64x64xf32> -> vector<64x64xf32>
    %c0_3 = arith.constant 0 : index
    %c0_4 = arith.constant 0 : index
    %3 = vector.load %arg3[%c0_3, %c0_4] : memref<1x64xf32, #tpu.memory_space<vmem>>, vector<1x64xf32>
    %4 = vector.broadcast %3 : vector<1x64xf32> to vector<64x64xf32>
    %5 = arith.addf %2, %4 : vector<64x64xf32>
    %cst_5 = arith.constant 2.000000e-01 : f32
    %6 = vector.broadcast %cst_5 : f32 to vector<64x64xf32>
    %7 = arith.mulf %6, %5 : vector<64x64xf32>
    %8 = arith.maximumf %5, %7 : vector<64x64xf32>
    %c0_6 = arith.constant 0 : index
    %c0_7 = arith.constant 0 : index
    %9 = vector.load %arg4[%c0_6, %c0_7] : memref<64x64xf32, #tpu.memory_space<vmem>>, vector<64x64xf32>
    tpu.vector_store %arg4[%c0_6, %c0_7], %8 {strides = array<i32>} : memref<64x64xf32, #tpu.memory_space<vmem>>, vector<64x64xf32>,
    return
  }
  func.func @transform_0(%arg0: i32) -> (i32, i32) {
    %c0_i32 = arith.constant 0 : i32
    %c0_i32_0 = arith.constant 0 : i32
    return %arg0, %c0_i32 : i32, i32
  }
  func.func @transform_1(%arg0: i32) -> (i32, i32) {
    %c0_i32 = arith.constant 0 : i32
    %c0_i32_0 = arith.constant 0 : i32
    %c0_i32_1 = arith.constant 0 : i32
    return %c0_i32, %c0_i32_0 : i32, i32
  }
  func.func @transform_2(%arg0: i32) -> (i32, i32) {
    %c0_i32 = arith.constant 0 : i32
    %c0_i32_0 = arith.constant 0 : i32
    %c0_i32_1 = arith.constant 0 : i32
    return %c0_i32, %c0_i32_0 : i32, i32
  }
  func.func @transform_3(%arg0: i32) -> (i32, i32) {
    %c0_i32 = arith.constant 0 : i32
    %c0_i32_0 = arith.constant 0 : i32
    return %arg0, %c0_i32 : i32, i32
  }
}

module attributes {stable_mosaic.version = 11 : i64} {
  func.func @_conv_affine_leaky_kernel(%arg0: i32, %arg1: memref<16x576xf32, #tpu.memory_space<vmem>>, %arg2: memref<576x128xf32, #tpu.memory_space<vmem>>, %arg3: memref<1x128xf32, #tpu.memory_space<vmem>>, %arg4: memref<16x128xf32, #tpu.memory_space<vmem>>) attributes {dimension_semantics = [#tpu.dimension_semantics<parallel>], iteration_bounds = array<i64: 2>, scalar_prefetch = 0 : i64, scratch_operands = 0 : i64, tpu.core_type = #tpu.core_type<tc>, window_params = [{transform_indices = @transform_0, window_bounds = array<i64: 16, 576>}, {pipeline_mode = #tpu.pipeline_mode<synchronous>, transform_indices = @transform_1, window_bounds = array<i64: 576, 128>}, {pipeline_mode = #tpu.pipeline_mode<synchronous>, transform_indices = @transform_2, window_bounds = array<i64: 1, 128>}, {transform_indices = @transform_3, window_bounds = array<i64: 16, 128>}]} {
    %c0 = arith.constant 0 : index
    %c0_0 = arith.constant 0 : index
    %0 = vector.load %arg1[%c0, %c0_0] : memref<16x576xf32, #tpu.memory_space<vmem>>, vector<16x576xf32>
    %c0_1 = arith.constant 0 : index
    %c0_2 = arith.constant 0 : index
    %1 = vector.load %arg2[%c0_1, %c0_2] : memref<576x128xf32, #tpu.memory_space<vmem>>, vector<576x128xf32>
    %cst = arith.constant dense<0.000000e+00> : vector<16x128xf32>
    %2 = tpu.matmul %0, %1, %cst {dimension_numbers = #tpu.dot_dimension_numbers<[1], [0], [0], [1], [0, 0, 1, 1], [], []>} : vector<16x576xf32>, vector<576x128xf32>, vector<16x128xf32> -> vector<16x128xf32>
    %c0_3 = arith.constant 0 : index
    %c0_4 = arith.constant 0 : index
    %3 = vector.load %arg3[%c0_3, %c0_4] : memref<1x128xf32, #tpu.memory_space<vmem>>, vector<1x128xf32>
    %4 = vector.broadcast %3 : vector<1x128xf32> to vector<16x128xf32>
    %5 = arith.addf %2, %4 : vector<16x128xf32>
    %cst_5 = arith.constant 2.000000e-01 : f32
    %6 = vector.broadcast %cst_5 : f32 to vector<16x128xf32>
    %7 = arith.mulf %6, %5 : vector<16x128xf32>
    %8 = arith.maximumf %5, %7 : vector<16x128xf32>
    %c0_6 = arith.constant 0 : index
    %c0_7 = arith.constant 0 : index
    %9 = vector.load %arg4[%c0_6, %c0_7] : memref<16x128xf32, #tpu.memory_space<vmem>>, vector<16x128xf32>
    tpu.vector_store %arg4[%c0_6, %c0_7], %8 {strides = array<i32>} : memref<16x128xf32, #tpu.memory_space<vmem>>, vector<16x128xf32>,
    return
  }
  func.func @transform_0(%arg0: i32) -> (i32, i32) {
    %c0_i32 = arith.constant 0 : i32
    %c0_i32_0 = arith.constant 0 : i32
    return %arg0, %c0_i32 : i32, i32
  }
  func.func @transform_1(%arg0: i32) -> (i32, i32) {
    %c0_i32 = arith.constant 0 : i32
    %c0_i32_0 = arith.constant 0 : i32
    %c0_i32_1 = arith.constant 0 : i32
    return %c0_i32, %c0_i32_0 : i32, i32
  }
  func.func @transform_2(%arg0: i32) -> (i32, i32) {
    %c0_i32 = arith.constant 0 : i32
    %c0_i32_0 = arith.constant 0 : i32
    %c0_i32_1 = arith.constant 0 : i32
    return %c0_i32, %c0_i32_0 : i32, i32
  }
  func.func @transform_3(%arg0: i32) -> (i32, i32) {
    %c0_i32 = arith.constant 0 : i32
    %c0_i32_0 = arith.constant 0 : i32
    return %arg0, %c0_i32 : i32, i32
  }
}

module attributes {stable_mosaic.version = 11 : i64} {
  func.func @_fc_head_kernel(%arg0: i32, %arg1: memref<2x2048xf32, #tpu.memory_space<vmem>>, %arg2: memref<2048x128xf32, #tpu.memory_space<vmem>>, %arg3: memref<1x128xf32, #tpu.memory_space<vmem>>, %arg4: memref<128x64xf32, #tpu.memory_space<vmem>>, %arg5: memref<1x64xf32, #tpu.memory_space<vmem>>, %arg6: memref<1x64xf32, #tpu.memory_space<vmem>>, %arg7: memref<1x1xf32, #tpu.memory_space<vmem>>, %arg8: memref<2x1xf32, #tpu.memory_space<vmem>>) attributes {dimension_semantics = [#tpu.dimension_semantics<arbitrary>], iteration_bounds = array<i64: 1>, scalar_prefetch = 0 : i64, scratch_operands = 0 : i64, tpu.core_type = #tpu.core_type<tc>, window_params = [{pipeline_mode = #tpu.pipeline_mode<synchronous>, transform_indices = @transform_0, window_bounds = array<i64: 2, 2048>}, {pipeline_mode = #tpu.pipeline_mode<synchronous>, transform_indices = @transform_1, window_bounds = array<i64: 2048, 128>}, {pipeline_mode = #tpu.pipeline_mode<synchronous>, transform_indices = @transform_2, window_bounds = array<i64: 1, 128>}, {pipeline_mode = #tpu.pipeline_mode<synchronous>, transform_indices = @transform_3, window_bounds = array<i64: 128, 64>}, {pipeline_mode = #tpu.pipeline_mode<synchronous>, transform_indices = @transform_4, window_bounds = array<i64: 1, 64>}, {pipeline_mode = #tpu.pipeline_mode<synchronous>, transform_indices = @transform_5, window_bounds = array<i64: 1, 64>}, {pipeline_mode = #tpu.pipeline_mode<synchronous>, transform_indices = @transform_6, window_bounds = array<i64: 1, 1>}, {pipeline_mode = #tpu.pipeline_mode<synchronous>, transform_indices = @transform_7, window_bounds = array<i64: 2, 1>}]} {
    %c0 = arith.constant 0 : index
    %c0_0 = arith.constant 0 : index
    %0 = vector.load %arg1[%c0, %c0_0] : memref<2x2048xf32, #tpu.memory_space<vmem>>, vector<2x2048xf32>
    %c0_1 = arith.constant 0 : index
    %c0_2 = arith.constant 0 : index
    %1 = vector.load %arg2[%c0_1, %c0_2] : memref<2048x128xf32, #tpu.memory_space<vmem>>, vector<2048x128xf32>
    %cst = arith.constant dense<0.000000e+00> : vector<2x128xf32>
    %2 = tpu.matmul %0, %1, %cst {dimension_numbers = #tpu.dot_dimension_numbers<[1], [0], [0], [1], [0, 0, 1, 1], [], []>} : vector<2x2048xf32>, vector<2048x128xf32>, vector<2x128xf32> -> vector<2x128xf32>
    %c0_3 = arith.constant 0 : index
    %c0_4 = arith.constant 0 : index
    %3 = vector.load %arg3[%c0_3, %c0_4] : memref<1x128xf32, #tpu.memory_space<vmem>>, vector<1x128xf32>
    %4 = vector.broadcast %3 : vector<1x128xf32> to vector<2x128xf32>
    %5 = arith.addf %2, %4 : vector<2x128xf32>
    %cst_5 = arith.constant 0.000000e+00 : f32
    %6 = vector.broadcast %cst_5 : f32 to vector<2x128xf32>
    %7 = arith.maximumf %5, %6 : vector<2x128xf32>
    %c0_6 = arith.constant 0 : index
    %c0_7 = arith.constant 0 : index
    %8 = vector.load %arg4[%c0_6, %c0_7] : memref<128x64xf32, #tpu.memory_space<vmem>>, vector<128x64xf32>
    %cst_8 = arith.constant dense<0.000000e+00> : vector<2x64xf32>
    %9 = tpu.matmul %7, %8, %cst_8 {dimension_numbers = #tpu.dot_dimension_numbers<[1], [0], [0], [1], [0, 0, 1, 1], [], []>} : vector<2x128xf32>, vector<128x64xf32>, vector<2x64xf32> -> vector<2x64xf32>
    %c0_9 = arith.constant 0 : index
    %c0_10 = arith.constant 0 : index
    %10 = vector.load %arg5[%c0_9, %c0_10] : memref<1x64xf32, #tpu.memory_space<vmem>>, vector<1x64xf32>
    %11 = vector.broadcast %10 : vector<1x64xf32> to vector<2x64xf32>
    %12 = arith.addf %9, %11 : vector<2x64xf32>
    %cst_11 = arith.constant 0.000000e+00 : f32
    %13 = vector.broadcast %cst_11 : f32 to vector<2x64xf32>
    %14 = arith.maximumf %12, %13 : vector<2x64xf32>
    %c0_12 = arith.constant 0 : index
    %c0_13 = arith.constant 0 : index
    %15 = vector.load %arg6[%c0_12, %c0_13] : memref<1x64xf32, #tpu.memory_space<vmem>>, vector<1x64xf32>
    %16 = vector.broadcast %15 : vector<1x64xf32> to vector<2x64xf32>
    %17 = arith.mulf %14, %16 : vector<2x64xf32>
    %cst_14 = arith.constant dense<0.000000e+00> : vector<2xf32>
    %18 = vector.multi_reduction <add>, %17, %cst_14 [1] : vector<2x64xf32> to vector<2xf32>
    %19 = vector.shape_cast %18 : vector<2xf32> to vector<2x1xf32>
    %c0_15 = arith.constant 0 : index
    %c0_16 = arith.constant 0 : index
    %20 = vector.load %arg7[%c0_15, %c0_16] : memref<1x1xf32, #tpu.memory_space<vmem>>, vector<1x1xf32>
    %21 = vector.broadcast %20 : vector<1x1xf32> to vector<2x1xf32>
    %22 = arith.addf %19, %21 : vector<2x1xf32>
    %cst_17 = arith.constant 0.000000e+00 : f32
    %23 = vector.broadcast %cst_17 : f32 to vector<2x1xf32>
    %24 = arith.subf %23, %22 : vector<2x1xf32>
    %25 = math.exp %24 : vector<2x1xf32>
    %cst_18 = arith.constant 1.000000e+00 : f32
    %26 = vector.broadcast %cst_18 : f32 to vector<2x1xf32>
    %27 = arith.addf %26, %25 : vector<2x1xf32>
    %cst_19 = arith.constant 1.000000e+00 : f32
    %28 = vector.broadcast %cst_19 : f32 to vector<2x1xf32>
    %29 = arith.divf %28, %27 : vector<2x1xf32>
    %c0_20 = arith.constant 0 : index
    %c0_21 = arith.constant 0 : index
    %30 = vector.load %arg8[%c0_20, %c0_21] : memref<2x1xf32, #tpu.memory_space<vmem>>, vector<2x1xf32>
    tpu.vector_store %arg8[%c0_20, %c0_21], %29 {strides = array<i32>} : memref<2x1xf32, #tpu.memory_space<vmem>>, vector<2x1xf32>,
    return
  }
  func.func @transform_0(%arg0: i32) -> (i32, i32) {
    %c0_i32 = arith.constant 0 : i32
    %c0_i32_0 = arith.constant 0 : i32
    %c0_i32_1 = arith.constant 0 : i32
    return %c0_i32, %c0_i32_0 : i32, i32
  }
  func.func @transform_1(%arg0: i32) -> (i32, i32) {
    %c0_i32 = arith.constant 0 : i32
    %c0_i32_0 = arith.constant 0 : i32
    %c0_i32_1 = arith.constant 0 : i32
    return %c0_i32, %c0_i32_0 : i32, i32
  }
  func.func @transform_2(%arg0: i32) -> (i32, i32) {
    %c0_i32 = arith.constant 0 : i32
    %c0_i32_0 = arith.constant 0 : i32
    %c0_i32_1 = arith.constant 0 : i32
    return %c0_i32, %c0_i32_0 : i32, i32
  }
  func.func @transform_3(%arg0: i32) -> (i32, i32) {
    %c0_i32 = arith.constant 0 : i32
    %c0_i32_0 = arith.constant 0 : i32
    %c0_i32_1 = arith.constant 0 : i32
    return %c0_i32, %c0_i32_0 : i32, i32
  }
  func.func @transform_4(%arg0: i32) -> (i32, i32) {
    %c0_i32 = arith.constant 0 : i32
    %c0_i32_0 = arith.constant 0 : i32
    %c0_i32_1 = arith.constant 0 : i32
    return %c0_i32, %c0_i32_0 : i32, i32
  }
  func.func @transform_5(%arg0: i32) -> (i32, i32) {
    %c0_i32 = arith.constant 0 : i32
    %c0_i32_0 = arith.constant 0 : i32
    %c0_i32_1 = arith.constant 0 : i32
    return %c0_i32, %c0_i32_0 : i32, i32
  }
  func.func @transform_6(%arg0: i32) -> (i32, i32) {
    %c0_i32 = arith.constant 0 : i32
    %c0_i32_0 = arith.constant 0 : i32
    %c0_i32_1 = arith.constant 0 : i32
    return %c0_i32, %c0_i32_0 : i32, i32
  }
  func.func @transform_7(%arg0: i32) -> (i32, i32) {
    %c0_i32 = arith.constant 0 : i32
    %c0_i32_0 = arith.constant 0 : i32
    %c0_i32_1 = arith.constant 0 : i32
    return %c0_i32, %c0_i32_0 : i32, i32
  }
}

</mosaic_0001>

<llo_original>
// kernel: discriminator_forward.5
$region0: #{discriminator_forward.5}
  #allocation0 [shape = 'u32[]', space=smem, size = 0x4, offset = 0x4, fixed_abs, tag = 'smem constant byte address 0x4 - core index']
  #allocation1 [shape = 'u32[144,128]{1,0:T(1,128)}', space=vmem, size = 0x12000, scoped, tag = 'internal scratch']
  %s0 = inlined_call_operand.vmem [shape: f32[2048,9], index: 0, kind: input, shape index: {}]
  %s1 = inlined_call_operand.vmem [shape: f32[9,16], index: 1, kind: input, shape index: {}]
  %s2 = inlined_call_operand.vmem [shape: f32[1,16], index: 2, kind: input, shape index: {}]
  %s3 = inlined_call_operand.vmem [shape: f32[2048,16], index: 3, kind: output, shape index: {}]
  %s4 = sld [smem:[#allocation0]]
  $region45: #{discriminator_forward.5} parent=0
    _
  %s6 = ssub.s32 1, %s4
  %s7 = scalar_select 0, %s6, %s4
  loop: start=0, step=1, limit=4
  $region2: #{discriminator_forward.5} parent=0 // loop_pre_header
    _
  $region3: #{discriminator_forward.5} parent=0 // loop_header
    %s9 = sphi 0, %s13
    %p10 = scmp.ge.s32.totalorder %s9, 4
    %s19 = sphi 0, %s21
    %s22 = sphi 0, %s19
    %s23 = sphi 0, %s22
    %s39 = sphi 0, %s23
    %s43 = sphi 0, %s43
    %s45 = sphi 0, %s43
    %s46 = sphi 0, %s45
    %s60 = sphi 0, %s46
    %s64 = sphi 0, %s64
    %s66 = sphi 0, %s64
    %s67 = sphi 0, %s66
    %s81 = sphi 0, %s67
    %s87 = sphi 0, %s89
    %s90 = sphi 0, %s87
    %s91 = sphi 0, %s90
    %s107 = sphi 0, %s91
  $region4: #{discriminator_forward.5} parent=0 // loop_header_branch
    %12 = sbr.rel (%p10) target = $region8
  $region5: #{discriminator_forward.5} parent=0 // loop_body
    %s14 = ssub.s32 %s9, 1
    %s15 = ssub.s32 %s9, 2
    %s16 = sadd.s32 %s9, 1
    %s17 = ssub.s32 %s9, %s16
    %p18 = scmp.eq.s32.totalorder %s17, 0
    %s20 = sadd.s32 %s19, 1
    %s21 = scalar_select %p18, %s19, %s20
    %p24 = pneg %p18
    %p25 = scmp.eq.s32.totalorder %s9, 1
    %p26 = por %p24, %p25
    %p27 = scmp.ne.s32.totalorder %s19, %s22
    %p28 = scmp.eq.s32.totalorder %s9, 0
    %p29 = por %p27, %p28
    %p30 = scmp.ne.s32.totalorder %s19, %s22
    %p31 = scmp.eq.s32.totalorder %s14, 1
    %p32 = por %p30, %p31
    %p33 = scmp.ne.s32.totalorder %s22, %s23
    %p34 = scmp.eq.s32.totalorder %s14, 0
    %p35 = por %p33, %p34
    %p36 = scmp.ne.s32.totalorder %s22, %s23
    %p37 = scmp.eq.s32.totalorder %s15, 1
    %p38 = por %p36, %p37
    %p40 = scmp.ne.s32.totalorder %s23, %s39
    %p41 = scmp.eq.s32.totalorder %s15, 0
    %p42 = por %p40, %p41
    %s44 = sadd.s32 %s43, 1
    %p47 = scmp.eq.s32.totalorder %s9, 1
    %p48 = scmp.ne.s32.totalorder %s43, %s45
    %p49 = scmp.eq.s32.totalorder %s9, 0
    %p50 = por %p48, %p49
    %p51 = scmp.ne.s32.totalorder %s43, %s45
    %p52 = scmp.eq.s32.totalorder %s14, 1
    %p53 = por %p51, %p52
    %p54 = scmp.ne.s32.totalorder %s45, %s46
    %p55 = scmp.eq.s32.totalorder %s14, 0
    %p56 = por %p54, %p55
    %p57 = scmp.ne.s32.totalorder %s45, %s46
    %p58 = scmp.eq.s32.totalorder %s15, 1
    %p59 = por %p57, %p58
    %p61 = scmp.ne.s32.totalorder %s46, %s60
    %p62 = scmp.eq.s32.totalorder %s15, 0
    %p63 = por %p61, %p62
    %s65 = sadd.s32 %s64, 1
    %p68 = scmp.eq.s32.totalorder %s9, 1
    %p69 = scmp.ne.s32.totalorder %s64, %s66
    %p70 = scmp.eq.s32.totalorder %s9, 0
    %p71 = por %p69, %p70
    %p72 = scmp.ne.s32.totalorder %s64, %s66
    %p73 = scmp.eq.s32.totalorder %s14, 1
    %p74 = por %p72, %p73
    %p75 = scmp.ne.s32.totalorder %s66, %s67
    %p76 = scmp.eq.s32.totalorder %s14, 0
    %p77 = por %p75, %p76
    %p78 = scmp.ne.s32.totalorder %s66, %s67
    %p79 = scmp.eq.s32.totalorder %s15, 1
    %p80 = por %p78, %p79
    %p82 = scmp.ne.s32.totalorder %s67, %s81
    %p83 = scmp.eq.s32.totalorder %s15, 0
    %p84 = por %p82, %p83
    %s85 = ssub.s32 %s9, %s16
    %p86 = scmp.eq.s32.totalorder %s85, 0
    %s88 = sadd.s32 %s87, 1
    %s89 = scalar_select %p86, %s87, %s88
    %p92 = pneg %p86
    %p93 = scmp.eq.s32.totalorder %s9, 1
    %p94 = por %p92, %p93
    %p95 = scmp.ne.s32.totalorder %s87, %s90
    %p96 = scmp.eq.s32.totalorder %s9, 0
    %p97 = por %p95, %p96
    %p98 = scmp.ne.s32.totalorder %s87, %s90
    %p99 = scmp.eq.s32.totalorder %s14, 1
    %p100 = por %p98, %p99
    %p101 = scmp.ne.s32.totalorder %s90, %s91
    %p102 = scmp.eq.s32.totalorder %s14, 0
    %p103 = por %p101, %p102
    %p104 = scmp.ne.s32.totalorder %s90, %s91
    %p105 = scmp.eq.s32.totalorder %s15, 1
    %p106 = por %p104, %p105
    %p108 = scmp.ne.s32.totalorder %s91, %s107
    %p109 = scmp.eq.s32.totalorder %s15, 0
    %p110 = por %p108, %p109
    %p111 = scmp.le.s32.totalorder 1, %s9
    %p112 = scmp.lt.s32.totalorder %s9, 3
    %p113 = pnand %p111, %p112
    %p114 = pneg %p113
    // Predicated region
    $region9: #{discriminator_forward.5} parent=5 // pred_check
      _
    $region10: #{discriminator_forward.5} parent=5 // pred_check_branch
      %116 = sbr.rel (%p113) target = $region12
    $region11: #{discriminator_forward.5} parent=5 // pred_region
      %s117 = ssub.s32 %s9, 1
      // Predicated region
      $region13: #{discriminator_forward.5} parent=11 // pred_check
        %p118 = pneg %p56
      $region14: #{discriminator_forward.5} parent=11 // pred_check_branch
        %120 = sbr.rel (%p118) target = $region16
      $region15: #{discriminator_forward.5} parent=11 // pred_region
        _
      $region16: #{discriminator_forward.5} parent=11 // pred_fallthru
        _
      // Predicated region
      $region17: #{discriminator_forward.5} parent=11 // pred_check
        %p121 = pneg %p77
      $region18: #{discriminator_forward.5} parent=11 // pred_check_branch
        %123 = sbr.rel (%p121) target = $region20
      $region19: #{discriminator_forward.5} parent=11 // pred_region
        _
      $region20: #{discriminator_forward.5} parent=11 // pred_fallthru
        _
    $region12: #{discriminator_forward.5} parent=5 // pred_fallthru
      _
    %p124 = scmp.lt.s32.totalorder %s9, 2
    // Predicated region
    $region21: #{discriminator_forward.5} parent=5 // pred_check
      %p125 = pneg %p124
    $region22: #{discriminator_forward.5} parent=5 // pred_check_branch
      %127 = sbr.rel (%p125) target = $region24
    $region23: #{discriminator_forward.5} parent=5 // pred_region
      // Predicated region
      $region25: #{discriminator_forward.5} parent=23 // pred_check
        %p128 = pneg %p29
      $region26: #{discriminator_forward.5} parent=23 // pred_check_branch
        %130 = sbr.rel (%p128) target = $region28
      $region27: #{discriminator_forward.5} parent=23 // pred_region
        %s131 = smul.u32 128, %s9
        %p132 = scmp.lt.s32.totalorder %s131, 255
        %s133 = scalar_select %p132, %s131, 255
        %s134 = smul.addr %s133, 8
        %s135 = scalar_lea.vmem %s0, %s134
        %s136 = smul.u32 128, %s9
      $region28: #{discriminator_forward.5} parent=23 // pred_fallthru
        _
    $region24: #{discriminator_forward.5} parent=5 // pred_fallthru
      _
    %p137 = scmp.le.s32.totalorder 1, %s9
    %p138 = scmp.lt.s32.totalorder %s9, 3
    %p139 = pnand %p137, %p138
    %p140 = pneg %p139
    // Predicated region
    $region29: #{discriminator_forward.5} parent=5 // pred_check
      _
    $region30: #{discriminator_forward.5} parent=5 // pred_check_branch
      %142 = sbr.rel (%p139) target = $region32
    $region31: #{discriminator_forward.5} parent=5 // pred_region
      %s143 = ssub.s32 %s9, 1
      %s144 = smul.u32 128, %s14
      %p145 = scmp.lt.s32.totalorder %s144, 255
      %s146 = scalar_select %p145, %s144, 255
      %s147 = smul.addr %s146, 8
      %s148 = scalar_lea.vmem %s0, %s147
      %p149 = pneg %p35
      %p150 = pneg %p32
      %p151 = pneg %p56
      %p152 = pneg %p53
      %p153 = pneg %p77
      %p154 = pneg %p74
      %p155 = pneg %p103
      %p156 = pneg %p100
      %s157 = smul.u32 128, %s14
      %p158 = scmp.lt.s32.totalorder %s157, 255
      %s159 = scalar_select %p158, %s157, 255
      %s160 = smul.addr %s159, 8
      %s161 = scalar_lea.vmem %s3, %s160
      %s162 = smul.u32 128, %s14
      %p163 = scmp.lt.s32.totalorder %s162, 255
      %s164 = scalar_select %p163, %s162, 255
      %s165 = smul.addr %s164, 8
      %s166 = scalar_lea.vmem %s0, %s165
      %s167 = smul.u32 128, %s14
      %s168 = smul.u32 128, %s14
      %p169 = scmp.lt.s32.totalorder %s168, 255
      %s170 = scalar_select %p169, %s168, 255
      %s171 = smul.addr %s170, 8
      %s172 = scalar_lea.vmem %s3, %s171
      %s173 = smul.u32 128, %s14
      %v174 = vld [vmem:[%s166] sm:$0xff]
      %v175 = vld [vmem:[%s166 + $0x8] sm:$0xff]
      %v176 = vld [vmem:[%s166 + $0x10] sm:$0xff]
      %v177 = vld [vmem:[%s166 + $0x18] sm:$0xff]
      %v178 = vld [vmem:[%s166 + $0x20] sm:$0xff]
      %v179 = vld [vmem:[%s166 + $0x28] sm:$0xff]
      %v180 = vld [vmem:[%s166 + $0x30] sm:$0xff]
      %v181 = vld [vmem:[%s166 + $0x38] sm:$0xff]
      %v182 = vld [vmem:[%s166 + $0x40] sm:$0xff]
      %v183 = vld [vmem:[%s166 + $0x48] sm:$0xff]
      %v184 = vld [vmem:[%s166 + $0x50] sm:$0xff]
      %v185 = vld [vmem:[%s166 + $0x58] sm:$0xff]
      %v186 = vld [vmem:[%s166 + $0x60] sm:$0xff]
      %v187 = vld [vmem:[%s166 + $0x68] sm:$0xff]
      %v188 = vld [vmem:[%s166 + $0x70] sm:$0xff]
      %v189 = vld [vmem:[%s166 + $0x78] sm:$0xff]
      %v190 = vld [vmem:[%s166 + $0x80] sm:$0xff]
      %v191 = vld [vmem:[%s166 + $0x88] sm:$0xff]
      %v192 = vld [vmem:[%s166 + $0x90] sm:$0xff]
      %v193 = vld [vmem:[%s166 + $0x98] sm:$0xff]
      %v194 = vld [vmem:[%s166 + $0xa0] sm:$0xff]
      %v195 = vld [vmem:[%s166 + $0xa8] sm:$0xff]
      %v196 = vld [vmem:[%s166 + $0xb0] sm:$0xff]
      %v197 = vld [vmem:[%s166 + $0xb8] sm:$0xff]
      %v198 = vld [vmem:[%s166 + $0xc0] sm:$0xff]
      %v199 = vld [vmem:[%s166 + $0xc8] sm:$0xff]
      %v200 = vld [vmem:[%s166 + $0xd0] sm:$0xff]
      %v201 = vld [vmem:[%s166 + $0xd8] sm:$0xff]
      %v202 = vld [vmem:[%s166 + $0xe0] sm:$0xff]
      %v203 = vld [vmem:[%s166 + $0xe8] sm:$0xff]
      %v204 = vld [vmem:[%s166 + $0xf0] sm:$0xff]
      %v205 = vld [vmem:[%s166 + $0xf8] sm:$0xff]
      %v206 = vld [vmem:[%s166 + $0x100] sm:$0xff]
      %v207 = vld [vmem:[%s166 + $0x108] sm:$0xff]
      %v208 = vld [vmem:[%s166 + $0x110] sm:$0xff]
      %v209 = vld [vmem:[%s166 + $0x118] sm:$0xff]
      %v210 = vld [vmem:[%s166 + $0x120] sm:$0xff]
      %v211 = vld [vmem:[%s166 + $0x128] sm:$0xff]
      %v212 = vld [vmem:[%s166 + $0x130] sm:$0xff]
      %v213 = vld [vmem:[%s166 + $0x138] sm:$0xff]
      %v214 = vld [vmem:[%s166 + $0x140] sm:$0xff]
      %v215 = vld [vmem:[%s166 + $0x148] sm:$0xff]
      %v216 = vld [vmem:[%s166 + $0x150] sm:$0xff]
      %v217 = vld [vmem:[%s166 + $0x158] sm:$0xff]
      %v218 = vld [vmem:[%s166 + $0x160] sm:$0xff]
      %v219 = vld [vmem:[%s166 + $0x168] sm:$0xff]
      %v220 = vld [vmem:[%s166 + $0x170] sm:$0xff]
      %v221 = vld [vmem:[%s166 + $0x178] sm:$0xff]
      %v222 = vld [vmem:[%s166 + $0x180] sm:$0xff]
      %v223 = vld [vmem:[%s166 + $0x188] sm:$0xff]
      %v224 = vld [vmem:[%s166 + $0x190] sm:$0xff]
      %v225 = vld [vmem:[%s166 + $0x198] sm:$0xff]
      %v226 = vld [vmem:[%s166 + $0x1a0] sm:$0xff]
      %v227 = vld [vmem:[%s166 + $0x1a8] sm:$0xff]
      %v228 = vld [vmem:[%s166 + $0x1b0] sm:$0xff]
      %v229 = vld [vmem:[%s166 + $0x1b8] sm:$0xff]
      %v230 = vld [vmem:[%s166 + $0x1c0] sm:$0xff]
      %v231 = vld [vmem:[%s166 + $0x1c8] sm:$0xff]
      %v232 = vld [vmem:[%s166 + $0x1d0] sm:$0xff]
      %v233 = vld [vmem:[%s166 + $0x1d8] sm:$0xff]
      %v234 = vld [vmem:[%s166 + $0x1e0] sm:$0xff]
      %v235 = vld [vmem:[%s166 + $0x1e8] sm:$0xff]
      %v236 = vld [vmem:[%s166 + $0x1f0] sm:$0xff]
      %v237 = vld [vmem:[%s166 + $0x1f8] sm:$0xff]
      %v238 = vld [vmem:[%s166 + $0x200] sm:$0xff]
      %v239 = vld [vmem:[%s166 + $0x208] sm:$0xff]
      %v240 = vld [vmem:[%s166 + $0x210] sm:$0xff]
      %v241 = vld [vmem:[%s166 + $0x218] sm:$0xff]
      %v242 = vld [vmem:[%s166 + $0x220] sm:$0xff]
      %v243 = vld [vmem:[%s166 + $0x228] sm:$0xff]
      %v244 = vld [vmem:[%s166 + $0x230] sm:$0xff]
      %v245 = vld [vmem:[%s166 + $0x238] sm:$0xff]
      %v246 = vld [vmem:[%s166 + $0x240] sm:$0xff]
      %v247 = vld [vmem:[%s166 + $0x248] sm:$0xff]
      %v248 = vld [vmem:[%s166 + $0x250] sm:$0xff]
      %v249 = vld [vmem:[%s166 + $0x258] sm:$0xff]
      %v250 = vld [vmem:[%s166 + $0x260] sm:$0xff]
      %v251 = vld [vmem:[%s166 + $0x268] sm:$0xff]
      %v252 = vld [vmem:[%s166 + $0x270] sm:$0xff]
      %v253 = vld [vmem:[%s166 + $0x278] sm:$0xff]
      %v254 = vld [vmem:[%s166 + $0x280] sm:$0xff]
      %v255 = vld [vmem:[%s166 + $0x288] sm:$0xff]
      %v256 = vld [vmem:[%s166 + $0x290] sm:$0xff]
      %v257 = vld [vmem:[%s166 + $0x298] sm:$0xff]
      %v258 = vld [vmem:[%s166 + $0x2a0] sm:$0xff]
      %v259 = vld [vmem:[%s166 + $0x2a8] sm:$0xff]
      %v260 = vld [vmem:[%s166 + $0x2b0] sm:$0xff]
      %v261 = vld [vmem:[%s166 + $0x2b8] sm:$0xff]
      %v262 = vld [vmem:[%s166 + $0x2c0] sm:$0xff]
      %v263 = vld [vmem:[%s166 + $0x2c8] sm:$0xff]
      %v264 = vld [vmem:[%s166 + $0x2d0] sm:$0xff]
      %v265 = vld [vmem:[%s166 + $0x2d8] sm:$0xff]
      %v266 = vld [vmem:[%s166 + $0x2e0] sm:$0xff]
      %v267 = vld [vmem:[%s166 + $0x2e8] sm:$0xff]
      %v268 = vld [vmem:[%s166 + $0x2f0] sm:$0xff]
      %v269 = vld [vmem:[%s166 + $0x2f8] sm:$0xff]
      %v270 = vld [vmem:[%s166 + $0x300] sm:$0xff]
      %v271 = vld [vmem:[%s166 + $0x308] sm:$0xff]
      %v272 = vld [vmem:[%s166 + $0x310] sm:$0xff]
      %v273 = vld [vmem:[%s166 + $0x318] sm:$0xff]
      %v274 = vld [vmem:[%s166 + $0x320] sm:$0xff]
      %v275 = vld [vmem:[%s166 + $0x328] sm:$0xff]
      %v276 = vld [vmem:[%s166 + $0x330] sm:$0xff]
      %v277 = vld [vmem:[%s166 + $0x338] sm:$0xff]
      %v278 = vld [vmem:[%s166 + $0x340] sm:$0xff]
      %v279 = vld [vmem:[%s166 + $0x348] sm:$0xff]
      %v280 = vld [vmem:[%s166 + $0x350] sm:$0xff]
      %v281 = vld [vmem:[%s166 + $0x358] sm:$0xff]
      %v282 = vld [vmem:[%s166 + $0x360] sm:$0xff]
      %v283 = vld [vmem:[%s166 + $0x368] sm:$0xff]
      %v284 = vld [vmem:[%s166 + $0x370] sm:$0xff]
      %v285 = vld [vmem:[%s166 + $0x378] sm:$0xff]
      %v286 = vld [vmem:[%s166 + $0x380] sm:$0xff]
      %v287 = vld [vmem:[%s166 + $0x388] sm:$0xff]
      %v288 = vld [vmem:[%s166 + $0x390] sm:$0xff]
      %v289 = vld [vmem:[%s166 + $0x398] sm:$0xff]
      %v290 = vld [vmem:[%s166 + $0x3a0] sm:$0xff]
      %v291 = vld [vmem:[%s166 + $0x3a8] sm:$0xff]
      %v292 = vld [vmem:[%s166 + $0x3b0] sm:$0xff]
      %v293 = vld [vmem:[%s166 + $0x3b8] sm:$0xff]
      %v294 = vld [vmem:[%s166 + $0x3c0] sm:$0xff]
      %v295 = vld [vmem:[%s166 + $0x3c8] sm:$0xff]
      %v296 = vld [vmem:[%s166 + $0x3d0] sm:$0xff]
      %v297 = vld [vmem:[%s166 + $0x3d8] sm:$0xff]
      %v298 = vld [vmem:[%s166 + $0x3e0] sm:$0xff]
      %v299 = vld [vmem:[%s166 + $0x3e8] sm:$0xff]
      %v300 = vld [vmem:[%s166 + $0x3f0] sm:$0xff]
      %v301 = vld [vmem:[%s166 + $0x3f8] sm:$0xff]
      %v302 = vld [vmem:[%s1] sm:$0xff]
      %v303 = vld [vmem:[%s1 + $0x8] sm:$0x1]
      %v304 = vld [vmem:[%s2] sm:$0x1]
      %v306 = vlaneseq
      %v307 = vshrl.u32 %v306, 7
      %v308 = vsub.s32 0, %v307
      %v309 = vrot.slane %v304, %v308
      %vm311 = vcmask 72704
      %v313 = vsel %vm311, %v174, 0
      %v316 = vsel %vm311, %v175, 0
      %v319 = vsel %vm311, %v176, 0
      %v322 = vsel %vm311, %v177, 0
      %v325 = vsel %vm311, %v178, 0
      %v328 = vsel %vm311, %v179, 0
      %v331 = vsel %vm311, %v180, 0
      %v334 = vsel %vm311, %v181, 0
      %v337 = vsel %vm311, %v182, 0
      %v340 = vsel %vm311, %v183, 0
      %v343 = vsel %vm311, %v184, 0
      %v346 = vsel %vm311, %v185, 0
      %v349 = vsel %vm311, %v186, 0
      %v352 = vsel %vm311, %v187, 0
      %v355 = vsel %vm311, %v188, 0
      %v358 = vsel %vm311, %v189, 0
      %v361 = vsel %vm311, %v190, 0
      %v364 = vsel %vm311, %v191, 0
      %v367 = vsel %vm311, %v192, 0
      %v370 = vsel %vm311, %v193, 0
      %v373 = vsel %vm311, %v194, 0
      %v376 = vsel %vm311, %v195, 0
      %v379 = vsel %vm311, %v196, 0
      %v382 = vsel %vm311, %v197, 0
      %v385 = vsel %vm311, %v198, 0
      %v388 = vsel %vm311, %v199, 0
      %v391 = vsel %vm311, %v200, 0
      %v394 = vsel %vm311, %v201, 0
      %v397 = vsel %vm311, %v202, 0
      %v400 = vsel %vm311, %v203, 0
      %v403 = vsel %vm311, %v204, 0
      %v406 = vsel %vm311, %v205, 0
      %v409 = vsel %vm311, %v206, 0
      %v412 = vsel %vm311, %v207, 0
      %v415 = vsel %vm311, %v208, 0
      %v418 = vsel %vm311, %v209, 0
      %v421 = vsel %vm311, %v210, 0
      %v424 = vsel %vm311, %v211, 0
      %v427 = vsel %vm311, %v212, 0
      %v430 = vsel %vm311, %v213, 0
      %v433 = vsel %vm311, %v214, 0
      %v436 = vsel %vm311, %v215, 0
      %v439 = vsel %vm311, %v216, 0
      %v442 = vsel %vm311, %v217, 0
      %v445 = vsel %vm311, %v218, 0
      %v448 = vsel %vm311, %v219, 0
      %v451 = vsel %vm311, %v220, 0
      %v454 = vsel %vm311, %v221, 0
      %v457 = vsel %vm311, %v222, 0
      %v460 = vsel %vm311, %v223, 0
      %v463 = vsel %vm311, %v224, 0
      %v466 = vsel %vm311, %v225, 0
      %v469 = vsel %vm311, %v226, 0
      %v472 = vsel %vm311, %v227, 0
      %v475 = vsel %vm311, %v228, 0
      %v478 = vsel %vm311, %v229, 0
      %v481 = vsel %vm311, %v230, 0
      %v484 = vsel %vm311, %v231, 0
      %v487 = vsel %vm311, %v232, 0
      %v490 = vsel %vm311, %v233, 0
      %v493 = vsel %vm311, %v234, 0
      %v496 = vsel %vm311, %v235, 0
      %v499 = vsel %vm311, %v236, 0
      %v502 = vsel %vm311, %v237, 0
      %v505 = vsel %vm311, %v238, 0
      %v508 = vsel %vm311, %v239, 0
      %v511 = vsel %vm311, %v240, 0
      %v514 = vsel %vm311, %v241, 0
      %v517 = vsel %vm311, %v242, 0
      %v520 = vsel %vm311, %v243, 0
      %v523 = vsel %vm311, %v244, 0
      %v526 = vsel %vm311, %v245, 0
      %v529 = vsel %vm311, %v246, 0
      %v532 = vsel %vm311, %v247, 0
      %v535 = vsel %vm311, %v248, 0
      %v538 = vsel %vm311, %v249, 0
      %v541 = vsel %vm311, %v250, 0
      %v544 = vsel %vm311, %v251, 0
      %v547 = vsel %vm311, %v252, 0
      %v550 = vsel %vm311, %v253, 0
      %v553 = vsel %vm311, %v254, 0
      %v556 = vsel %vm311, %v255, 0
      %v559 = vsel %vm311, %v256, 0
      %v562 = vsel %vm311, %v257, 0
      %v565 = vsel %vm311, %v258, 0
      %v568 = vsel %vm311, %v259, 0
      %v571 = vsel %vm311, %v260, 0
      %v574 = vsel %vm311, %v261, 0
      %v577 = vsel %vm311, %v262, 0
      %v580 = vsel %vm311, %v263, 0
      %v583 = vsel %vm311, %v264, 0
      %v586 = vsel %vm311, %v265, 0
      %v589 = vsel %vm311, %v266, 0
      %v592 = vsel %vm311, %v267, 0
      %v595 = vsel %vm311, %v268, 0
      %v598 = vsel %vm311, %v269, 0
      %v601 = vsel %vm311, %v270, 0
      %v604 = vsel %vm311, %v271, 0
      %v607 = vsel %vm311, %v272, 0
      %v610 = vsel %vm311, %v273, 0
      %v613 = vsel %vm311, %v274, 0
      %v616 = vsel %vm311, %v275, 0
      %v619 = vsel %vm311, %v276, 0
      %v622 = vsel %vm311, %v277, 0
      %v625 = vsel %vm311, %v278, 0
      %v628 = vsel %vm311, %v279, 0
      %v631 = vsel %vm311, %v280, 0
      %v634 = vsel %vm311, %v281, 0
      %v637 = vsel %vm311, %v282, 0
      %v640 = vsel %vm311, %v283, 0
      %v643 = vsel %vm311, %v284, 0
      %v646 = vsel %vm311, %v285, 0
      %v649 = vsel %vm311, %v286, 0
      %v652 = vsel %vm311, %v287, 0
      %v655 = vsel %vm311, %v288, 0
      %v658 = vsel %vm311, %v289, 0
      %v661 = vsel %vm311, %v290, 0
      %v664 = vsel %vm311, %v291, 0
      %v667 = vsel %vm311, %v292, 0
      %v670 = vsel %vm311, %v293, 0
      %v673 = vsel %vm311, %v294, 0
      %v676 = vsel %vm311, %v295, 0
      %v679 = vsel %vm311, %v296, 0
      %v682 = vsel %vm311, %v297, 0
      %v685 = vsel %vm311, %v298, 0
      %v688 = vsel %vm311, %v299, 0
      %v691 = vsel %vm311, %v300, 0
      %v694 = vsel %vm311, %v301, 0
      %vm696 = vcmask 1040384
      %v698 = vsel %vm696, %v303, 0
      %700 = vmatprep.subr.mxu0 0.0
      %701 = vmatpush1.msra.mxu0 %v302
      %702 = vmatprep.subr.mxu0 0.0
      %703 = vmatpush1.msra.mxu0 %v698
      %704 = vmatprep.subr.mxu0 0.0
      %705 = vmatpush1.msra.mxu0 0.0
      %706 = vmatprep.subr.mxu0 0.0
      %707 = vmatpush1.msra.mxu0 0.0
      %708 = vmatprep.subr.mxu0 0.0
      %709 = vmatpush1.msra.mxu0 0.0
      %710 = vmatprep.subr.mxu0 0.0
      %711 = vmatpush1.msra.mxu0 0.0
      %712 = vmatprep.subr.mxu0 0.0
      %713 = vmatpush1.msra.mxu0 0.0
      %714 = vmatprep.subr.mxu0 0.0
      %715 = vmatpush1.msra.mxu0 0.0
      %716 = vmatprep.subr.mxu0 0.0
      %717 = vmatpush1.msra.mxu0 0.0
      %718 = vmatprep.subr.mxu0 0.0
      %719 = vmatpush1.msra.mxu0 0.0
      %720 = vmatprep.subr.mxu0 0.0
      %721 = vmatpush1.msra.mxu0 0.0
      %722 = vmatprep.subr.mxu0 0.0
      %723 = vmatpush1.msra.mxu0 0.0
      %724 = vmatprep.subr.mxu0 0.0
      %725 = vmatpush1.msra.mxu0 0.0
      %726 = vmatprep.subr.mxu0 0.0
      %727 = vmatpush1.msra.mxu0 0.0
      %728 = vmatprep.subr.mxu0 0.0
      %729 = vmatpush1.msra.mxu0 0.0
      %730 = vmatprep.subr.mxu0 0.0
      %731 = vmatpush1.msra.mxu0 0.0
      %732 = vmatprep.subr.mxu0 0.0
      %733 = vmatpush1.msra.mxu0 0.0
      %734 = vmatprep.subr.mxu0 0.0
      %735 = vmatpush1.msra.mxu0 0.0
      %736 = vmatprep.subr.mxu0 0.0
      %737 = vmatpush1.msra.mxu0 0.0
      %738 = vmatprep.subr.mxu0 0.0
      %739 = vmatpush1.msra.mxu0 0.0
      %740 = vmatprep.subr.mxu0 0.0
      %741 = vmatpush1.msra.mxu0 0.0
      %742 = vmatprep.subr.mxu0 0.0
      %743 = vmatpush1.msra.mxu0 0.0
      %744 = vmatprep.subr.mxu0 0.0
      %745 = vmatpush1.msra.mxu0 0.0
      %746 = vmatprep.subr.mxu0 0.0
      %747 = vmatpush1.msra.mxu0 0.0
      %748 = vmatprep.subr.mxu0 0.0
      %749 = vmatpush1.msra.mxu0 0.0
      %750 = vmatprep.subr.mxu0 0.0
      %751 = vmatpush1.msra.mxu0 0.0
      %752 = vmatprep.subr.mxu0 0.0
      %753 = vmatpush1.msra.mxu0 0.0
      %754 = vmatprep.subr.mxu0 0.0
      %755 = vmatpush1.msra.mxu0 0.0
      %756 = vmatprep.subr.mxu0 0.0
      %757 = vmatpush1.msra.mxu0 0.0
      %758 = vmatprep.subr.mxu0 0.0
      %759 = vmatpush1.msra.mxu0 0.0
      %760 = vmatprep.subr.mxu0 0.0
      %761 = vmatpush1.msra.mxu0 0.0
      %762 = vmatprep.subr.mxu0 0.0
      %763 = vmatpush1.msra.mxu0 0.0
      %764 = vmatprep.mubr.f32.mxu0 0.0
      %765 = vmatmul.mubr.f32.gmra.mrb[0].mxu0 %v313
      %v766 = vpop.f32.mrb[0].mxu0
      %v767 = vadd.f32 %v309, %v766
      %v768 = vpop.f32.mrb[0].mxu0
      %769 = vmatprep.mubr.f32.mxu0 0.0
      %770 = vmatmul.mubr.f32.gmra.mrb[0].mxu0 %v316
      %v771 = vpop.f32.mrb[0].mxu0
      %v772 = vadd.f32 %v309, %v771
      %v773 = vpop.f32.mrb[0].mxu0
      %774 = vmatprep.mubr.f32.mxu0 0.0
      %775 = vmatmul.mubr.f32.gmra.mrb[0].mxu0 %v319
      %v776 = vpop.f32.mrb[0].mxu0
      %v777 = vadd.f32 %v309, %v776
      %v778 = vpop.f32.mrb[0].mxu0
      %779 = vmatprep.mubr.f32.mxu0 0.0
      %780 = vmatmul.mubr.f32.gmra.mrb[0].mxu0 %v322
      %v781 = vpop.f32.mrb[0].mxu0
      %v782 = vadd.f32 %v309, %v781
      %v783 = vpop.f32.mrb[0].mxu0
      %784 = vmatprep.mubr.f32.mxu0 0.0
      %785 = vmatmul.mubr.f32.gmra.mrb[0].mxu0 %v325
      %v786 = vpop.f32.mrb[0].mxu0
      %v787 = vadd.f32 %v309, %v786
      %v788 = vpop.f32.mrb[0].mxu0
      %789 = vmatprep.mubr.f32.mxu0 0.0
      %790 = vmatmul.mubr.f32.gmra.mrb[0].mxu0 %v328
      %v791 = vpop.f32.mrb[0].mxu0
      %v792 = vadd.f32 %v309, %v791
      %v793 = vpop.f32.mrb[0].mxu0
      %794 = vmatprep.mubr.f32.mxu0 0.0
      %795 = vmatmul.mubr.f32.gmra.mrb[0].mxu0 %v331
      %v796 = vpop.f32.mrb[0].mxu0
      %v797 = vadd.f32 %v309, %v796
      %v798 = vpop.f32.mrb[0].mxu0
      %799 = vmatprep.mubr.f32.mxu0 0.0
      %800 = vmatmul.mubr.f32.gmra.mrb[0].mxu0 %v334
      %v801 = vpop.f32.mrb[0].mxu0
      %v802 = vadd.f32 %v309, %v801
      %v803 = vpop.f32.mrb[0].mxu0
      %804 = vmatprep.mubr.f32.mxu0 0.0
      %805 = vmatmul.mubr.f32.gmra.mrb[0].mxu0 %v337
      %v806 = vpop.f32.mrb[0].mxu0
      %v807 = vadd.f32 %v309, %v806
      %v808 = vpop.f32.mrb[0].mxu0
      %809 = vmatprep.mubr.f32.mxu0 0.0
      %810 = vmatmul.mubr.f32.gmra.mrb[0].mxu0 %v340
      %v811 = vpop.f32.mrb[0].mxu0
      %v812 = vadd.f32 %v309, %v811
      %v813 = vpop.f32.mrb[0].mxu0
      %814 = vmatprep.mubr.f32.mxu0 0.0
      %815 = vmatmul.mubr.f32.gmra.mrb[0].mxu0 %v343
      %v816 = vpop.f32.mrb[0].mxu0
      %v817 = vadd.f32 %v309, %v816
      %v818 = vpop.f32.mrb[0].mxu0
      %819 = vmatprep.mubr.f32.mxu0 0.0
      %820 = vmatmul.mubr.f32.gmra.mrb[0].mxu0 %v346
      %v821 = vpop.f32.mrb[0].mxu0
      %v822 = vadd.f32 %v309, %v821
      %v823 = vpop.f32.mrb[0].mxu0
      %824 = vmatprep.mubr.f32.mxu0 0.0
      %825 = vmatmul.mubr.f32.gmra.mrb[0].mxu0 %v349
      %v826 = vpop.f32.mrb[0].mxu0
      %v827 = vadd.f32 %v309, %v826
      %v828 = vpop.f32.mrb[0].mxu0
      %829 = vmatprep.mubr.f32.mxu0 0.0
      %830 = vmatmul.mubr.f32.gmra.mrb[0].mxu0 %v352
      %v831 = vpop.f32.mrb[0].mxu0
      %v832 = vadd.f32 %v309, %v831
      %v833 = vpop.f32.mrb[0].mxu0
      %834 = vmatprep.mubr.f32.mxu0 0.0
      %835 = vmatmul.mubr.f32.gmra.mrb[0].mxu0 %v355
      %v836 = vpop.f32.mrb[0].mxu0
      %v837 = vadd.f32 %v309, %v836
      %v838 = vpop.f32.mrb[0].mxu0
      %839 = vmatprep.mubr.f32.mxu0 0.0
      %840 = vmatmul.mubr.f32.gmra.mrb[0].mxu0 %v358
      %v841 = vpop.f32.mrb[0].mxu0
      %v842 = vadd.f32 %v309, %v841
      %v843 = vpop.f32.mrb[0].mxu0
      %844 = vmatprep.mubr.f32.mxu0 0.0
      %845 = vmatmul.mubr.f32.gmra.mrb[0].mxu0 %v361
      %v846 = vpop.f32.mrb[0].mxu0
      %v847 = vadd.f32 %v309, %v846
      %v848 = vpop.f32.mrb[0].mxu0
      %849 = vmatprep.mubr.f32.mxu0 0.0
      %850 = vmatmul.mubr.f32.gmra.mrb[0].mxu0 %v364
      %v851 = vpop.f32.mrb[0].mxu0
      %v852 = vadd.f32 %v309, %v851
      %v853 = vpop.f32.mrb[0].mxu0
      %854 = vmatprep.mubr.f32.mxu0 0.0
      %855 = vmatmul.mubr.f32.gmra.mrb[0].mxu0 %v367
      %v856 = vpop.f32.mrb[0].mxu0
      %v857 = vadd.f32 %v309, %v856
      %v858 = vpop.f32.mrb[0].mxu0
      %859 = vmatprep.mubr.f32.mxu0 0.0
      %860 = vmatmul.mubr.f32.gmra.mrb[0].mxu0 %v370
      %v861 = vpop.f32.mrb[0].mxu0
      %v862 = vadd.f32 %v309, %v861
      %v863 = vpop.f32.mrb[0].mxu0
      %864 = vmatprep.mubr.f32.mxu0 0.0
      %865 = vmatmul.mubr.f32.gmra.mrb[0].mxu0 %v373
      %v866 = vpop.f32.mrb[0].mxu0
      %v867 = vadd.f32 %v309, %v866
      %v868 = vpop.f32.mrb[0].mxu0
      %869 = vmatprep.mubr.f32.mxu0 0.0
      %870 = vmatmul.mubr.f32.gmra.mrb[0].mxu0 %v376
      %v871 = vpop.f32.mrb[0].mxu0
      %v872 = vadd.f32 %v309, %v871
      %v873 = vpop.f32.mrb[0].mxu0
      %874 = vmatprep.mubr.f32.mxu0 0.0
      %875 = vmatmul.mubr.f32.gmra.mrb[0].mxu0 %v379
      %v876 = vpop.f32.mrb[0].mxu0
      %v877 = vadd.f32 %v309, %v876
      %v878 = vpop.f32.mrb[0].mxu0
      %879 = vmatprep.mubr.f32.mxu0 0.0
      %880 = vmatmul.mubr.f32.gmra.mrb[0].mxu0 %v382
      %v881 = vpop.f32.mrb[0].mxu0
      %v882 = vadd.f32 %v309, %v881
      %v883 = vpop.f32.mrb[0].mxu0
      %884 = vmatprep.mubr.f32.mxu0 0.0
      %885 = vmatmul.mubr.f32.gmra.mrb[0].mxu0 %v385
      %v886 = vpop.f32.mrb[0].mxu0
      %v887 = vadd.f32 %v309, %v886
      %v888 = vpop.f32.mrb[0].mxu0
      %889 = vmatprep.mubr.f32.mxu0 0.0
      %890 = vmatmul.mubr.f32.gmra.mrb[0].mxu0 %v388
      %v891 = vpop.f32.mrb[0].mxu0
      %v892 = vadd.f32 %v309, %v891
      %v893 = vpop.f32.mrb[0].mxu0
      %894 = vmatprep.mubr.f32.mxu0 0.0
      %895 = vmatmul.mubr.f32.gmra.mrb[0].mxu0 %v391
      %v896 = vpop.f32.mrb[0].mxu0
      %v897 = vadd.f32 %v309, %v896
      %v898 = vpop.f32.mrb[0].mxu0
      %899 = vmatprep.mubr.f32.mxu0 0.0
      %900 = vmatmul.mubr.f32.gmra.mrb[0].mxu0 %v394
      %v901 = vpop.f32.mrb[0].mxu0
      %v902 = vadd.f32 %v309, %v901
      %v903 = vpop.f32.mrb[0].mxu0
      %904 = vmatprep.mubr.f32.mxu0 0.0
      %905 = vmatmul.mubr.f32.gmra.mrb[0].mxu0 %v397
      %v906 = vpop.f32.mrb[0].mxu0
      %v907 = vadd.f32 %v309, %v906
      %v908 = vpop.f32.mrb[0].mxu0
      %909 = vmatprep.mubr.f32.mxu0 0.0
      %910 = vmatmul.mubr.f32.gmra.mrb[0].mxu0 %v400
      %v911 = vpop.f32.mrb[0].mxu0
      %v912 = vadd.f32 %v309, %v911
      %v913 = vpop.f32.mrb[0].mxu0
      %914 = vmatprep.mubr.f32.mxu0 0.0
      %915 = vmatmul.mubr.f32.gmra.mrb[0].mxu0 %v403
      %v916 = vpop.f32.mrb[0].mxu0
      %v917 = vadd.f32 %v309, %v916
      %v918 = vpop.f32.mrb[0].mxu0
      %919 = vmatprep.mubr.f32.mxu0 0.0
      %920 = vmatmul.mubr.f32.gmra.mrb[0].mxu0 %v406
      %v921 = vpop.f32.mrb[0].mxu0
      %v922 = vadd.f32 %v309, %v921
      %v923 = vpop.f32.mrb[0].mxu0
      %924 = vmatprep.mubr.f32.mxu0 0.0
      %925 = vmatmul.mubr.f32.gmra.mrb[0].mxu0 %v409
      %v926 = vpop.f32.mrb[0].mxu0
      %v927 = vadd.f32 %v309, %v926
      %v928 = vpop.f32.mrb[0].mxu0
      %929 = vmatprep.mubr.f32.mxu0 0.0
      %930 = vmatmul.mubr.f32.gmra.mrb[0].mxu0 %v412
      %v931 = vpop.f32.mrb[0].mxu0
      %v932 = vadd.f32 %v309, %v931
      %v933 = vpop.f32.mrb[0].mxu0
      %934 = vmatprep.mubr.f32.mxu0 0.0
      %935 = vmatmul.mubr.f32.gmra.mrb[0].mxu0 %v415
      %v936 = vpop.f32.mrb[0].mxu0
      %v937 = vadd.f32 %v309, %v936
      %v938 = vpop.f32.mrb[0].mxu0
      %939 = vmatprep.mubr.f32.mxu0 0.0
      %940 = vmatmul.mubr.f32.gmra.mrb[0].mxu0 %v418
      %v941 = vpop.f32.mrb[0].mxu0
      %v942 = vadd.f32 %v309, %v941
      %v943 = vpop.f32.mrb[0].mxu0
      %944 = vmatprep.mubr.f32.mxu0 0.0
      %945 = vmatmul.mubr.f32.gmra.mrb[0].mxu0 %v421
      %v946 = vpop.f32.mrb[0].mxu0
      %v947 = vadd.f32 %v309, %v946
      %v948 = vpop.f32.mrb[0].mxu0
      %949 = vmatprep.mubr.f32.mxu0 0.0
      %950 = vmatmul.mubr.f32.gmra.mrb[0].mxu0 %v424
      %v951 = vpop.f32.mrb[0].mxu0
      %v952 = vadd.f32 %v309, %v951
      %v953 = vpop.f32.mrb[0].mxu0
      %954 = vmatprep.mubr.f32.mxu0 0.0
      %955 = vmatmul.mubr.f32.gmra.mrb[0].mxu0 %v427
      %v956 = vpop.f32.mrb[0].mxu0
      %v957 = vadd.f32 %v309, %v956
      %v958 = vpop.f32.mrb[0].mxu0
      %959 = vmatprep.mubr.f32.mxu0 0.0
      %960 = vmatmul.mubr.f32.gmra.mrb[0].mxu0 %v430
      %v961 = vpop.f32.mrb[0].mxu0
      %v962 = vadd.f32 %v309, %v961
      %v963 = vpop.f32.mrb[0].mxu0
      %964 = vmatprep.mubr.f32.mxu0 0.0
      %965 = vmatmul.mubr.f32.gmra.mrb[0].mxu0 %v433
      %v966 = vpop.f32.mrb[0].mxu0
      %v967 = vadd.f32 %v309, %v966
      %v968 = vpop.f32.mrb[0].mxu0
      %969 = vmatprep.mubr.f32.mxu0 0.0
      %970 = vmatmul.mubr.f32.gmra.mrb[0].mxu0 %v436
      %v971 = vpop.f32.mrb[0].mxu0
      %v972 = vadd.f32 %v309, %v971
      %v973 = vpop.f32.mrb[0].mxu0
      %974 = vmatprep.mubr.f32.mxu0 0.0
      %975 = vmatmul.mubr.f32.gmra.mrb[0].mxu0 %v439
      %v976 = vpop.f32.mrb[0].mxu0
      %v977 = vadd.f32 %v309, %v976
      %v978 = vpop.f32.mrb[0].mxu0
      %979 = vmatprep.mubr.f32.mxu0 0.0
      %980 = vmatmul.mubr.f32.gmra.mrb[0].mxu0 %v442
      %v981 = vpop.f32.mrb[0].mxu0
      %v982 = vadd.f32 %v309, %v981
      %v983 = vpop.f32.mrb[0].mxu0
      %984 = vmatprep.mubr.f32.mxu0 0.0
      %985 = vmatmul.mubr.f32.gmra.mrb[0].mxu0 %v445
      %v986 = vpop.f32.mrb[0].mxu0
      %v987 = vadd.f32 %v309, %v986
      %v988 = vpop.f32.mrb[0].mxu0
      %989 = vmatprep.mubr.f32.mxu0 0.0
      %990 = vmatmul.mubr.f32.gmra.mrb[0].mxu0 %v448
      %v991 = vpop.f32.mrb[0].mxu0
      %v992 = vadd.f32 %v309, %v991
      %v993 = vpop.f32.mrb[0].mxu0
      %994 = vmatprep.mubr.f32.mxu0 0.0
      %995 = vmatmul.mubr.f32.gmra.mrb[0].mxu0 %v451
      %v996 = vpop.f32.mrb[0].mxu0
      %v997 = vadd.f32 %v309, %v996
      %v998 = vpop.f32.mrb[0].mxu0
      %999 = vmatprep.mubr.f32.mxu0 0.0
      %1000 = vmatmul.mubr.f32.gmra.mrb[0].mxu0 %v454
      %v1001 = vpop.f32.mrb[0].mxu0
      %v1002 = vadd.f32 %v309, %v1001
      %v1003 = vpop.f32.mrb[0].mxu0
      %1004 = vmatprep.mubr.f32.mxu0 0.0
      %1005 = vmatmul.mubr.f32.gmra.mrb[0].mxu0 %v457
      %v1006 = vpop.f32.mrb[0].mxu0
      %v1007 = vadd.f32 %v309, %v1006
      %v1008 = vpop.f32.mrb[0].mxu0
      %1009 = vmatprep.mubr.f32.mxu0 0.0
      %1010 = vmatmul.mubr.f32.gmra.mrb[0].mxu0 %v460
      %v1011 = vpop.f32.mrb[0].mxu0
      %v1012 = vadd.f32 %v309, %v1011
      %v1013 = vpop.f32.mrb[0].mxu0
      %1014 = vmatprep.mubr.f32.mxu0 0.0
      %1015 = vmatmul.mubr.f32.gmra.mrb[0].mxu0 %v463
      %v1016 = vpop.f32.mrb[0].mxu0
      %v1017 = vadd.f32 %v309, %v1016
      %v1018 = vpop.f32.mrb[0].mxu0
      %1019 = vmatprep.mubr.f32.mxu0 0.0
      %1020 = vmatmul.mubr.f32.gmra.mrb[0].mxu0 %v466
      %v1021 = vpop.f32.mrb[0].mxu0
      %v1022 = vadd.f32 %v309, %v1021
      %v1023 = vpop.f32.mrb[0].mxu0
      %1024 = vmatprep.mubr.f32.mxu0 0.0
      %1025 = vmatmul.mubr.f32.gmra.mrb[0].mxu0 %v469
      %v1026 = vpop.f32.mrb[0].mxu0
      %v1027 = vadd.f32 %v309, %v1026
      %v1028 = vpop.f32.mrb[0].mxu0
      %1029 = vmatprep.mubr.f32.mxu0 0.0
      %1030 = vmatmul.mubr.f32.gmra.mrb[0].mxu0 %v472
      %v1031 = vpop.f32.mrb[0].mxu0
      %v1032 = vadd.f32 %v309, %v1031
      %v1033 = vpop.f32.mrb[0].mxu0
      %1034 = vmatprep.mubr.f32.mxu0 0.0
      %1035 = vmatmul.mubr.f32.gmra.mrb[0].mxu0 %v475
      %v1036 = vpop.f32.mrb[0].mxu0
      %v1037 = vadd.f32 %v309, %v1036
      %v1038 = vpop.f32.mrb[0].mxu0
      %1039 = vmatprep.mubr.f32.mxu0 0.0
      %1040 = vmatmul.mubr.f32.gmra.mrb[0].mxu0 %v478
      %v1041 = vpop.f32.mrb[0].mxu0
      %v1042 = vadd.f32 %v309, %v1041
      %v1043 = vpop.f32.mrb[0].mxu0
      %1044 = vmatprep.mubr.f32.mxu0 0.0
      %1045 = vmatmul.mubr.f32.gmra.mrb[0].mxu0 %v481
      %v1046 = vpop.f32.mrb[0].mxu0
      %v1047 = vadd.f32 %v309, %v1046
      %v1048 = vpop.f32.mrb[0].mxu0
      %1049 = vmatprep.mubr.f32.mxu0 0.0
      %1050 = vmatmul.mubr.f32.gmra.mrb[0].mxu0 %v484
      %v1051 = vpop.f32.mrb[0].mxu0
      %v1052 = vadd.f32 %v309, %v1051
      %v1053 = vpop.f32.mrb[0].mxu0
      %1054 = vmatprep.mubr.f32.mxu0 0.0
      %1055 = vmatmul.mubr.f32.gmra.mrb[0].mxu0 %v487
      %v1056 = vpop.f32.mrb[0].mxu0
      %v1057 = vadd.f32 %v309, %v1056
      %v1058 = vpop.f32.mrb[0].mxu0
      %1059 = vmatprep.mubr.f32.mxu0 0.0
      %1060 = vmatmul.mubr.f32.gmra.mrb[0].mxu0 %v490
      %v1061 = vpop.f32.mrb[0].mxu0
      %v1062 = vadd.f32 %v309, %v1061
      %v1063 = vpop.f32.mrb[0].mxu0
      %1064 = vmatprep.mubr.f32.mxu0 0.0
      %1065 = vmatmul.mubr.f32.gmra.mrb[0].mxu0 %v493
      %v1066 = vpop.f32.mrb[0].mxu0
      %v1067 = vadd.f32 %v309, %v1066
      %v1068 = vpop.f32.mrb[0].mxu0
      %1069 = vmatprep.mubr.f32.mxu0 0.0
      %1070 = vmatmul.mubr.f32.gmra.mrb[0].mxu0 %v496
      %v1071 = vpop.f32.mrb[0].mxu0
      %v1072 = vadd.f32 %v309, %v1071
      %v1073 = vpop.f32.mrb[0].mxu0
      %1074 = vmatprep.mubr.f32.mxu0 0.0
      %1075 = vmatmul.mubr.f32.gmra.mrb[0].mxu0 %v499
      %v1076 = vpop.f32.mrb[0].mxu0
      %v1077 = vadd.f32 %v309, %v1076
      %v1078 = vpop.f32.mrb[0].mxu0
      %1079 = vmatprep.mubr.f32.mxu0 0.0
      %1080 = vmatmul.mubr.f32.gmra.mrb[0].mxu0 %v502
      %v1081 = vpop.f32.mrb[0].mxu0
      %v1082 = vadd.f32 %v309, %v1081
      %v1083 = vpop.f32.mrb[0].mxu0
      %1084 = vmatprep.mubr.f32.mxu0 0.0
      %1085 = vmatmul.mubr.f32.gmra.mrb[0].mxu0 %v505
      %v1086 = vpop.f32.mrb[0].mxu0
      %v1087 = vadd.f32 %v309, %v1086
      %v1088 = vpop.f32.mrb[0].mxu0
      %1089 = vmatprep.mubr.f32.mxu0 0.0
      %1090 = vmatmul.mubr.f32.gmra.mrb[0].mxu0 %v508
      %v1091 = vpop.f32.mrb[0].mxu0
      %v1092 = vadd.f32 %v309, %v1091
      %v1093 = vpop.f32.mrb[0].mxu0
      %1094 = vmatprep.mubr.f32.mxu0 0.0
      %1095 = vmatmul.mubr.f32.gmra.mrb[0].mxu0 %v511
      %v1096 = vpop.f32.mrb[0].mxu0
      %v1097 = vadd.f32 %v309, %v1096
      %v1098 = vpop.f32.mrb[0].mxu0
      %1099 = vmatprep.mubr.f32.mxu0 0.0
      %1100 = vmatmul.mubr.f32.gmra.mrb[0].mxu0 %v514
      %v1101 = vpop.f32.mrb[0].mxu0
      %v1102 = vadd.f32 %v309, %v1101
      %v1103 = vpop.f32.mrb[0].mxu0
      %1104 = vmatprep.mubr.f32.mxu0 0.0
      %1105 = vmatmul.mubr.f32.gmra.mrb[0].mxu0 %v517
      %v1106 = vpop.f32.mrb[0].mxu0
      %v1107 = vadd.f32 %v309, %v1106
      %v1108 = vpop.f32.mrb[0].mxu0
      %1109 = vmatprep.mubr.f32.mxu0 0.0
      %1110 = vmatmul.mubr.f32.gmra.mrb[0].mxu0 %v520
      %v1111 = vpop.f32.mrb[0].mxu0
      %v1112 = vadd.f32 %v309, %v1111
      %v1113 = vpop.f32.mrb[0].mxu0
      %1114 = vmatprep.mubr.f32.mxu0 0.0
      %1115 = vmatmul.mubr.f32.gmra.mrb[0].mxu0 %v523
      %v1116 = vpop.f32.mrb[0].mxu0
      %v1117 = vadd.f32 %v309, %v1116
      %v1118 = vpop.f32.mrb[0].mxu0
      %1119 = vmatprep.mubr.f32.mxu0 0.0
      %1120 = vmatmul.mubr.f32.gmra.mrb[0].mxu0 %v526
      %v1121 = vpop.f32.mrb[0].mxu0
      %v1122 = vadd.f32 %v309, %v1121
      %v1123 = vpop.f32.mrb[0].mxu0
      %1124 = vmatprep.mubr.f32.mxu0 0.0
      %1125 = vmatmul.mubr.f32.gmra.mrb[0].mxu0 %v529
      %v1126 = vpop.f32.mrb[0].mxu0
      %v1127 = vadd.f32 %v309, %v1126
      %v1128 = vpop.f32.mrb[0].mxu0
      %1129 = vmatprep.mubr.f32.mxu0 0.0
      %1130 = vmatmul.mubr.f32.gmra.mrb[0].mxu0 %v532
      %v1131 = vpop.f32.mrb[0].mxu0
      %v1132 = vadd.f32 %v309, %v1131
      %v1133 = vpop.f32.mrb[0].mxu0
      %1134 = vmatprep.mubr.f32.mxu0 0.0
      %1135 = vmatmul.mubr.f32.gmra.mrb[0].mxu0 %v535
      %v1136 = vpop.f32.mrb[0].mxu0
      %v1137 = vadd.f32 %v309, %v1136
      %v1138 = vpop.f32.mrb[0].mxu0
      %1139 = vmatprep.mubr.f32.mxu0 0.0
      %1140 = vmatmul.mubr.f32.gmra.mrb[0].mxu0 %v538
      %v1141 = vpop.f32.mrb[0].mxu0
      %v1142 = vadd.f32 %v309, %v1141
      %v1143 = vpop.f32.mrb[0].mxu0
      %1144 = vmatprep.mubr.f32.mxu0 0.0
      %1145 = vmatmul.mubr.f32.gmra.mrb[0].mxu0 %v541
      %v1146 = vpop.f32.mrb[0].mxu0
      %v1147 = vadd.f32 %v309, %v1146
      %v1148 = vpop.f32.mrb[0].mxu0
      %1149 = vmatprep.mubr.f32.mxu0 0.0
      %1150 = vmatmul.mubr.f32.gmra.mrb[0].mxu0 %v544
      %v1151 = vpop.f32.mrb[0].mxu0
      %v1152 = vadd.f32 %v309, %v1151
      %v1153 = vpop.f32.mrb[0].mxu0
      %1154 = vmatprep.mubr.f32.mxu0 0.0
      %1155 = vmatmul.mubr.f32.gmra.mrb[0].mxu0 %v547
      %v1156 = vpop.f32.mrb[0].mxu0
      %v1157 = vadd.f32 %v309, %v1156
      %v1158 = vpop.f32.mrb[0].mxu0
      %1159 = vmatprep.mubr.f32.mxu0 0.0
      %1160 = vmatmul.mubr.f32.gmra.mrb[0].mxu0 %v550
      %v1161 = vpop.f32.mrb[0].mxu0
      %v1162 = vadd.f32 %v309, %v1161
      %v1163 = vpop.f32.mrb[0].mxu0
      %1164 = vmatprep.mubr.f32.mxu0 0.0
      %1165 = vmatmul.mubr.f32.gmra.mrb[0].mxu0 %v553
      %v1166 = vpop.f32.mrb[0].mxu0
      %v1167 = vadd.f32 %v309, %v1166
      %v1168 = vpop.f32.mrb[0].mxu0
      %1169 = vmatprep.mubr.f32.mxu0 0.0
      %1170 = vmatmul.mubr.f32.gmra.mrb[0].mxu0 %v556
      %v1171 = vpop.f32.mrb[0].mxu0
      %v1172 = vadd.f32 %v309, %v1171
      %v1173 = vpop.f32.mrb[0].mxu0
      %1174 = vmatprep.mubr.f32.mxu0 0.0
      %1175 = vmatmul.mubr.f32.gmra.mrb[0].mxu0 %v559
      %v1176 = vpop.f32.mrb[0].mxu0
      %v1177 = vadd.f32 %v309, %v1176
      %v1178 = vpop.f32.mrb[0].mxu0
      %1179 = vmatprep.mubr.f32.mxu0 0.0
      %1180 = vmatmul.mubr.f32.gmra.mrb[0].mxu0 %v562
      %v1181 = vpop.f32.mrb[0].mxu0
      %v1182 = vadd.f32 %v309, %v1181
      %v1183 = vpop.f32.mrb[0].mxu0
      %1184 = vmatprep.mubr.f32.mxu0 0.0
      %1185 = vmatmul.mubr.f32.gmra.mrb[0].mxu0 %v565
      %v1186 = vpop.f32.mrb[0].mxu0
      %v1187 = vadd.f32 %v309, %v1186
      %v1188 = vpop.f32.mrb[0].mxu0
      %1189 = vmatprep.mubr.f32.mxu0 0.0
      %1190 = vmatmul.mubr.f32.gmra.mrb[0].mxu0 %v568
      %v1191 = vpop.f32.mrb[0].mxu0
      %v1192 = vadd.f32 %v309, %v1191
      %v1193 = vpop.f32.mrb[0].mxu0
      %1194 = vmatprep.mubr.f32.mxu0 0.0
      %1195 = vmatmul.mubr.f32.gmra.mrb[0].mxu0 %v571
      %v1196 = vpop.f32.mrb[0].mxu0
      %v1197 = vadd.f32 %v309, %v1196
      %v1198 = vpop.f32.mrb[0].mxu0
      %1199 = vmatprep.mubr.f32.mxu0 0.0
      %1200 = vmatmul.mubr.f32.gmra.mrb[0].mxu0 %v574
      %v1201 = vpop.f32.mrb[0].mxu0
      %v1202 = vadd.f32 %v309, %v1201
      %v1203 = vpop.f32.mrb[0].mxu0
      %1204 = vmatprep.mubr.f32.mxu0 0.0
      %1205 = vmatmul.mubr.f32.gmra.mrb[0].mxu0 %v577
      %v1206 = vpop.f32.mrb[0].mxu0
      %v1207 = vadd.f32 %v309, %v1206
      %v1208 = vpop.f32.mrb[0].mxu0
      %1209 = vmatprep.mubr.f32.mxu0 0.0
      %1210 = vmatmul.mubr.f32.gmra.mrb[0].mxu0 %v580
      %v1211 = vpop.f32.mrb[0].mxu0
      %v1212 = vadd.f32 %v309, %v1211
      %v1213 = vpop.f32.mrb[0].mxu0
      %1214 = vmatprep.mubr.f32.mxu0 0.0
      %1215 = vmatmul.mubr.f32.gmra.mrb[0].mxu0 %v583
      %v1216 = vpop.f32.mrb[0].mxu0
      %v1217 = vadd.f32 %v309, %v1216
      %v1218 = vpop.f32.mrb[0].mxu0
      %1219 = vmatprep.mubr.f32.mxu0 0.0
      %1220 = vmatmul.mubr.f32.gmra.mrb[0].mxu0 %v586
      %v1221 = vpop.f32.mrb[0].mxu0
      %v1222 = vadd.f32 %v309, %v1221
      %v1223 = vpop.f32.mrb[0].mxu0
      %1224 = vmatprep.mubr.f32.mxu0 0.0
      %1225 = vmatmul.mubr.f32.gmra.mrb[0].mxu0 %v589
      %v1226 = vpop.f32.mrb[0].mxu0
      %v1227 = vadd.f32 %v309, %v1226
      %v1228 = vpop.f32.mrb[0].mxu0
      %1229 = vmatprep.mubr.f32.mxu0 0.0
      %1230 = vmatmul.mubr.f32.gmra.mrb[0].mxu0 %v592
      %v1231 = vpop.f32.mrb[0].mxu0
      %v1232 = vadd.f32 %v309, %v1231
      %v1233 = vpop.f32.mrb[0].mxu0
      %1234 = vmatprep.mubr.f32.mxu0 0.0
      %1235 = vmatmul.mubr.f32.gmra.mrb[0].mxu0 %v595
      %v1236 = vpop.f32.mrb[0].mxu0
      %v1237 = vadd.f32 %v309, %v1236
      %v1238 = vpop.f32.mrb[0].mxu0
      %1239 = vmatprep.mubr.f32.mxu0 0.0
      %1240 = vmatmul.mubr.f32.gmra.mrb[0].mxu0 %v598
      %v1241 = vpop.f32.mrb[0].mxu0
      %v1242 = vadd.f32 %v309, %v1241
      %v1243 = vpop.f32.mrb[0].mxu0
      %1244 = vmatprep.mubr.f32.mxu0 0.0
      %1245 = vmatmul.mubr.f32.gmra.mrb[0].mxu0 %v601
      %v1246 = vpop.f32.mrb[0].mxu0
      %v1247 = vadd.f32 %v309, %v1246
      %v1248 = vpop.f32.mrb[0].mxu0
      %1249 = vmatprep.mubr.f32.mxu0 0.0
      %1250 = vmatmul.mubr.f32.gmra.mrb[0].mxu0 %v604
      %v1251 = vpop.f32.mrb[0].mxu0
      %v1252 = vadd.f32 %v309, %v1251
      %v1253 = vpop.f32.mrb[0].mxu0
      %1254 = vmatprep.mubr.f32.mxu0 0.0
      %1255 = vmatmul.mubr.f32.gmra.mrb[0].mxu0 %v607
      %v1256 = vpop.f32.mrb[0].mxu0
      %v1257 = vadd.f32 %v309, %v1256
      %v1258 = vpop.f32.mrb[0].mxu0
      %1259 = vmatprep.mubr.f32.mxu0 0.0
      %1260 = vmatmul.mubr.f32.gmra.mrb[0].mxu0 %v610
      %v1261 = vpop.f32.mrb[0].mxu0
      %v1262 = vadd.f32 %v309, %v1261
      %v1263 = vpop.f32.mrb[0].mxu0
      %1264 = vmatprep.mubr.f32.mxu0 0.0
      %1265 = vmatmul.mubr.f32.gmra.mrb[0].mxu0 %v613
      %v1266 = vpop.f32.mrb[0].mxu0
      %v1267 = vadd.f32 %v309, %v1266
      %v1268 = vpop.f32.mrb[0].mxu0
      %1269 = vmatprep.mubr.f32.mxu0 0.0
      %1270 = vmatmul.mubr.f32.gmra.mrb[0].mxu0 %v616
      %v1271 = vpop.f32.mrb[0].mxu0
      %v1272 = vadd.f32 %v309, %v1271
      %v1273 = vpop.f32.mrb[0].mxu0
      %1274 = vmatprep.mubr.f32.mxu0 0.0
      %1275 = vmatmul.mubr.f32.gmra.mrb[0].mxu0 %v619
      %v1276 = vpop.f32.mrb[0].mxu0
      %v1277 = vadd.f32 %v309, %v1276
      %v1278 = vpop.f32.mrb[0].mxu0
      %1279 = vmatprep.mubr.f32.mxu0 0.0
      %1280 = vmatmul.mubr.f32.gmra.mrb[0].mxu0 %v622
      %v1281 = vpop.f32.mrb[0].mxu0
      %v1282 = vadd.f32 %v309, %v1281
      %v1283 = vpop.f32.mrb[0].mxu0
      %1284 = vmatprep.mubr.f32.mxu0 0.0
      %1285 = vmatmul.mubr.f32.gmra.mrb[0].mxu0 %v625
      %v1286 = vpop.f32.mrb[0].mxu0
      %v1287 = vadd.f32 %v309, %v1286
      %v1288 = vpop.f32.mrb[0].mxu0
      %1289 = vmatprep.mubr.f32.mxu0 0.0
      %1290 = vmatmul.mubr.f32.gmra.mrb[0].mxu0 %v628
      %v1291 = vpop.f32.mrb[0].mxu0
      %v1292 = vadd.f32 %v309, %v1291
      %v1293 = vpop.f32.mrb[0].mxu0
      %1294 = vmatprep.mubr.f32.mxu0 0.0
      %1295 = vmatmul.mubr.f32.gmra.mrb[0].mxu0 %v631
      %v1296 = vpop.f32.mrb[0].mxu0
      %v1297 = vadd.f32 %v309, %v1296
      %v1298 = vpop.f32.mrb[0].mxu0
      %1299 = vmatprep.mubr.f32.mxu0 0.0
      %1300 = vmatmul.mubr.f32.gmra.mrb[0].mxu0 %v634
      %v1301 = vpop.f32.mrb[0].mxu0
      %v1302 = vadd.f32 %v309, %v1301
      %v1303 = vpop.f32.mrb[0].mxu0
      %1304 = vmatprep.mubr.f32.mxu0 0.0
      %1305 = vmatmul.mubr.f32.gmra.mrb[0].mxu0 %v637
      %v1306 = vpop.f32.mrb[0].mxu0
      %v1307 = vadd.f32 %v309, %v1306
      %v1308 = vpop.f32.mrb[0].mxu0
      %1309 = vmatprep.mubr.f32.mxu0 0.0
      %1310 = vmatmul.mubr.f32.gmra.mrb[0].mxu0 %v640
      %v1311 = vpop.f32.mrb[0].mxu0
      %v1312 = vadd.f32 %v309, %v1311
      %v1313 = vpop.f32.mrb[0].mxu0
      %1314 = vmatprep.mubr.f32.mxu0 0.0
      %1315 = vmatmul.mubr.f32.gmra.mrb[0].mxu0 %v643
      %v1316 = vpop.f32.mrb[0].mxu0
      %v1317 = vadd.f32 %v309, %v1316
      %v1318 = vpop.f32.mrb[0].mxu0
      %1319 = vmatprep.mubr.f32.mxu0 0.0
      %1320 = vmatmul.mubr.f32.gmra.mrb[0].mxu0 %v646
      %v1321 = vpop.f32.mrb[0].mxu0
      %v1322 = vadd.f32 %v309, %v1321
      %v1323 = vpop.f32.mrb[0].mxu0
      %1324 = vmatprep.mubr.f32.mxu0 0.0
      %1325 = vmatmul.mubr.f32.gmra.mrb[0].mxu0 %v649
      %v1326 = vpop.f32.mrb[0].mxu0
      %v1327 = vadd.f32 %v309, %v1326
      %v1328 = vpop.f32.mrb[0].mxu0
      %1329 = vmatprep.mubr.f32.mxu0 0.0
      %1330 = vmatmul.mubr.f32.gmra.mrb[0].mxu0 %v652
      %v1331 = vpop.f32.mrb[0].mxu0
      %v1332 = vadd.f32 %v309, %v1331
      %v1333 = vpop.f32.mrb[0].mxu0
      %1334 = vmatprep.mubr.f32.mxu0 0.0
      %1335 = vmatmul.mubr.f32.gmra.mrb[0].mxu0 %v655
      %v1336 = vpop.f32.mrb[0].mxu0
      %v1337 = vadd.f32 %v309, %v1336
      %v1338 = vpop.f32.mrb[0].mxu0
      %1339 = vmatprep.mubr.f32.mxu0 0.0
      %1340 = vmatmul.mubr.f32.gmra.mrb[0].mxu0 %v658
      %v1341 = vpop.f32.mrb[0].mxu0
      %v1342 = vadd.f32 %v309, %v1341
      %v1343 = vpop.f32.mrb[0].mxu0
      %1344 = vmatprep.mubr.f32.mxu0 0.0
      %1345 = vmatmul.mubr.f32.gmra.mrb[0].mxu0 %v661
      %v1346 = vpop.f32.mrb[0].mxu0
      %v1347 = vadd.f32 %v309, %v1346
      %v1348 = vpop.f32.mrb[0].mxu0
      %1349 = vmatprep.mubr.f32.mxu0 0.0
      %1350 = vmatmul.mubr.f32.gmra.mrb[0].mxu0 %v664
      %v1351 = vpop.f32.mrb[0].mxu0
      %v1352 = vadd.f32 %v309, %v1351
      %v1353 = vpop.f32.mrb[0].mxu0
      %1354 = vmatprep.mubr.f32.mxu0 0.0
      %1355 = vmatmul.mubr.f32.gmra.mrb[0].mxu0 %v667
      %v1356 = vpop.f32.mrb[0].mxu0
      %v1357 = vadd.f32 %v309, %v1356
      %v1358 = vpop.f32.mrb[0].mxu0
      %1359 = vmatprep.mubr.f32.mxu0 0.0
      %1360 = vmatmul.mubr.f32.gmra.mrb[0].mxu0 %v670
      %v1361 = vpop.f32.mrb[0].mxu0
      %v1362 = vadd.f32 %v309, %v1361
      %v1363 = vpop.f32.mrb[0].mxu0
      %1364 = vmatprep.mubr.f32.mxu0 0.0
      %1365 = vmatmul.mubr.f32.gmra.mrb[0].mxu0 %v673
      %v1366 = vpop.f32.mrb[0].mxu0
      %v1367 = vadd.f32 %v309, %v1366
      %v1368 = vpop.f32.mrb[0].mxu0
      %1369 = vmatprep.mubr.f32.mxu0 0.0
      %1370 = vmatmul.mubr.f32.gmra.mrb[0].mxu0 %v676
      %v1371 = vpop.f32.mrb[0].mxu0
      %v1372 = vadd.f32 %v309, %v1371
      %v1373 = vpop.f32.mrb[0].mxu0
      %1374 = vmatprep.mubr.f32.mxu0 0.0
      %1375 = vmatmul.mubr.f32.gmra.mrb[0].mxu0 %v679
      %v1376 = vpop.f32.mrb[0].mxu0
      %v1377 = vadd.f32 %v309, %v1376
      %v1378 = vpop.f32.mrb[0].mxu0
      %1379 = vmatprep.mubr.f32.mxu0 0.0
      %1380 = vmatmul.mubr.f32.gmra.mrb[0].mxu0 %v682
      %v1381 = vpop.f32.mrb[0].mxu0
      %v1382 = vadd.f32 %v309, %v1381
      %v1383 = vpop.f32.mrb[0].mxu0
      %1384 = vmatprep.mubr.f32.mxu0 0.0
      %1385 = vmatmul.mubr.f32.gmra.mrb[0].mxu0 %v685
      %v1386 = vpop.f32.mrb[0].mxu0
      %v1387 = vadd.f32 %v309, %v1386
      %v1388 = vpop.f32.mrb[0].mxu0
      %1389 = vmatprep.mubr.f32.mxu0 0.0
      %1390 = vmatmul.mubr.f32.gmra.mrb[0].mxu0 %v688
      %v1391 = vpop.f32.mrb[0].mxu0
      %v1392 = vadd.f32 %v309, %v1391
      %v1393 = vpop.f32.mrb[0].mxu0
      %1394 = vmatprep.mubr.f32.mxu0 0.0
      %1395 = vmatmul.mubr.f32.gmra.mrb[0].mxu0 %v691
      %v1396 = vpop.f32.mrb[0].mxu0
      %v1397 = vadd.f32 %v309, %v1396
      %v1398 = vpop.f32.mrb[0].mxu0
      %1399 = vmatprep.mubr.f32.mxu0 0.0
      %1400 = vmatmul.mubr.f32.gmra.mrb[0].mxu0 %v694
      %v1401 = vpop.f32.mrb[0].mxu0
      %v1402 = vadd.f32 %v309, %v1401
      %v1403 = vpop.f32.mrb[0].mxu0
      %1404 = vdwg.mxu0
      %v1405 = vmul.f32 %v767, 0.2
      %v1406 = vmul.f32 %v772, 0.2
      %v1407 = vmul.f32 %v777, 0.2
      %v1408 = vmul.f32 %v782, 0.2
      %v1409 = vmul.f32 %v787, 0.2
      %v1410 = vmul.f32 %v792, 0.2
      %v1411 = vmul.f32 %v797, 0.2
      %v1412 = vmul.f32 %v802, 0.2
      %v1413 = vmul.f32 %v807, 0.2
      %v1414 = vmul.f32 %v812, 0.2
      %v1415 = vmul.f32 %v817, 0.2
      %v1416 = vmul.f32 %v822, 0.2
      %v1417 = vmul.f32 %v827, 0.2
      %v1418 = vmul.f32 %v832, 0.2
      %v1419 = vmul.f32 %v837, 0.2
      %v1420 = vmul.f32 %v842, 0.2
      %v1421 = vmul.f32 %v847, 0.2
      %v1422 = vmul.f32 %v852, 0.2
      %v1423 = vmul.f32 %v857, 0.2
      %v1424 = vmul.f32 %v862, 0.2
      %v1425 = vmul.f32 %v867, 0.2
      %v1426 = vmul.f32 %v872, 0.2
      %v1427 = vmul.f32 %v877, 0.2
      %v1428 = vmul.f32 %v882, 0.2
      %v1429 = vmul.f32 %v887, 0.2
      %v1430 = vmul.f32 %v892, 0.2
      %v1431 = vmul.f32 %v897, 0.2
      %v1432 = vmul.f32 %v902, 0.2
      %v1433 = vmul.f32 %v907, 0.2
      %v1434 = vmul.f32 %v912, 0.2
      %v1435 = vmul.f32 %v917, 0.2
      %v1436 = vmul.f32 %v922, 0.2
      %v1437 = vmul.f32 %v927, 0.2
      %v1438 = vmul.f32 %v932, 0.2
      %v1439 = vmul.f32 %v937, 0.2
      %v1440 = vmul.f32 %v942, 0.2
      %v1441 = vmul.f32 %v947, 0.2
      %v1442 = vmul.f32 %v952, 0.2
      %v1443 = vmul.f32 %v957, 0.2
      %v1444 = vmul.f32 %v962, 0.2
      %v1445 = vmul.f32 %v967, 0.2
      %v1446 = vmul.f32 %v972, 0.2
      %v1447 = vmul.f32 %v977, 0.2
      %v1448 = vmul.f32 %v982, 0.2
      %v1449 = vmul.f32 %v987, 0.2
      %v1450 = vmul.f32 %v992, 0.2
      %v1451 = vmul.f32 %v997, 0.2
      %v1452 = vmul.f32 %v1002, 0.2
      %v1453 = vmul.f32 %v1007, 0.2
      %v1454 = vmul.f32 %v1012, 0.2
      %v1455 = vmul.f32 %v1017, 0.2
      %v1456 = vmul.f32 %v1022, 0.2
      %v1457 = vmul.f32 %v1027, 0.2
      %v1458 = vmul.f32 %v1032, 0.2
      %v1459 = vmul.f32 %v1037, 0.2
      %v1460 = vmul.f32 %v1042, 0.2
      %v1461 = vmul.f32 %v1047, 0.2
      %v1462 = vmul.f32 %v1052, 0.2
      %v1463 = vmul.f32 %v1057, 0.2
      %v1464 = vmul.f32 %v1062, 0.2
      %v1465 = vmul.f32 %v1067, 0.2
      %v1466 = vmul.f32 %v1072, 0.2
      %v1467 = vmul.f32 %v1077, 0.2
      %v1468 = vmul.f32 %v1082, 0.2
      %v1469 = vmul.f32 %v1087, 0.2
      %v1470 = vmul.f32 %v1092, 0.2
      %v1471 = vmul.f32 %v1097, 0.2
      %v1472 = vmul.f32 %v1102, 0.2
      %v1473 = vmul.f32 %v1107, 0.2
      %v1474 = vmul.f32 %v1112, 0.2
      %v1475 = vmul.f32 %v1117, 0.2
      %v1476 = vmul.f32 %v1122, 0.2
      %v1477 = vmul.f32 %v1127, 0.2
      %v1478 = vmul.f32 %v1132, 0.2
      %v1479 = vmul.f32 %v1137, 0.2
      %v1480 = vmul.f32 %v1142, 0.2
      %v1481 = vmul.f32 %v1147, 0.2
      %v1482 = vmul.f32 %v1152, 0.2
      %v1483 = vmul.f32 %v1157, 0.2
      %v1484 = vmul.f32 %v1162, 0.2
      %v1485 = vmul.f32 %v1167, 0.2
      %v1486 = vmul.f32 %v1172, 0.2
      %v1487 = vmul.f32 %v1177, 0.2
      %v1488 = vmul.f32 %v1182, 0.2
      %v1489 = vmul.f32 %v1187, 0.2
      %v1490 = vmul.f32 %v1192, 0.2
      %v1491 = vmul.f32 %v1197, 0.2
      %v1492 = vmul.f32 %v1202, 0.2
      %v1493 = vmul.f32 %v1207, 0.2
      %v1494 = vmul.f32 %v1212, 0.2
      %v1495 = vmul.f32 %v1217, 0.2
      %v1496 = vmul.f32 %v1222, 0.2
      %v1497 = vmul.f32 %v1227, 0.2
      %v1498 = vmul.f32 %v1232, 0.2
      %v1499 = vmul.f32 %v1237, 0.2
      %v1500 = vmul.f32 %v1242, 0.2
      %v1501 = vmul.f32 %v1247, 0.2
      %v1502 = vmul.f32 %v1252, 0.2
      %v1503 = vmul.f32 %v1257, 0.2
      %v1504 = vmul.f32 %v1262, 0.2
      %v1505 = vmul.f32 %v1267, 0.2
      %v1506 = vmul.f32 %v1272, 0.2
      %v1507 = vmul.f32 %v1277, 0.2
      %v1508 = vmul.f32 %v1282, 0.2
      %v1509 = vmul.f32 %v1287, 0.2
      %v1510 = vmul.f32 %v1292, 0.2
      %v1511 = vmul.f32 %v1297, 0.2
      %v1512 = vmul.f32 %v1302, 0.2
      %v1513 = vmul.f32 %v1307, 0.2
      %v1514 = vmul.f32 %v1312, 0.2
      %v1515 = vmul.f32 %v1317, 0.2
      %v1516 = vmul.f32 %v1322, 0.2
      %v1517 = vmul.f32 %v1327, 0.2
      %v1518 = vmul.f32 %v1332, 0.2
      %v1519 = vmul.f32 %v1337, 0.2
      %v1520 = vmul.f32 %v1342, 0.2
      %v1521 = vmul.f32 %v1347, 0.2
      %v1522 = vmul.f32 %v1352, 0.2
      %v1523 = vmul.f32 %v1357, 0.2
      %v1524 = vmul.f32 %v1362, 0.2
      %v1525 = vmul.f32 %v1367, 0.2
      %v1526 = vmul.f32 %v1372, 0.2
      %v1527 = vmul.f32 %v1377, 0.2
      %v1528 = vmul.f32 %v1382, 0.2
      %v1529 = vmul.f32 %v1387, 0.2
      %v1530 = vmul.f32 %v1392, 0.2
      %v1531 = vmul.f32 %v1397, 0.2
      %v1532 = vmul.f32 %v1402, 0.2
      %v1533 = vmax.f32 %v767, %v1405
      %v1534 = vmax.f32 %v772, %v1406
      %v1535 = vmax.f32 %v777, %v1407
      %v1536 = vmax.f32 %v782, %v1408
      %v1537 = vmax.f32 %v787, %v1409
      %v1538 = vmax.f32 %v792, %v1410
      %v1539 = vmax.f32 %v797, %v1411
      %v1540 = vmax.f32 %v802, %v1412
      %v1541 = vmax.f32 %v807, %v1413
      %v1542 = vmax.f32 %v812, %v1414
      %v1543 = vmax.f32 %v817, %v1415
      %v1544 = vmax.f32 %v822, %v1416
      %v1545 = vmax.f32 %v827, %v1417
      %v1546 = vmax.f32 %v832, %v1418
      %v1547 = vmax.f32 %v837, %v1419
      %v1548 = vmax.f32 %v842, %v1420
      %v1549 = vmax.f32 %v847, %v1421
      %v1550 = vmax.f32 %v852, %v1422
      %v1551 = vmax.f32 %v857, %v1423
      %v1552 = vmax.f32 %v862, %v1424
      %v1553 = vmax.f32 %v867, %v1425
      %v1554 = vmax.f32 %v872, %v1426
      %v1555 = vmax.f32 %v877, %v1427
      %v1556 = vmax.f32 %v882, %v1428
      %v1557 = vmax.f32 %v887, %v1429
      %v1558 = vmax.f32 %v892, %v1430
      %v1559 = vmax.f32 %v897, %v1431
      %v1560 = vmax.f32 %v902, %v1432
      %v1561 = vmax.f32 %v907, %v1433
      %v1562 = vmax.f32 %v912, %v1434
      %v1563 = vmax.f32 %v917, %v1435
      %v1564 = vmax.f32 %v922, %v1436
      %v1565 = vmax.f32 %v927, %v1437
      %v1566 = vmax.f32 %v932, %v1438
      %v1567 = vmax.f32 %v937, %v1439
      %v1568 = vmax.f32 %v942, %v1440
      %v1569 = vmax.f32 %v947, %v1441
      %v1570 = vmax.f32 %v952, %v1442
      %v1571 = vmax.f32 %v957, %v1443
      %v1572 = vmax.f32 %v962, %v1444
      %v1573 = vmax.f32 %v967, %v1445
      %v1574 = vmax.f32 %v972, %v1446
      %v1575 = vmax.f32 %v977, %v1447
      %v1576 = vmax.f32 %v982, %v1448
      %v1577 = vmax.f32 %v987, %v1449
      %v1578 = vmax.f32 %v992, %v1450
      %v1579 = vmax.f32 %v997, %v1451
      %v1580 = vmax.f32 %v1002, %v1452
      %v1581 = vmax.f32 %v1007, %v1453
      %v1582 = vmax.f32 %v1012, %v1454
      %v1583 = vmax.f32 %v1017, %v1455
      %v1584 = vmax.f32 %v1022, %v1456
      %v1585 = vmax.f32 %v1027, %v1457
      %v1586 = vmax.f32 %v1032, %v1458
      %v1587 = vmax.f32 %v1037, %v1459
      %v1588 = vmax.f32 %v1042, %v1460
      %v1589 = vmax.f32 %v1047, %v1461
      %v1590 = vmax.f32 %v1052, %v1462
      %v1591 = vmax.f32 %v1057, %v1463
      %v1592 = vmax.f32 %v1062, %v1464
      %v1593 = vmax.f32 %v1067, %v1465
      %v1594 = vmax.f32 %v1072, %v1466
      %v1595 = vmax.f32 %v1077, %v1467
      %v1596 = vmax.f32 %v1082, %v1468
      %v1597 = vmax.f32 %v1087, %v1469
      %v1598 = vmax.f32 %v1092, %v1470
      %v1599 = vmax.f32 %v1097, %v1471
      %v1600 = vmax.f32 %v1102, %v1472
      %v1601 = vmax.f32 %v1107, %v1473
      %v1602 = vmax.f32 %v1112, %v1474
      %v1603 = vmax.f32 %v1117, %v1475
      %v1604 = vmax.f32 %v1122, %v1476
      %v1605 = vmax.f32 %v1127, %v1477
      %v1606 = vmax.f32 %v1132, %v1478
      %v1607 = vmax.f32 %v1137, %v1479
      %v1608 = vmax.f32 %v1142, %v1480
      %v1609 = vmax.f32 %v1147, %v1481
      %v1610 = vmax.f32 %v1152, %v1482
      %v1611 = vmax.f32 %v1157, %v1483
      %v1612 = vmax.f32 %v1162, %v1484
      %v1613 = vmax.f32 %v1167, %v1485
      %v1614 = vmax.f32 %v1172, %v1486
      %v1615 = vmax.f32 %v1177, %v1487
      %v1616 = vmax.f32 %v1182, %v1488
      %v1617 = vmax.f32 %v1187, %v1489
      %v1618 = vmax.f32 %v1192, %v1490
      %v1619 = vmax.f32 %v1197, %v1491
      %v1620 = vmax.f32 %v1202, %v1492
      %v1621 = vmax.f32 %v1207, %v1493
      %v1622 = vmax.f32 %v1212, %v1494
      %v1623 = vmax.f32 %v1217, %v1495
      %v1624 = vmax.f32 %v1222, %v1496
      %v1625 = vmax.f32 %v1227, %v1497
      %v1626 = vmax.f32 %v1232, %v1498
      %v1627 = vmax.f32 %v1237, %v1499
      %v1628 = vmax.f32 %v1242, %v1500
      %v1629 = vmax.f32 %v1247, %v1501
      %v1630 = vmax.f32 %v1252, %v1502
      %v1631 = vmax.f32 %v1257, %v1503
      %v1632 = vmax.f32 %v1262, %v1504
      %v1633 = vmax.f32 %v1267, %v1505
      %v1634 = vmax.f32 %v1272, %v1506
      %v1635 = vmax.f32 %v1277, %v1507
      %v1636 = vmax.f32 %v1282, %v1508
      %v1637 = vmax.f32 %v1287, %v1509
      %v1638 = vmax.f32 %v1292, %v1510
      %v1639 = vmax.f32 %v1297, %v1511
      %v1640 = vmax.f32 %v1302, %v1512
      %v1641 = vmax.f32 %v1307, %v1513
      %v1642 = vmax.f32 %v1312, %v1514
      %v1643 = vmax.f32 %v1317, %v1515
      %v1644 = vmax.f32 %v1322, %v1516
      %v1645 = vmax.f32 %v1327, %v1517
      %v1646 = vmax.f32 %v1332, %v1518
      %v1647 = vmax.f32 %v1337, %v1519
      %v1648 = vmax.f32 %v1342, %v1520
      %v1649 = vmax.f32 %v1347, %v1521
      %v1650 = vmax.f32 %v1352, %v1522
      %v1651 = vmax.f32 %v1357, %v1523
      %v1652 = vmax.f32 %v1362, %v1524
      %v1653 = vmax.f32 %v1367, %v1525
      %v1654 = vmax.f32 %v1372, %v1526
      %v1655 = vmax.f32 %v1377, %v1527
      %v1656 = vmax.f32 %v1382, %v1528
      %v1657 = vmax.f32 %v1387, %v1529
      %v1658 = vmax.f32 %v1392, %v1530
      %v1659 = vmax.f32 %v1397, %v1531
      %v1660 = vmax.f32 %v1402, %v1532
      %vm1661 = vcmask 130048
      %1662 = vst.msk [vmem:[%s172] sm:$0xff] %vm1661, %v1533
      %1663 = vst.msk [vmem:[%s172 + $0x8] sm:$0xff] %vm1661, %v1534
      %1664 = vst.msk [vmem:[%s172 + $0x10] sm:$0xff] %vm1661, %v1535
      %1665 = vst.msk [vmem:[%s172 + $0x18] sm:$0xff] %vm1661, %v1536
      %1666 = vst.msk [vmem:[%s172 + $0x20] sm:$0xff] %vm1661, %v1537
      %1667 = vst.msk [vmem:[%s172 + $0x28] sm:$0xff] %vm1661, %v1538
      %1668 = vst.msk [vmem:[%s172 + $0x30] sm:$0xff] %vm1661, %v1539
      %1669 = vst.msk [vmem:[%s172 + $0x38] sm:$0xff] %vm1661, %v1540
      %1670 = vst.msk [vmem:[%s172 + $0x40] sm:$0xff] %vm1661, %v1541
      %1671 = vst.msk [vmem:[%s172 + $0x48] sm:$0xff] %vm1661, %v1542
      %1672 = vst.msk [vmem:[%s172 + $0x50] sm:$0xff] %vm1661, %v1543
      %1673 = vst.msk [vmem:[%s172 + $0x58] sm:$0xff] %vm1661, %v1544
      %1674 = vst.msk [vmem:[%s172 + $0x60] sm:$0xff] %vm1661, %v1545
      %1675 = vst.msk [vmem:[%s172 + $0x68] sm:$0xff] %vm1661, %v1546
      %1676 = vst.msk [vmem:[%s172 + $0x70] sm:$0xff] %vm1661, %v1547
      %1677 = vst.msk [vmem:[%s172 + $0x78] sm:$0xff] %vm1661, %v1548
      %1678 = vst.msk [vmem:[%s172 + $0x80] sm:$0xff] %vm1661, %v1549
      %1679 = vst.msk [vmem:[%s172 + $0x88] sm:$0xff] %vm1661, %v1550
      %1680 = vst.msk [vmem:[%s172 + $0x90] sm:$0xff] %vm1661, %v1551
      %1681 = vst.msk [vmem:[%s172 + $0x98] sm:$0xff] %vm1661, %v1552
      %1682 = vst.msk [vmem:[%s172 + $0xa0] sm:$0xff] %vm1661, %v1553
      %1683 = vst.msk [vmem:[%s172 + $0xa8] sm:$0xff] %vm1661, %v1554
      %1684 = vst.msk [vmem:[%s172 + $0xb0] sm:$0xff] %vm1661, %v1555
      %1685 = vst.msk [vmem:[%s172 + $0xb8] sm:$0xff] %vm1661, %v1556
      %1686 = vst.msk [vmem:[%s172 + $0xc0] sm:$0xff] %vm1661, %v1557
      %1687 = vst.msk [vmem:[%s172 + $0xc8] sm:$0xff] %vm1661, %v1558
      %1688 = vst.msk [vmem:[%s172 + $0xd0] sm:$0xff] %vm1661, %v1559
      %1689 = vst.msk [vmem:[%s172 + $0xd8] sm:$0xff] %vm1661, %v1560
      %1690 = vst.msk [vmem:[%s172 + $0xe0] sm:$0xff] %vm1661, %v1561
      %1691 = vst.msk [vmem:[%s172 + $0xe8] sm:$0xff] %vm1661, %v1562
      %1692 = vst.msk [vmem:[%s172 + $0xf0] sm:$0xff] %vm1661, %v1563
      %1693 = vst.msk [vmem:[%s172 + $0xf8] sm:$0xff] %vm1661, %v1564
      %1694 = vst.msk [vmem:[%s172 + $0x100] sm:$0xff] %vm1661, %v1565
      %1695 = vst.msk [vmem:[%s172 + $0x108] sm:$0xff] %vm1661, %v1566
      %1696 = vst.msk [vmem:[%s172 + $0x110] sm:$0xff] %vm1661, %v1567
      %1697 = vst.msk [vmem:[%s172 + $0x118] sm:$0xff] %vm1661, %v1568
      %1698 = vst.msk [vmem:[%s172 + $0x120] sm:$0xff] %vm1661, %v1569
      %1699 = vst.msk [vmem:[%s172 + $0x128] sm:$0xff] %vm1661, %v1570
      %1700 = vst.msk [vmem:[%s172 + $0x130] sm:$0xff] %vm1661, %v1571
      %1701 = vst.msk [vmem:[%s172 + $0x138] sm:$0xff] %vm1661, %v1572
      %1702 = vst.msk [vmem:[%s172 + $0x140] sm:$0xff] %vm1661, %v1573
      %1703 = vst.msk [vmem:[%s172 + $0x148] sm:$0xff] %vm1661, %v1574
      %1704 = vst.msk [vmem:[%s172 + $0x150] sm:$0xff] %vm1661, %v1575
      %1705 = vst.msk [vmem:[%s172 + $0x158] sm:$0xff] %vm1661, %v1576
      %1706 = vst.msk [vmem:[%s172 + $0x160] sm:$0xff] %vm1661, %v1577
      %1707 = vst.msk [vmem:[%s172 + $0x168] sm:$0xff] %vm1661, %v1578
      %1708 = vst.msk [vmem:[%s172 + $0x170] sm:$0xff] %vm1661, %v1579
      %1709 = vst.msk [vmem:[%s172 + $0x178] sm:$0xff] %vm1661, %v1580
      %1710 = vst.msk [vmem:[%s172 + $0x180] sm:$0xff] %vm1661, %v1581
      %1711 = vst.msk [vmem:[%s172 + $0x188] sm:$0xff] %vm1661, %v1582
      %1712 = vst.msk [vmem:[%s172 + $0x190] sm:$0xff] %vm1661, %v1583
      %1713 = vst.msk [vmem:[%s172 + $0x198] sm:$0xff] %vm1661, %v1584
      %1714 = vst.msk [vmem:[%s172 + $0x1a0] sm:$0xff] %vm1661, %v1585
      %1715 = vst.msk [vmem:[%s172 + $0x1a8] sm:$0xff] %vm1661, %v1586
      %1716 = vst.msk [vmem:[%s172 + $0x1b0] sm:$0xff] %vm1661, %v1587
      %1717 = vst.msk [vmem:[%s172 + $0x1b8] sm:$0xff] %vm1661, %v1588
      %1718 = vst.msk [vmem:[%s172 + $0x1c0] sm:$0xff] %vm1661, %v1589
      %1719 = vst.msk [vmem:[%s172 + $0x1c8] sm:$0xff] %vm1661, %v1590
      %1720 = vst.msk [vmem:[%s172 + $0x1d0] sm:$0xff] %vm1661, %v1591
      %1721 = vst.msk [vmem:[%s172 + $0x1d8] sm:$0xff] %vm1661, %v1592
      %1722 = vst.msk [vmem:[%s172 + $0x1e0] sm:$0xff] %vm1661, %v1593
      %1723 = vst.msk [vmem:[%s172 + $0x1e8] sm:$0xff] %vm1661, %v1594
      %1724 = vst.msk [vmem:[%s172 + $0x1f0] sm:$0xff] %vm1661, %v1595
      %1725 = vst.msk [vmem:[%s172 + $0x1f8] sm:$0xff] %vm1661, %v1596
      %1726 = vst.msk [vmem:[%s172 + $0x200] sm:$0xff] %vm1661, %v1597
      %1727 = vst.msk [vmem:[%s172 + $0x208] sm:$0xff] %vm1661, %v1598
      %1728 = vst.msk [vmem:[%s172 + $0x210] sm:$0xff] %vm1661, %v1599
      %1729 = vst.msk [vmem:[%s172 + $0x218] sm:$0xff] %vm1661, %v1600
      %1730 = vst.msk [vmem:[%s172 + $0x220] sm:$0xff] %vm1661, %v1601
      %1731 = vst.msk [vmem:[%s172 + $0x228] sm:$0xff] %vm1661, %v1602
      %1732 = vst.msk [vmem:[%s172 + $0x230] sm:$0xff] %vm1661, %v1603
      %1733 = vst.msk [vmem:[%s172 + $0x238] sm:$0xff] %vm1661, %v1604
      %1734 = vst.msk [vmem:[%s172 + $0x240] sm:$0xff] %vm1661, %v1605
      %1735 = vst.msk [vmem:[%s172 + $0x248] sm:$0xff] %vm1661, %v1606
      %1736 = vst.msk [vmem:[%s172 + $0x250] sm:$0xff] %vm1661, %v1607
      %1737 = vst.msk [vmem:[%s172 + $0x258] sm:$0xff] %vm1661, %v1608
      %1738 = vst.msk [vmem:[%s172 + $0x260] sm:$0xff] %vm1661, %v1609
      %1739 = vst.msk [vmem:[%s172 + $0x268] sm:$0xff] %vm1661, %v1610
      %1740 = vst.msk [vmem:[%s172 + $0x270] sm:$0xff] %vm1661, %v1611
      %1741 = vst.msk [vmem:[%s172 + $0x278] sm:$0xff] %vm1661, %v1612
      %1742 = vst.msk [vmem:[%s172 + $0x280] sm:$0xff] %vm1661, %v1613
      %1743 = vst.msk [vmem:[%s172 + $0x288] sm:$0xff] %vm1661, %v1614
      %1744 = vst.msk [vmem:[%s172 + $0x290] sm:$0xff] %vm1661, %v1615
      %1745 = vst.msk [vmem:[%s172 + $0x298] sm:$0xff] %vm1661, %v1616
      %1746 = vst.msk [vmem:[%s172 + $0x2a0] sm:$0xff] %vm1661, %v1617
      %1747 = vst.msk [vmem:[%s172 + $0x2a8] sm:$0xff] %vm1661, %v1618
      %1748 = vst.msk [vmem:[%s172 + $0x2b0] sm:$0xff] %vm1661, %v1619
      %1749 = vst.msk [vmem:[%s172 + $0x2b8] sm:$0xff] %vm1661, %v1620
      %1750 = vst.msk [vmem:[%s172 + $0x2c0] sm:$0xff] %vm1661, %v1621
      %1751 = vst.msk [vmem:[%s172 + $0x2c8] sm:$0xff] %vm1661, %v1622
      %1752 = vst.msk [vmem:[%s172 + $0x2d0] sm:$0xff] %vm1661, %v1623
      %1753 = vst.msk [vmem:[%s172 + $0x2d8] sm:$0xff] %vm1661, %v1624
      %1754 = vst.msk [vmem:[%s172 + $0x2e0] sm:$0xff] %vm1661, %v1625
      %1755 = vst.msk [vmem:[%s172 + $0x2e8] sm:$0xff] %vm1661, %v1626
      %1756 = vst.msk [vmem:[%s172 + $0x2f0] sm:$0xff] %vm1661, %v1627
      %1757 = vst.msk [vmem:[%s172 + $0x2f8] sm:$0xff] %vm1661, %v1628
      %1758 = vst.msk [vmem:[%s172 + $0x300] sm:$0xff] %vm1661, %v1629
      %1759 = vst.msk [vmem:[%s172 + $0x308] sm:$0xff] %vm1661, %v1630
      %1760 = vst.msk [vmem:[%s172 + $0x310] sm:$0xff] %vm1661, %v1631
      %1761 = vst.msk [vmem:[%s172 + $0x318] sm:$0xff] %vm1661, %v1632
      %1762 = vst.msk [vmem:[%s172 + $0x320] sm:$0xff] %vm1661, %v1633
      %1763 = vst.msk [vmem:[%s172 + $0x328] sm:$0xff] %vm1661, %v1634
      %1764 = vst.msk [vmem:[%s172 + $0x330] sm:$0xff] %vm1661, %v1635
      %1765 = vst.msk [vmem:[%s172 + $0x338] sm:$0xff] %vm1661, %v1636
      %1766 = vst.msk [vmem:[%s172 + $0x340] sm:$0xff] %vm1661, %v1637
      %1767 = vst.msk [vmem:[%s172 + $0x348] sm:$0xff] %vm1661, %v1638
      %1768 = vst.msk [vmem:[%s172 + $0x350] sm:$0xff] %vm1661, %v1639
      %1769 = vst.msk [vmem:[%s172 + $0x358] sm:$0xff] %vm1661, %v1640
      %1770 = vst.msk [vmem:[%s172 + $0x360] sm:$0xff] %vm1661, %v1641
      %1771 = vst.msk [vmem:[%s172 + $0x368] sm:$0xff] %vm1661, %v1642
      %1772 = vst.msk [vmem:[%s172 + $0x370] sm:$0xff] %vm1661, %v1643
      %1773 = vst.msk [vmem:[%s172 + $0x378] sm:$0xff] %vm1661, %v1644
      %1774 = vst.msk [vmem:[%s172 + $0x380] sm:$0xff] %vm1661, %v1645
      %1775 = vst.msk [vmem:[%s172 + $0x388] sm:$0xff] %vm1661, %v1646
      %1776 = vst.msk [vmem:[%s172 + $0x390] sm:$0xff] %vm1661, %v1647
      %1777 = vst.msk [vmem:[%s172 + $0x398] sm:$0xff] %vm1661, %v1648
      %1778 = vst.msk [vmem:[%s172 + $0x3a0] sm:$0xff] %vm1661, %v1649
      %1779 = vst.msk [vmem:[%s172 + $0x3a8] sm:$0xff] %vm1661, %v1650
      %1780 = vst.msk [vmem:[%s172 + $0x3b0] sm:$0xff] %vm1661, %v1651
      %1781 = vst.msk [vmem:[%s172 + $0x3b8] sm:$0xff] %vm1661, %v1652
      %1782 = vst.msk [vmem:[%s172 + $0x3c0] sm:$0xff] %vm1661, %v1653
      %1783 = vst.msk [vmem:[%s172 + $0x3c8] sm:$0xff] %vm1661, %v1654
      %1784 = vst.msk [vmem:[%s172 + $0x3d0] sm:$0xff] %vm1661, %v1655
      %1785 = vst.msk [vmem:[%s172 + $0x3d8] sm:$0xff] %vm1661, %v1656
      %1786 = vst.msk [vmem:[%s172 + $0x3e0] sm:$0xff] %vm1661, %v1657
      %1787 = vst.msk [vmem:[%s172 + $0x3e8] sm:$0xff] %vm1661, %v1658
      %1788 = vst.msk [vmem:[%s172 + $0x3f0] sm:$0xff] %vm1661, %v1659
      %1789 = vst.msk [vmem:[%s172 + $0x3f8] sm:$0xff] %vm1661, %v1660
      %s1790 = smul.u32 128, %s14
      %p1791 = scmp.lt.s32.totalorder %s1790, 255
      %s1792 = scalar_select %p1791, %s1790, 255
      %s1793 = smul.addr %s1792, 8
      %s1794 = scalar_lea.vmem %s3, %s1793
      // Predicated region
      $region33: #{discriminator_forward.5} parent=31 // pred_check
        %p1795 = pneg %p100
      $region34: #{discriminator_forward.5} parent=31 // pred_check_branch
        %1797 = sbr.rel (%p1795) target = $region36
      $region35: #{discriminator_forward.5} parent=31 // pred_region
        %s1798 = smul.u32 128, %s14
      $region36: #{discriminator_forward.5} parent=31 // pred_fallthru
        _
    $region32: #{discriminator_forward.5} parent=5 // pred_fallthru
      _
    %p1799 = scmp.le.s32.totalorder 2, %s9
    // Predicated region
    $region37: #{discriminator_forward.5} parent=5 // pred_check
      %p1800 = pneg %p1799
    $region38: #{discriminator_forward.5} parent=5 // pred_check_branch
      %1802 = sbr.rel (%p1800) target = $region40
    $region39: #{discriminator_forward.5} parent=5 // pred_region
      %s1803 = ssub.s32 %s9, 2
      // Predicated region
      $region41: #{discriminator_forward.5} parent=39 // pred_check
        %p1804 = pneg %p106
      $region42: #{discriminator_forward.5} parent=39 // pred_check_branch
        %1806 = sbr.rel (%p1804) target = $region44
      $region43: #{discriminator_forward.5} parent=39 // pred_region
        %s1807 = smul.u32 128, %s15
        %p1808 = scmp.lt.s32.totalorder %s1807, 255
        %s1809 = scalar_select %p1808, %s1807, 255
        %s1810 = smul.addr %s1809, 8
        %s1811 = scalar_lea.vmem %s3, %s1810
      $region44: #{discriminator_forward.5} parent=39 // pred_fallthru
        _
    $region40: #{discriminator_forward.5} parent=5 // pred_fallthru
      _
  $region6: #{discriminator_forward.5} parent=0 // loop_footer
    %s13 = sadd.s32 1, %s9
  $region7: #{discriminator_forward.5} parent=0 // loop_footer_branch
    %8 = sbr.rel target = $region3
  $region8: #{discriminator_forward.5} parent=0 // loop_exit
    _

// kernel: discriminator_forward.6
$region0: #{discriminator_forward.6}
  #allocation0 [shape = 'u32[]', space=smem, size = 0x4, offset = 0x4, fixed_abs, tag = 'smem constant byte address 0x4 - core index']
  #allocation1 [shape = 'u32[144,128]{1,0:T(1,128)}', space=vmem, size = 0x12000, scoped, tag = 'internal scratch']
  %s0 = inlined_call_operand.vmem [shape: f32[512,144], index: 0, kind: input, shape index: {}]
  %s1 = inlined_call_operand.vmem [shape: f32[144,32], index: 1, kind: input, shape index: {}]
  %s2 = inlined_call_operand.vmem [shape: f32[1,32], index: 2, kind: input, shape index: {}]
  %s3 = inlined_call_operand.vmem [shape: f32[512,32], index: 3, kind: output, shape index: {}]
  %s4 = sld [smem:[#allocation0]]
  $region45: #{discriminator_forward.6} parent=0
    _
  %s6 = ssub.s32 1, %s4
  %s7 = scalar_select 0, %s6, %s4
  loop: start=0, step=1, limit=4
  $region2: #{discriminator_forward.6} parent=0 // loop_pre_header
    _
  $region3: #{discriminator_forward.6} parent=0 // loop_header
    %s9 = sphi 0, %s13
    %p10 = scmp.ge.s32.totalorder %s9, 4
    %s19 = sphi 0, %s21
    %s22 = sphi 0, %s19
    %s23 = sphi 0, %s22
    %s39 = sphi 0, %s23
    %s43 = sphi 0, %s43
    %s45 = sphi 0, %s43
    %s46 = sphi 0, %s45
    %s60 = sphi 0, %s46
    %s64 = sphi 0, %s64
    %s66 = sphi 0, %s64
    %s67 = sphi 0, %s66
    %s81 = sphi 0, %s67
    %s87 = sphi 0, %s89
    %s90 = sphi 0, %s87
    %s91 = sphi 0, %s90
    %s107 = sphi 0, %s91
  $region4: #{discriminator_forward.6} parent=0 // loop_header_branch
    %12 = sbr.rel (%p10) target = $region8
  $region5: #{discriminator_forward.6} parent=0 // loop_body
    %s14 = ssub.s32 %s9, 1
    %s15 = ssub.s32 %s9, 2
    %s16 = sadd.s32 %s9, 1
    %s17 = ssub.s32 %s9, %s16
    %p18 = scmp.eq.s32.totalorder %s17, 0
    %s20 = sadd.s32 %s19, 1
    %s21 = scalar_select %p18, %s19, %s20
    %p24 = pneg %p18
    %p25 = scmp.eq.s32.totalorder %s9, 1
    %p26 = por %p24, %p25
    %p27 = scmp.ne.s32.totalorder %s19, %s22
    %p28 = scmp.eq.s32.totalorder %s9, 0
    %p29 = por %p27, %p28
    %p30 = scmp.ne.s32.totalorder %s19, %s22
    %p31 = scmp.eq.s32.totalorder %s14, 1
    %p32 = por %p30, %p31
    %p33 = scmp.ne.s32.totalorder %s22, %s23
    %p34 = scmp.eq.s32.totalorder %s14, 0
    %p35 = por %p33, %p34
    %p36 = scmp.ne.s32.totalorder %s22, %s23
    %p37 = scmp.eq.s32.totalorder %s15, 1
    %p38 = por %p36, %p37
    %p40 = scmp.ne.s32.totalorder %s23, %s39
    %p41 = scmp.eq.s32.totalorder %s15, 0
    %p42 = por %p40, %p41
    %s44 = sadd.s32 %s43, 1
    %p47 = scmp.eq.s32.totalorder %s9, 1
    %p48 = scmp.ne.s32.totalorder %s43, %s45
    %p49 = scmp.eq.s32.totalorder %s9, 0
    %p50 = por %p48, %p49
    %p51 = scmp.ne.s32.totalorder %s43, %s45
    %p52 = scmp.eq.s32.totalorder %s14, 1
    %p53 = por %p51, %p52
    %p54 = scmp.ne.s32.totalorder %s45, %s46
    %p55 = scmp.eq.s32.totalorder %s14, 0
    %p56 = por %p54, %p55
    %p57 = scmp.ne.s32.totalorder %s45, %s46
    %p58 = scmp.eq.s32.totalorder %s15, 1
    %p59 = por %p57, %p58
    %p61 = scmp.ne.s32.totalorder %s46, %s60
    %p62 = scmp.eq.s32.totalorder %s15, 0
    %p63 = por %p61, %p62
    %s65 = sadd.s32 %s64, 1
    %p68 = scmp.eq.s32.totalorder %s9, 1
    %p69 = scmp.ne.s32.totalorder %s64, %s66
    %p70 = scmp.eq.s32.totalorder %s9, 0
    %p71 = por %p69, %p70
    %p72 = scmp.ne.s32.totalorder %s64, %s66
    %p73 = scmp.eq.s32.totalorder %s14, 1
    %p74 = por %p72, %p73
    %p75 = scmp.ne.s32.totalorder %s66, %s67
    %p76 = scmp.eq.s32.totalorder %s14, 0
    %p77 = por %p75, %p76
    %p78 = scmp.ne.s32.totalorder %s66, %s67
    %p79 = scmp.eq.s32.totalorder %s15, 1
    %p80 = por %p78, %p79
    %p82 = scmp.ne.s32.totalorder %s67, %s81
    %p83 = scmp.eq.s32.totalorder %s15, 0
    %p84 = por %p82, %p83
    %s85 = ssub.s32 %s9, %s16
    %p86 = scmp.eq.s32.totalorder %s85, 0
    %s88 = sadd.s32 %s87, 1
    %s89 = scalar_select %p86, %s87, %s88
    %p92 = pneg %p86
    %p93 = scmp.eq.s32.totalorder %s9, 1
    %p94 = por %p92, %p93
    %p95 = scmp.ne.s32.totalorder %s87, %s90
    %p96 = scmp.eq.s32.totalorder %s9, 0
    %p97 = por %p95, %p96
    %p98 = scmp.ne.s32.totalorder %s87, %s90
    %p99 = scmp.eq.s32.totalorder %s14, 1
    %p100 = por %p98, %p99
    %p101 = scmp.ne.s32.totalorder %s90, %s91
    %p102 = scmp.eq.s32.totalorder %s14, 0
    %p103 = por %p101, %p102
    %p104 = scmp.ne.s32.totalorder %s90, %s91
    %p105 = scmp.eq.s32.totalorder %s15, 1
    %p106 = por %p104, %p105
    %p108 = scmp.ne.s32.totalorder %s91, %s107
    %p109 = scmp.eq.s32.totalorder %s15, 0
    %p110 = por %p108, %p109
    %p111 = scmp.le.s32.totalorder 1, %s9
    %p112 = scmp.lt.s32.totalorder %s9, 3
    %p113 = pnand %p111, %p112
    %p114 = pneg %p113
    // Predicated region
    $region9: #{discriminator_forward.6} parent=5 // pred_check
      _
    $region10: #{discriminator_forward.6} parent=5 // pred_check_branch
      %116 = sbr.rel (%p113) target = $region12
    $region11: #{discriminator_forward.6} parent=5 // pred_region
      %s117 = ssub.s32 %s9, 1
      // Predicated region
      $region13: #{discriminator_forward.6} parent=11 // pred_check
        %p118 = pneg %p56
      $region14: #{discriminator_forward.6} parent=11 // pred_check_branch
        %120 = sbr.rel (%p118) target = $region16
      $region15: #{discriminator_forward.6} parent=11 // pred_region
        _
      $region16: #{discriminator_forward.6} parent=11 // pred_fallthru
        _
      // Predicated region
      $region17: #{discriminator_forward.6} parent=11 // pred_check
        %p121 = pneg %p77
      $region18: #{discriminator_forward.6} parent=11 // pred_check_branch
        %123 = sbr.rel (%p121) target = $region20
      $region19: #{discriminator_forward.6} parent=11 // pred_region
        _
      $region20: #{discriminator_forward.6} parent=11 // pred_fallthru
        _
    $region12: #{discriminator_forward.6} parent=5 // pred_fallthru
      _
    %p124 = scmp.lt.s32.totalorder %s9, 2
    // Predicated region
    $region21: #{discriminator_forward.6} parent=5 // pred_check
      %p125 = pneg %p124
    $region22: #{discriminator_forward.6} parent=5 // pred_check_branch
      %127 = sbr.rel (%p125) target = $region24
    $region23: #{discriminator_forward.6} parent=5 // pred_region
      // Predicated region
      $region25: #{discriminator_forward.6} parent=23 // pred_check
        %p128 = pneg %p29
      $region26: #{discriminator_forward.6} parent=23 // pred_check_branch
        %130 = sbr.rel (%p128) target = $region28
      $region27: #{discriminator_forward.6} parent=23 // pred_region
        %s131 = smul.u32 32, %s9
        %p132 = scmp.lt.s32.totalorder %s131, 63
        %s133 = scalar_select %p132, %s131, 63
        %s134 = smul.addr %s133, 2
        %s135 = smul.addr %s134, 8
        %s136 = scalar_lea.vmem %s0, %s135
        %s137 = smul.u32 32, %s9
      $region28: #{discriminator_forward.6} parent=23 // pred_fallthru
        _
    $region24: #{discriminator_forward.6} parent=5 // pred_fallthru
      _
    %p138 = scmp.le.s32.totalorder 1, %s9
    %p139 = scmp.lt.s32.totalorder %s9, 3
    %p140 = pnand %p138, %p139
    %p141 = pneg %p140
    // Predicated region
    $region29: #{discriminator_forward.6} parent=5 // pred_check
      _
    $region30: #{discriminator_forward.6} parent=5 // pred_check_branch
      %143 = sbr.rel (%p140) target = $region32
    $region31: #{discriminator_forward.6} parent=5 // pred_region
      %s144 = ssub.s32 %s9, 1
      %s145 = smul.u32 32, %s14
      %p146 = scmp.lt.s32.totalorder %s145, 63
      %s147 = scalar_select %p146, %s145, 63
      %s148 = smul.addr %s147, 2
      %s149 = smul.addr %s148, 8
      %s150 = scalar_lea.vmem %s0, %s149
      %p151 = pneg %p35
      %p152 = pneg %p32
      %p153 = pneg %p56
      %p154 = pneg %p53
      %p155 = pneg %p77
      %p156 = pneg %p74
      %p157 = pneg %p103
      %p158 = pneg %p100
      %s159 = smul.u32 32, %s14
      %p160 = scmp.lt.s32.totalorder %s159, 63
      %s161 = scalar_select %p160, %s159, 63
      %s162 = smul.addr %s161, 8
      %s163 = scalar_lea.vmem %s3, %s162
      %s164 = smul.u32 32, %s14
      %p165 = scmp.lt.s32.totalorder %s164, 63
      %s166 = scalar_select %p165, %s164, 63
      %s167 = smul.addr %s166, 2
      %s168 = smul.addr %s167, 8
      %s169 = scalar_lea.vmem %s0, %s168
      %s170 = smul.u32 32, %s14
      %s171 = smul.u32 32, %s14
      %p172 = scmp.lt.s32.totalorder %s171, 63
      %s173 = scalar_select %p172, %s171, 63
      %s174 = smul.addr %s173, 8
      %s175 = scalar_lea.vmem %s3, %s174
      %s176 = smul.u32 32, %s14
      %v177 = vld [vmem:[%s169] sm:$0xff]
      %v178 = vld [vmem:[%s169 + $0x8] sm:$0xff]
      %v179 = vld [vmem:[%s169 + $0x10] sm:$0xff]
      %v180 = vld [vmem:[%s169 + $0x18] sm:$0xff]
      %v181 = vld [vmem:[%s169 + $0x20] sm:$0xff]
      %v182 = vld [vmem:[%s169 + $0x28] sm:$0xff]
      %v183 = vld [vmem:[%s169 + $0x30] sm:$0xff]
      %v184 = vld [vmem:[%s169 + $0x38] sm:$0xff]
      %v185 = vld [vmem:[%s169 + $0x40] sm:$0xff]
      %v186 = vld [vmem:[%s169 + $0x48] sm:$0xff]
      %v187 = vld [vmem:[%s169 + $0x50] sm:$0xff]
      %v188 = vld [vmem:[%s169 + $0x58] sm:$0xff]
      %v189 = vld [vmem:[%s169 + $0x60] sm:$0xff]
      %v190 = vld [vmem:[%s169 + $0x68] sm:$0xff]
      %v191 = vld [vmem:[%s169 + $0x70] sm:$0xff]
      %v192 = vld [vmem:[%s169 + $0x78] sm:$0xff]
      %v193 = vld [vmem:[%s169 + $0x80] sm:$0xff]
      %v194 = vld [vmem:[%s169 + $0x88] sm:$0xff]
      %v195 = vld [vmem:[%s169 + $0x90] sm:$0xff]
      %v196 = vld [vmem:[%s169 + $0x98] sm:$0xff]
      %v197 = vld [vmem:[%s169 + $0xa0] sm:$0xff]
      %v198 = vld [vmem:[%s169 + $0xa8] sm:$0xff]
      %v199 = vld [vmem:[%s169 + $0xb0] sm:$0xff]
      %v200 = vld [vmem:[%s169 + $0xb8] sm:$0xff]
      %v201 = vld [vmem:[%s169 + $0xc0] sm:$0xff]
      %v202 = vld [vmem:[%s169 + $0xc8] sm:$0xff]
      %v203 = vld [vmem:[%s169 + $0xd0] sm:$0xff]
      %v204 = vld [vmem:[%s169 + $0xd8] sm:$0xff]
      %v205 = vld [vmem:[%s169 + $0xe0] sm:$0xff]
      %v206 = vld [vmem:[%s169 + $0xe8] sm:$0xff]
      %v207 = vld [vmem:[%s169 + $0xf0] sm:$0xff]
      %v208 = vld [vmem:[%s169 + $0xf8] sm:$0xff]
      %v209 = vld [vmem:[%s169 + $0x100] sm:$0xff]
      %v210 = vld [vmem:[%s169 + $0x108] sm:$0xff]
      %v211 = vld [vmem:[%s169 + $0x110] sm:$0xff]
      %v212 = vld [vmem:[%s169 + $0x118] sm:$0xff]
      %v213 = vld [vmem:[%s169 + $0x120] sm:$0xff]
      %v214 = vld [vmem:[%s169 + $0x128] sm:$0xff]
      %v215 = vld [vmem:[%s169 + $0x130] sm:$0xff]
      %v216 = vld [vmem:[%s169 + $0x138] sm:$0xff]
      %v217 = vld [vmem:[%s169 + $0x140] sm:$0xff]
      %v218 = vld [vmem:[%s169 + $0x148] sm:$0xff]
      %v219 = vld [vmem:[%s169 + $0x150] sm:$0xff]
      %v220 = vld [vmem:[%s169 + $0x158] sm:$0xff]
      %v221 = vld [vmem:[%s169 + $0x160] sm:$0xff]
      %v222 = vld [vmem:[%s169 + $0x168] sm:$0xff]
      %v223 = vld [vmem:[%s169 + $0x170] sm:$0xff]
      %v224 = vld [vmem:[%s169 + $0x178] sm:$0xff]
      %v225 = vld [vmem:[%s169 + $0x180] sm:$0xff]
      %v226 = vld [vmem:[%s169 + $0x188] sm:$0xff]
      %v227 = vld [vmem:[%s169 + $0x190] sm:$0xff]
      %v228 = vld [vmem:[%s169 + $0x198] sm:$0xff]
      %v229 = vld [vmem:[%s169 + $0x1a0] sm:$0xff]
      %v230 = vld [vmem:[%s169 + $0x1a8] sm:$0xff]
      %v231 = vld [vmem:[%s169 + $0x1b0] sm:$0xff]
      %v232 = vld [vmem:[%s169 + $0x1b8] sm:$0xff]
      %v233 = vld [vmem:[%s169 + $0x1c0] sm:$0xff]
      %v234 = vld [vmem:[%s169 + $0x1c8] sm:$0xff]
      %v235 = vld [vmem:[%s169 + $0x1d0] sm:$0xff]
      %v236 = vld [vmem:[%s169 + $0x1d8] sm:$0xff]
      %v237 = vld [vmem:[%s169 + $0x1e0] sm:$0xff]
      %v238 = vld [vmem:[%s169 + $0x1e8] sm:$0xff]
      %v239 = vld [vmem:[%s169 + $0x1f0] sm:$0xff]
      %v240 = vld [vmem:[%s169 + $0x1f8] sm:$0xff]
      %v241 = vld [vmem:[%s1] sm:$0xff]
      %v242 = vld [vmem:[%s1 + $0x8] sm:$0xff]
      %v243 = vld [vmem:[%s1 + $0x10] sm:$0xff]
      %v244 = vld [vmem:[%s1 + $0x18] sm:$0xff]
      %v245 = vld [vmem:[%s1 + $0x20] sm:$0xff]
      %v246 = vld [vmem:[%s1 + $0x28] sm:$0xff]
      %v247 = vld [vmem:[%s1 + $0x30] sm:$0xff]
      %v248 = vld [vmem:[%s1 + $0x38] sm:$0xff]
      %v249 = vld [vmem:[%s1 + $0x40] sm:$0xff]
      %v250 = vld [vmem:[%s1 + $0x48] sm:$0xff]
      %v251 = vld [vmem:[%s1 + $0x50] sm:$0xff]
      %v252 = vld [vmem:[%s1 + $0x58] sm:$0xff]
      %v253 = vld [vmem:[%s1 + $0x60] sm:$0xff]
      %v254 = vld [vmem:[%s1 + $0x68] sm:$0xff]
      %v255 = vld [vmem:[%s1 + $0x70] sm:$0xff]
      %v256 = vld [vmem:[%s1 + $0x78] sm:$0xff]
      %v257 = vld [vmem:[%s1 + $0x80] sm:$0xff]
      %v258 = vld [vmem:[%s1 + $0x88] sm:$0xff]
      %v259 = vld [vmem:[%s2] sm:$0x1]
      %v261 = vlaneseq
      %v262 = vshrl.u32 %v261, 7
      %v263 = vsub.s32 0, %v262
      %v264 = vrot.slane %v259, %v263
      %vm266 = vcmask 130048
      %v268 = vsel %vm266, %v178, 0
      %v271 = vsel %vm266, %v180, 0
      %v274 = vsel %vm266, %v182, 0
      %v277 = vsel %vm266, %v184, 0
      %v280 = vsel %vm266, %v186, 0
      %v283 = vsel %vm266, %v188, 0
      %v286 = vsel %vm266, %v190, 0
      %v289 = vsel %vm266, %v192, 0
      %v292 = vsel %vm266, %v194, 0
      %v295 = vsel %vm266, %v196, 0
      %v298 = vsel %vm266, %v198, 0
      %v301 = vsel %vm266, %v200, 0
      %v304 = vsel %vm266, %v202, 0
      %v307 = vsel %vm266, %v204, 0
      %v310 = vsel %vm266, %v206, 0
      %v313 = vsel %vm266, %v208, 0
      %v316 = vsel %vm266, %v210, 0
      %v319 = vsel %vm266, %v212, 0
      %v322 = vsel %vm266, %v214, 0
      %v325 = vsel %vm266, %v216, 0
      %v328 = vsel %vm266, %v218, 0
      %v331 = vsel %vm266, %v220, 0
      %v334 = vsel %vm266, %v222, 0
      %v337 = vsel %vm266, %v224, 0
      %v340 = vsel %vm266, %v226, 0
      %v343 = vsel %vm266, %v228, 0
      %v346 = vsel %vm266, %v230, 0
      %v349 = vsel %vm266, %v232, 0
      %v352 = vsel %vm266, %v234, 0
      %v355 = vsel %vm266, %v236, 0
      %v358 = vsel %vm266, %v238, 0
      %v361 = vsel %vm266, %v240, 0
      %363 = vmatprep.subr.mxu0 0.0
      %364 = vmatpush1.msra.mxu0 %v241
      %365 = vmatprep.subr.mxu0 0.0
      %366 = vmatpush1.msra.mxu0 %v242
      %367 = vmatprep.subr.mxu0 0.0
      %368 = vmatpush1.msra.mxu0 %v243
      %369 = vmatprep.subr.mxu0 0.0
      %370 = vmatpush1.msra.mxu0 %v244
      %371 = vmatprep.subr.mxu0 0.0
      %372 = vmatpush1.msra.mxu0 %v245
      %373 = vmatprep.subr.mxu0 0.0
      %374 = vmatpush1.msra.mxu0 %v246
      %375 = vmatprep.subr.mxu0 0.0
      %376 = vmatpush1.msra.mxu0 %v247
      %377 = vmatprep.subr.mxu0 0.0
      %378 = vmatpush1.msra.mxu0 %v248
      %379 = vmatprep.subr.mxu0 0.0
      %380 = vmatpush1.msra.mxu0 %v249
      %381 = vmatprep.subr.mxu0 0.0
      %382 = vmatpush1.msra.mxu0 %v250
      %383 = vmatprep.subr.mxu0 0.0
      %384 = vmatpush1.msra.mxu0 %v251
      %385 = vmatprep.subr.mxu0 0.0
      %386 = vmatpush1.msra.mxu0 %v252
      %387 = vmatprep.subr.mxu0 0.0
      %388 = vmatpush1.msra.mxu0 %v253
      %389 = vmatprep.subr.mxu0 0.0
      %390 = vmatpush1.msra.mxu0 %v254
      %391 = vmatprep.subr.mxu0 0.0
      %392 = vmatpush1.msra.mxu0 %v255
      %393 = vmatprep.subr.mxu0 0.0
      %394 = vmatpush1.msra.mxu0 %v256
      %395 = vmatprep.subr.mxu0 0.0
      %396 = vmatpush1.msra.mxu0 %v257
      %397 = vmatprep.subr.mxu0 0.0
      %398 = vmatpush1.msra.mxu0 %v258
      %399 = vmatprep.subr.mxu0 0.0
      %400 = vmatpush1.msra.mxu0 0.0
      %401 = vmatprep.subr.mxu0 0.0
      %402 = vmatpush1.msra.mxu0 0.0
      %403 = vmatprep.subr.mxu0 0.0
      %404 = vmatpush1.msra.mxu0 0.0
      %405 = vmatprep.subr.mxu0 0.0
      %406 = vmatpush1.msra.mxu0 0.0
      %407 = vmatprep.subr.mxu0 0.0
      %408 = vmatpush1.msra.mxu0 0.0
      %409 = vmatprep.subr.mxu0 0.0
      %410 = vmatpush1.msra.mxu0 0.0
      %411 = vmatprep.subr.mxu0 0.0
      %412 = vmatpush1.msra.mxu0 0.0
      %413 = vmatprep.subr.mxu0 0.0
      %414 = vmatpush1.msra.mxu0 0.0
      %415 = vmatprep.subr.mxu0 0.0
      %416 = vmatpush1.msra.mxu0 0.0
      %417 = vmatprep.subr.mxu0 0.0
      %418 = vmatpush1.msra.mxu0 0.0
      %419 = vmatprep.subr.mxu0 0.0
      %420 = vmatpush1.msra.mxu0 0.0
      %421 = vmatprep.subr.mxu0 0.0
      %422 = vmatpush1.msra.mxu0 0.0
      %423 = vmatprep.subr.mxu0 0.0
      %424 = vmatpush1.msra.mxu0 0.0
      %425 = vmatprep.subr.mxu0 0.0
      %426 = vmatpush1.msra.mxu0 0.0
      %427 = vmatprep.mubr.f32.mxu0 %v268
      %428 = vmatmul.mubr.f32.gmra.mrb[0].mxu0 %v177
      %v429 = vpop.f32.mrb[0].mxu0
      %v430 = vadd.f32 %v264, %v429
      %v431 = vpop.f32.mrb[0].mxu0
      %432 = vmatprep.mubr.f32.mxu0 %v271
      %433 = vmatmul.mubr.f32.gmra.mrb[0].mxu0 %v179
      %v434 = vpop.f32.mrb[0].mxu0
      %v435 = vadd.f32 %v264, %v434
      %v436 = vpop.f32.mrb[0].mxu0
      %437 = vmatprep.mubr.f32.mxu0 %v274
      %438 = vmatmul.mubr.f32.gmra.mrb[0].mxu0 %v181
      %v439 = vpop.f32.mrb[0].mxu0
      %v440 = vadd.f32 %v264, %v439
      %v441 = vpop.f32.mrb[0].mxu0
      %442 = vmatprep.mubr.f32.mxu0 %v277
      %443 = vmatmul.mubr.f32.gmra.mrb[0].mxu0 %v183
      %v444 = vpop.f32.mrb[0].mxu0
      %v445 = vadd.f32 %v264, %v444
      %v446 = vpop.f32.mrb[0].mxu0
      %447 = vmatprep.mubr.f32.mxu0 %v280
      %448 = vmatmul.mubr.f32.gmra.mrb[0].mxu0 %v185
      %v449 = vpop.f32.mrb[0].mxu0
      %v450 = vadd.f32 %v264, %v449
      %v451 = vpop.f32.mrb[0].mxu0
      %452 = vmatprep.mubr.f32.mxu0 %v283
      %453 = vmatmul.mubr.f32.gmra.mrb[0].mxu0 %v187
      %v454 = vpop.f32.mrb[0].mxu0
      %v455 = vadd.f32 %v264, %v454
      %v456 = vpop.f32.mrb[0].mxu0
      %457 = vmatprep.mubr.f32.mxu0 %v286
      %458 = vmatmul.mubr.f32.gmra.mrb[0].mxu0 %v189
      %v459 = vpop.f32.mrb[0].mxu0
      %v460 = vadd.f32 %v264, %v459
      %v461 = vpop.f32.mrb[0].mxu0
      %462 = vmatprep.mubr.f32.mxu0 %v289
      %463 = vmatmul.mubr.f32.gmra.mrb[0].mxu0 %v191
      %v464 = vpop.f32.mrb[0].mxu0
      %v465 = vadd.f32 %v264, %v464
      %v466 = vpop.f32.mrb[0].mxu0
      %467 = vmatprep.mubr.f32.mxu0 %v292
      %468 = vmatmul.mubr.f32.gmra.mrb[0].mxu0 %v193
      %v469 = vpop.f32.mrb[0].mxu0
      %v470 = vadd.f32 %v264, %v469
      %v471 = vpop.f32.mrb[0].mxu0
      %472 = vmatprep.mubr.f32.mxu0 %v295
      %473 = vmatmul.mubr.f32.gmra.mrb[0].mxu0 %v195
      %v474 = vpop.f32.mrb[0].mxu0
      %v475 = vadd.f32 %v264, %v474
      %v476 = vpop.f32.mrb[0].mxu0
      %477 = vmatprep.mubr.f32.mxu0 %v298
      %478 = vmatmul.mubr.f32.gmra.mrb[0].mxu0 %v197
      %v479 = vpop.f32.mrb[0].mxu0
      %v480 = vadd.f32 %v264, %v479
      %v481 = vpop.f32.mrb[0].mxu0
      %482 = vmatprep.mubr.f32.mxu0 %v301
      %483 = vmatmul.mubr.f32.gmra.mrb[0].mxu0 %v199
      %v484 = vpop.f32.mrb[0].mxu0
      %v485 = vadd.f32 %v264, %v484
      %v486 = vpop.f32.mrb[0].mxu0
      %487 = vmatprep.mubr.f32.mxu0 %v304
      %488 = vmatmul.mubr.f32.gmra.mrb[0].mxu0 %v201
      %v489 = vpop.f32.mrb[0].mxu0
      %v490 = vadd.f32 %v264, %v489
      %v491 = vpop.f32.mrb[0].mxu0
      %492 = vmatprep.mubr.f32.mxu0 %v307
      %493 = vmatmul.mubr.f32.gmra.mrb[0].mxu0 %v203
      %v494 = vpop.f32.mrb[0].mxu0
      %v495 = vadd.f32 %v264, %v494
      %v496 = vpop.f32.mrb[0].mxu0
      %497 = vmatprep.mubr.f32.mxu0 %v310
      %498 = vmatmul.mubr.f32.gmra.mrb[0].mxu0 %v205
      %v499 = vpop.f32.mrb[0].mxu0
      %v500 = vadd.f32 %v264, %v499
      %v501 = vpop.f32.mrb[0].mxu0
      %502 = vmatprep.mubr.f32.mxu0 %v313
      %503 = vmatmul.mubr.f32.gmra.mrb[0].mxu0 %v207
      %v504 = vpop.f32.mrb[0].mxu0
      %v505 = vadd.f32 %v264, %v504
      %v506 = vpop.f32.mrb[0].mxu0
      %507 = vmatprep.mubr.f32.mxu0 %v316
      %508 = vmatmul.mubr.f32.gmra.mrb[0].mxu0 %v209
      %v509 = vpop.f32.mrb[0].mxu0
      %v510 = vadd.f32 %v264, %v509
      %v511 = vpop.f32.mrb[0].mxu0
      %512 = vmatprep.mubr.f32.mxu0 %v319
      %513 = vmatmul.mubr.f32.gmra.mrb[0].mxu0 %v211
      %v514 = vpop.f32.mrb[0].mxu0
      %v515 = vadd.f32 %v264, %v514
      %v516 = vpop.f32.mrb[0].mxu0
      %517 = vmatprep.mubr.f32.mxu0 %v322
      %518 = vmatmul.mubr.f32.gmra.mrb[0].mxu0 %v213
      %v519 = vpop.f32.mrb[0].mxu0
      %v520 = vadd.f32 %v264, %v519
      %v521 = vpop.f32.mrb[0].mxu0
      %522 = vmatprep.mubr.f32.mxu0 %v325
      %523 = vmatmul.mubr.f32.gmra.mrb[0].mxu0 %v215
      %v524 = vpop.f32.mrb[0].mxu0
      %v525 = vadd.f32 %v264, %v524
      %v526 = vpop.f32.mrb[0].mxu0
      %527 = vmatprep.mubr.f32.mxu0 %v328
      %528 = vmatmul.mubr.f32.gmra.mrb[0].mxu0 %v217
      %v529 = vpop.f32.mrb[0].mxu0
      %v530 = vadd.f32 %v264, %v529
      %v531 = vpop.f32.mrb[0].mxu0
      %532 = vmatprep.mubr.f32.mxu0 %v331
      %533 = vmatmul.mubr.f32.gmra.mrb[0].mxu0 %v219
      %v534 = vpop.f32.mrb[0].mxu0
      %v535 = vadd.f32 %v264, %v534
      %v536 = vpop.f32.mrb[0].mxu0
      %537 = vmatprep.mubr.f32.mxu0 %v334
      %538 = vmatmul.mubr.f32.gmra.mrb[0].mxu0 %v221
      %v539 = vpop.f32.mrb[0].mxu0
      %v540 = vadd.f32 %v264, %v539
      %v541 = vpop.f32.mrb[0].mxu0
      %542 = vmatprep.mubr.f32.mxu0 %v337
      %543 = vmatmul.mubr.f32.gmra.mrb[0].mxu0 %v223
      %v544 = vpop.f32.mrb[0].mxu0
      %v545 = vadd.f32 %v264, %v544
      %v546 = vpop.f32.mrb[0].mxu0
      %547 = vmatprep.mubr.f32.mxu0 %v340
      %548 = vmatmul.mubr.f32.gmra.mrb[0].mxu0 %v225
      %v549 = vpop.f32.mrb[0].mxu0
      %v550 = vadd.f32 %v264, %v549
      %v551 = vpop.f32.mrb[0].mxu0
      %552 = vmatprep.mubr.f32.mxu0 %v343
      %553 = vmatmul.mubr.f32.gmra.mrb[0].mxu0 %v227
      %v554 = vpop.f32.mrb[0].mxu0
      %v555 = vadd.f32 %v264, %v554
      %v556 = vpop.f32.mrb[0].mxu0
      %557 = vmatprep.mubr.f32.mxu0 %v346
      %558 = vmatmul.mubr.f32.gmra.mrb[0].mxu0 %v229
      %v559 = vpop.f32.mrb[0].mxu0
      %v560 = vadd.f32 %v264, %v559
      %v561 = vpop.f32.mrb[0].mxu0
      %562 = vmatprep.mubr.f32.mxu0 %v349
      %563 = vmatmul.mubr.f32.gmra.mrb[0].mxu0 %v231
      %v564 = vpop.f32.mrb[0].mxu0
      %v565 = vadd.f32 %v264, %v564
      %v566 = vpop.f32.mrb[0].mxu0
      %567 = vmatprep.mubr.f32.mxu0 %v352
      %568 = vmatmul.mubr.f32.gmra.mrb[0].mxu0 %v233
      %v569 = vpop.f32.mrb[0].mxu0
      %v570 = vadd.f32 %v264, %v569
      %v571 = vpop.f32.mrb[0].mxu0
      %572 = vmatprep.mubr.f32.mxu0 %v355
      %573 = vmatmul.mubr.f32.gmra.mrb[0].mxu0 %v235
      %v574 = vpop.f32.mrb[0].mxu0
      %v575 = vadd.f32 %v264, %v574
      %v576 = vpop.f32.mrb[0].mxu0
      %577 = vmatprep.mubr.f32.mxu0 %v358
      %578 = vmatmul.mubr.f32.gmra.mrb[0].mxu0 %v237
      %v579 = vpop.f32.mrb[0].mxu0
      %v580 = vadd.f32 %v264, %v579
      %v581 = vpop.f32.mrb[0].mxu0
      %582 = vmatprep.mubr.f32.mxu0 %v361
      %583 = vmatmul.mubr.f32.gmra.mrb[0].mxu0 %v239
      %v584 = vpop.f32.mrb[0].mxu0
      %v585 = vadd.f32 %v264, %v584
      %v586 = vpop.f32.mrb[0].mxu0
      %587 = vdwg.mxu0
      %v588 = vmul.f32 %v430, 0.2
      %v589 = vmul.f32 %v435, 0.2
      %v590 = vmul.f32 %v440, 0.2
      %v591 = vmul.f32 %v445, 0.2
      %v592 = vmul.f32 %v450, 0.2
      %v593 = vmul.f32 %v455, 0.2
      %v594 = vmul.f32 %v460, 0.2
      %v595 = vmul.f32 %v465, 0.2
      %v596 = vmul.f32 %v470, 0.2
      %v597 = vmul.f32 %v475, 0.2
      %v598 = vmul.f32 %v480, 0.2
      %v599 = vmul.f32 %v485, 0.2
      %v600 = vmul.f32 %v490, 0.2
      %v601 = vmul.f32 %v495, 0.2
      %v602 = vmul.f32 %v500, 0.2
      %v603 = vmul.f32 %v505, 0.2
      %v604 = vmul.f32 %v510, 0.2
      %v605 = vmul.f32 %v515, 0.2
      %v606 = vmul.f32 %v520, 0.2
      %v607 = vmul.f32 %v525, 0.2
      %v608 = vmul.f32 %v530, 0.2
      %v609 = vmul.f32 %v535, 0.2
      %v610 = vmul.f32 %v540, 0.2
      %v611 = vmul.f32 %v545, 0.2
      %v612 = vmul.f32 %v550, 0.2
      %v613 = vmul.f32 %v555, 0.2
      %v614 = vmul.f32 %v560, 0.2
      %v615 = vmul.f32 %v565, 0.2
      %v616 = vmul.f32 %v570, 0.2
      %v617 = vmul.f32 %v575, 0.2
      %v618 = vmul.f32 %v580, 0.2
      %v619 = vmul.f32 %v585, 0.2
      %v620 = vmax.f32 %v430, %v588
      %v621 = vmax.f32 %v435, %v589
      %v622 = vmax.f32 %v440, %v590
      %v623 = vmax.f32 %v445, %v591
      %v624 = vmax.f32 %v450, %v592
      %v625 = vmax.f32 %v455, %v593
      %v626 = vmax.f32 %v460, %v594
      %v627 = vmax.f32 %v465, %v595
      %v628 = vmax.f32 %v470, %v596
      %v629 = vmax.f32 %v475, %v597
      %v630 = vmax.f32 %v480, %v598
      %v631 = vmax.f32 %v485, %v599
      %v632 = vmax.f32 %v490, %v600
      %v633 = vmax.f32 %v495, %v601
      %v634 = vmax.f32 %v500, %v602
      %v635 = vmax.f32 %v505, %v603
      %v636 = vmax.f32 %v510, %v604
      %v637 = vmax.f32 %v515, %v605
      %v638 = vmax.f32 %v520, %v606
      %v639 = vmax.f32 %v525, %v607
      %v640 = vmax.f32 %v530, %v608
      %v641 = vmax.f32 %v535, %v609
      %v642 = vmax.f32 %v540, %v610
      %v643 = vmax.f32 %v545, %v611
      %v644 = vmax.f32 %v550, %v612
      %v645 = vmax.f32 %v555, %v613
      %v646 = vmax.f32 %v560, %v614
      %v647 = vmax.f32 %v565, %v615
      %v648 = vmax.f32 %v570, %v616
      %v649 = vmax.f32 %v575, %v617
      %v650 = vmax.f32 %v580, %v618
      %v651 = vmax.f32 %v585, %v619
      %vm652 = vcmask 261120
      %653 = vst.msk [vmem:[%s175] sm:$0xff] %vm652, %v620
      %654 = vst.msk [vmem:[%s175 + $0x8] sm:$0xff] %vm652, %v621
      %655 = vst.msk [vmem:[%s175 + $0x10] sm:$0xff] %vm652, %v622
      %656 = vst.msk [vmem:[%s175 + $0x18] sm:$0xff] %vm652, %v623
      %657 = vst.msk [vmem:[%s175 + $0x20] sm:$0xff] %vm652, %v624
      %658 = vst.msk [vmem:[%s175 + $0x28] sm:$0xff] %vm652, %v625
      %659 = vst.msk [vmem:[%s175 + $0x30] sm:$0xff] %vm652, %v626
      %660 = vst.msk [vmem:[%s175 + $0x38] sm:$0xff] %vm652, %v627
      %661 = vst.msk [vmem:[%s175 + $0x40] sm:$0xff] %vm652, %v628
      %662 = vst.msk [vmem:[%s175 + $0x48] sm:$0xff] %vm652, %v629
      %663 = vst.msk [vmem:[%s175 + $0x50] sm:$0xff] %vm652, %v630
      %664 = vst.msk [vmem:[%s175 + $0x58] sm:$0xff] %vm652, %v631
      %665 = vst.msk [vmem:[%s175 + $0x60] sm:$0xff] %vm652, %v632
      %666 = vst.msk [vmem:[%s175 + $0x68] sm:$0xff] %vm652, %v633
      %667 = vst.msk [vmem:[%s175 + $0x70] sm:$0xff] %vm652, %v634
      %668 = vst.msk [vmem:[%s175 + $0x78] sm:$0xff] %vm652, %v635
      %669 = vst.msk [vmem:[%s175 + $0x80] sm:$0xff] %vm652, %v636
      %670 = vst.msk [vmem:[%s175 + $0x88] sm:$0xff] %vm652, %v637
      %671 = vst.msk [vmem:[%s175 + $0x90] sm:$0xff] %vm652, %v638
      %672 = vst.msk [vmem:[%s175 + $0x98] sm:$0xff] %vm652, %v639
      %673 = vst.msk [vmem:[%s175 + $0xa0] sm:$0xff] %vm652, %v640
      %674 = vst.msk [vmem:[%s175 + $0xa8] sm:$0xff] %vm652, %v641
      %675 = vst.msk [vmem:[%s175 + $0xb0] sm:$0xff] %vm652, %v642
      %676 = vst.msk [vmem:[%s175 + $0xb8] sm:$0xff] %vm652, %v643
      %677 = vst.msk [vmem:[%s175 + $0xc0] sm:$0xff] %vm652, %v644
      %678 = vst.msk [vmem:[%s175 + $0xc8] sm:$0xff] %vm652, %v645
      %679 = vst.msk [vmem:[%s175 + $0xd0] sm:$0xff] %vm652, %v646
      %680 = vst.msk [vmem:[%s175 + $0xd8] sm:$0xff] %vm652, %v647
      %681 = vst.msk [vmem:[%s175 + $0xe0] sm:$0xff] %vm652, %v648
      %682 = vst.msk [vmem:[%s175 + $0xe8] sm:$0xff] %vm652, %v649
      %683 = vst.msk [vmem:[%s175 + $0xf0] sm:$0xff] %vm652, %v650
      %684 = vst.msk [vmem:[%s175 + $0xf8] sm:$0xff] %vm652, %v651
      %s685 = smul.u32 32, %s14
      %p686 = scmp.lt.s32.totalorder %s685, 63
      %s687 = scalar_select %p686, %s685, 63
      %s688 = smul.addr %s687, 8
      %s689 = scalar_lea.vmem %s3, %s688
      // Predicated region
      $region33: #{discriminator_forward.6} parent=31 // pred_check
        %p690 = pneg %p100
      $region34: #{discriminator_forward.6} parent=31 // pred_check_branch
        %692 = sbr.rel (%p690) target = $region36
      $region35: #{discriminator_forward.6} parent=31 // pred_region
        %s693 = smul.u32 32, %s14
      $region36: #{discriminator_forward.6} parent=31 // pred_fallthru
        _
    $region32: #{discriminator_forward.6} parent=5 // pred_fallthru
      _
    %p694 = scmp.le.s32.totalorder 2, %s9
    // Predicated region
    $region37: #{discriminator_forward.6} parent=5 // pred_check
      %p695 = pneg %p694
    $region38: #{discriminator_forward.6} parent=5 // pred_check_branch
      %697 = sbr.rel (%p695) target = $region40
    $region39: #{discriminator_forward.6} parent=5 // pred_region
      %s698 = ssub.s32 %s9, 2
      // Predicated region
      $region41: #{discriminator_forward.6} parent=39 // pred_check
        %p699 = pneg %p106
      $region42: #{discriminator_forward.6} parent=39 // pred_check_branch
        %701 = sbr.rel (%p699) target = $region44
      $region43: #{discriminator_forward.6} parent=39 // pred_region
        %s702 = smul.u32 32, %s15
        %p703 = scmp.lt.s32.totalorder %s702, 63
        %s704 = scalar_select %p703, %s702, 63
        %s705 = smul.addr %s704, 8
        %s706 = scalar_lea.vmem %s3, %s705
      $region44: #{discriminator_forward.6} parent=39 // pred_fallthru
        _
    $region40: #{discriminator_forward.6} parent=5 // pred_fallthru
      _
  $region6: #{discriminator_forward.6} parent=0 // loop_footer
    %s13 = sadd.s32 1, %s9
  $region7: #{discriminator_forward.6} parent=0 // loop_footer_branch
    %8 = sbr.rel target = $region3
  $region8: #{discriminator_forward.6} parent=0 // loop_exit
    _

// kernel: discriminator_forward.7
$region0: #{discriminator_forward.7}
  #allocation0 [shape = 'u32[]', space=smem, size = 0x4, offset = 0x4, fixed_abs, tag = 'smem constant byte address 0x4 - core index']
  #allocation1 [shape = 'u32[144,128]{1,0:T(1,128)}', space=vmem, size = 0x12000, scoped, tag = 'internal scratch']
  %s0 = inlined_call_operand.vmem [shape: f32[128,288], index: 0, kind: input, shape index: {}]
  %s1 = inlined_call_operand.vmem [shape: f32[288,64], index: 1, kind: input, shape index: {}]
  %s2 = inlined_call_operand.vmem [shape: f32[1,64], index: 2, kind: input, shape index: {}]
  %s3 = inlined_call_operand.vmem [shape: f32[128,64], index: 3, kind: output, shape index: {}]
  %s4 = sld [smem:[#allocation0]]
  $region45: #{discriminator_forward.7} parent=0
    _
  %s6 = ssub.s32 1, %s4
  %s7 = scalar_select 0, %s6, %s4
  loop: start=0, step=1, limit=4
  $region2: #{discriminator_forward.7} parent=0 // loop_pre_header
    _
  $region3: #{discriminator_forward.7} parent=0 // loop_header
    %s9 = sphi 0, %s13
    %p10 = scmp.ge.s32.totalorder %s9, 4
    %s19 = sphi 0, %s21
    %s22 = sphi 0, %s19
    %s23 = sphi 0, %s22
    %s39 = sphi 0, %s23
    %s43 = sphi 0, %s43
    %s45 = sphi 0, %s43
    %s46 = sphi 0, %s45
    %s60 = sphi 0, %s46
    %s64 = sphi 0, %s64
    %s66 = sphi 0, %s64
    %s67 = sphi 0, %s66
    %s81 = sphi 0, %s67
    %s87 = sphi 0, %s89
    %s90 = sphi 0, %s87
    %s91 = sphi 0, %s90
    %s107 = sphi 0, %s91
  $region4: #{discriminator_forward.7} parent=0 // loop_header_branch
    %12 = sbr.rel (%p10) target = $region8
  $region5: #{discriminator_forward.7} parent=0 // loop_body
    %s14 = ssub.s32 %s9, 1
    %s15 = ssub.s32 %s9, 2
    %s16 = sadd.s32 %s9, 1
    %s17 = ssub.s32 %s9, %s16
    %p18 = scmp.eq.s32.totalorder %s17, 0
    %s20 = sadd.s32 %s19, 1
    %s21 = scalar_select %p18, %s19, %s20
    %p24 = pneg %p18
    %p25 = scmp.eq.s32.totalorder %s9, 1
    %p26 = por %p24, %p25
    %p27 = scmp.ne.s32.totalorder %s19, %s22
    %p28 = scmp.eq.s32.totalorder %s9, 0
    %p29 = por %p27, %p28
    %p30 = scmp.ne.s32.totalorder %s19, %s22
    %p31 = scmp.eq.s32.totalorder %s14, 1
    %p32 = por %p30, %p31
    %p33 = scmp.ne.s32.totalorder %s22, %s23
    %p34 = scmp.eq.s32.totalorder %s14, 0
    %p35 = por %p33, %p34
    %p36 = scmp.ne.s32.totalorder %s22, %s23
    %p37 = scmp.eq.s32.totalorder %s15, 1
    %p38 = por %p36, %p37
    %p40 = scmp.ne.s32.totalorder %s23, %s39
    %p41 = scmp.eq.s32.totalorder %s15, 0
    %p42 = por %p40, %p41
    %s44 = sadd.s32 %s43, 1
    %p47 = scmp.eq.s32.totalorder %s9, 1
    %p48 = scmp.ne.s32.totalorder %s43, %s45
    %p49 = scmp.eq.s32.totalorder %s9, 0
    %p50 = por %p48, %p49
    %p51 = scmp.ne.s32.totalorder %s43, %s45
    %p52 = scmp.eq.s32.totalorder %s14, 1
    %p53 = por %p51, %p52
    %p54 = scmp.ne.s32.totalorder %s45, %s46
    %p55 = scmp.eq.s32.totalorder %s14, 0
    %p56 = por %p54, %p55
    %p57 = scmp.ne.s32.totalorder %s45, %s46
    %p58 = scmp.eq.s32.totalorder %s15, 1
    %p59 = por %p57, %p58
    %p61 = scmp.ne.s32.totalorder %s46, %s60
    %p62 = scmp.eq.s32.totalorder %s15, 0
    %p63 = por %p61, %p62
    %s65 = sadd.s32 %s64, 1
    %p68 = scmp.eq.s32.totalorder %s9, 1
    %p69 = scmp.ne.s32.totalorder %s64, %s66
    %p70 = scmp.eq.s32.totalorder %s9, 0
    %p71 = por %p69, %p70
    %p72 = scmp.ne.s32.totalorder %s64, %s66
    %p73 = scmp.eq.s32.totalorder %s14, 1
    %p74 = por %p72, %p73
    %p75 = scmp.ne.s32.totalorder %s66, %s67
    %p76 = scmp.eq.s32.totalorder %s14, 0
    %p77 = por %p75, %p76
    %p78 = scmp.ne.s32.totalorder %s66, %s67
    %p79 = scmp.eq.s32.totalorder %s15, 1
    %p80 = por %p78, %p79
    %p82 = scmp.ne.s32.totalorder %s67, %s81
    %p83 = scmp.eq.s32.totalorder %s15, 0
    %p84 = por %p82, %p83
    %s85 = ssub.s32 %s9, %s16
    %p86 = scmp.eq.s32.totalorder %s85, 0
    %s88 = sadd.s32 %s87, 1
    %s89 = scalar_select %p86, %s87, %s88
    %p92 = pneg %p86
    %p93 = scmp.eq.s32.totalorder %s9, 1
    %p94 = por %p92, %p93
    %p95 = scmp.ne.s32.totalorder %s87, %s90
    %p96 = scmp.eq.s32.totalorder %s9, 0
    %p97 = por %p95, %p96
    %p98 = scmp.ne.s32.totalorder %s87, %s90
    %p99 = scmp.eq.s32.totalorder %s14, 1
    %p100 = por %p98, %p99
    %p101 = scmp.ne.s32.totalorder %s90, %s91
    %p102 = scmp.eq.s32.totalorder %s14, 0
    %p103 = por %p101, %p102
    %p104 = scmp.ne.s32.totalorder %s90, %s91
    %p105 = scmp.eq.s32.totalorder %s15, 1
    %p106 = por %p104, %p105
    %p108 = scmp.ne.s32.totalorder %s91, %s107
    %p109 = scmp.eq.s32.totalorder %s15, 0
    %p110 = por %p108, %p109
    %p111 = scmp.le.s32.totalorder 1, %s9
    %p112 = scmp.lt.s32.totalorder %s9, 3
    %p113 = pnand %p111, %p112
    %p114 = pneg %p113
    // Predicated region
    $region9: #{discriminator_forward.7} parent=5 // pred_check
      _
    $region10: #{discriminator_forward.7} parent=5 // pred_check_branch
      %116 = sbr.rel (%p113) target = $region12
    $region11: #{discriminator_forward.7} parent=5 // pred_region
      %s117 = ssub.s32 %s9, 1
      // Predicated region
      $region13: #{discriminator_forward.7} parent=11 // pred_check
        %p118 = pneg %p56
      $region14: #{discriminator_forward.7} parent=11 // pred_check_branch
        %120 = sbr.rel (%p118) target = $region16
      $region15: #{discriminator_forward.7} parent=11 // pred_region
        _
      $region16: #{discriminator_forward.7} parent=11 // pred_fallthru
        _
      // Predicated region
      $region17: #{discriminator_forward.7} parent=11 // pred_check
        %p121 = pneg %p77
      $region18: #{discriminator_forward.7} parent=11 // pred_check_branch
        %123 = sbr.rel (%p121) target = $region20
      $region19: #{discriminator_forward.7} parent=11 // pred_region
        _
      $region20: #{discriminator_forward.7} parent=11 // pred_fallthru
        _
    $region12: #{discriminator_forward.7} parent=5 // pred_fallthru
      _
    %p124 = scmp.lt.s32.totalorder %s9, 2
    // Predicated region
    $region21: #{discriminator_forward.7} parent=5 // pred_check
      %p125 = pneg %p124
    $region22: #{discriminator_forward.7} parent=5 // pred_check_branch
      %127 = sbr.rel (%p125) target = $region24
    $region23: #{discriminator_forward.7} parent=5 // pred_region
      // Predicated region
      $region25: #{discriminator_forward.7} parent=23 // pred_check
        %p128 = pneg %p29
      $region26: #{discriminator_forward.7} parent=23 // pred_check_branch
        %130 = sbr.rel (%p128) target = $region28
      $region27: #{discriminator_forward.7} parent=23 // pred_region
        %s131 = smul.u32 8, %s9
        %p132 = scmp.lt.s32.totalorder %s131, 15
        %s133 = scalar_select %p132, %s131, 15
        %s134 = smul.addr %s133, 3
        %s135 = smul.addr %s134, 8
        %s136 = scalar_lea.vmem %s0, %s135
        %s137 = smul.u32 8, %s9
      $region28: #{discriminator_forward.7} parent=23 // pred_fallthru
        _
    $region24: #{discriminator_forward.7} parent=5 // pred_fallthru
      _
    %p138 = scmp.le.s32.totalorder 1, %s9
    %p139 = scmp.lt.s32.totalorder %s9, 3
    %p140 = pnand %p138, %p139
    %p141 = pneg %p140
    // Predicated region
    $region29: #{discriminator_forward.7} parent=5 // pred_check
      _
    $region30: #{discriminator_forward.7} parent=5 // pred_check_branch
      %143 = sbr.rel (%p140) target = $region32
    $region31: #{discriminator_forward.7} parent=5 // pred_region
      %s144 = ssub.s32 %s9, 1
      %s145 = smul.u32 8, %s14
      %p146 = scmp.lt.s32.totalorder %s145, 15
      %s147 = scalar_select %p146, %s145, 15
      %s148 = smul.addr %s147, 3
      %s149 = smul.addr %s148, 8
      %s150 = scalar_lea.vmem %s0, %s149
      %p151 = pneg %p35
      %p152 = pneg %p32
      %p153 = pneg %p56
      %p154 = pneg %p53
      %p155 = pneg %p77
      %p156 = pneg %p74
      %p157 = pneg %p103
      %p158 = pneg %p100
      %s159 = smul.u32 8, %s14
      %p160 = scmp.lt.s32.totalorder %s159, 15
      %s161 = scalar_select %p160, %s159, 15
      %s162 = smul.addr %s161, 8
      %s163 = scalar_lea.vmem %s3, %s162
      %s164 = smul.u32 8, %s14
      %p165 = scmp.lt.s32.totalorder %s164, 15
      %s166 = scalar_select %p165, %s164, 15
      %s167 = smul.addr %s166, 3
      %s168 = smul.addr %s167, 8
      %s169 = scalar_lea.vmem %s0, %s168
      %s170 = smul.u32 8, %s14
      %s171 = smul.u32 8, %s14
      %p172 = scmp.lt.s32.totalorder %s171, 15
      %s173 = scalar_select %p172, %s171, 15
      %s174 = smul.addr %s173, 8
      %s175 = scalar_lea.vmem %s3, %s174
      %s176 = smul.u32 8, %s14
      %v177 = vld [vmem:[%s169] sm:$0xff]
      %v178 = vld [vmem:[%s169 + $0x8] sm:$0xff]
      %v179 = vld [vmem:[%s169 + $0x10] sm:$0xff]
      %v180 = vld [vmem:[%s169 + $0x18] sm:$0xff]
      %v181 = vld [vmem:[%s169 + $0x20] sm:$0xff]
      %v182 = vld [vmem:[%s169 + $0x28] sm:$0xff]
      %v183 = vld [vmem:[%s169 + $0x30] sm:$0xff]
      %v184 = vld [vmem:[%s169 + $0x38] sm:$0xff]
      %v185 = vld [vmem:[%s169 + $0x40] sm:$0xff]
      %v186 = vld [vmem:[%s169 + $0x48] sm:$0xff]
      %v187 = vld [vmem:[%s169 + $0x50] sm:$0xff]
      %v188 = vld [vmem:[%s169 + $0x58] sm:$0xff]
      %v189 = vld [vmem:[%s169 + $0x60] sm:$0xff]
      %v190 = vld [vmem:[%s169 + $0x68] sm:$0xff]
      %v191 = vld [vmem:[%s169 + $0x70] sm:$0xff]
      %v192 = vld [vmem:[%s169 + $0x78] sm:$0xff]
      %v193 = vld [vmem:[%s169 + $0x80] sm:$0xff]
      %v194 = vld [vmem:[%s169 + $0x88] sm:$0xff]
      %v195 = vld [vmem:[%s169 + $0x90] sm:$0xff]
      %v196 = vld [vmem:[%s169 + $0x98] sm:$0xff]
      %v197 = vld [vmem:[%s169 + $0xa0] sm:$0xff]
      %v198 = vld [vmem:[%s169 + $0xa8] sm:$0xff]
      %v199 = vld [vmem:[%s169 + $0xb0] sm:$0xff]
      %v200 = vld [vmem:[%s169 + $0xb8] sm:$0xff]
      %v201 = vld [vmem:[%s1] sm:$0xff]
      %v202 = vld [vmem:[%s1 + $0x8] sm:$0xff]
      %v203 = vld [vmem:[%s1 + $0x10] sm:$0xff]
      %v204 = vld [vmem:[%s1 + $0x18] sm:$0xff]
      %v205 = vld [vmem:[%s1 + $0x20] sm:$0xff]
      %v206 = vld [vmem:[%s1 + $0x28] sm:$0xff]
      %v207 = vld [vmem:[%s1 + $0x30] sm:$0xff]
      %v208 = vld [vmem:[%s1 + $0x38] sm:$0xff]
      %v209 = vld [vmem:[%s1 + $0x40] sm:$0xff]
      %v210 = vld [vmem:[%s1 + $0x48] sm:$0xff]
      %v211 = vld [vmem:[%s1 + $0x50] sm:$0xff]
      %v212 = vld [vmem:[%s1 + $0x58] sm:$0xff]
      %v213 = vld [vmem:[%s1 + $0x60] sm:$0xff]
      %v214 = vld [vmem:[%s1 + $0x68] sm:$0xff]
      %v215 = vld [vmem:[%s1 + $0x70] sm:$0xff]
      %v216 = vld [vmem:[%s1 + $0x78] sm:$0xff]
      %v217 = vld [vmem:[%s1 + $0x80] sm:$0xff]
      %v218 = vld [vmem:[%s1 + $0x88] sm:$0xff]
      %v219 = vld [vmem:[%s1 + $0x90] sm:$0xff]
      %v220 = vld [vmem:[%s1 + $0x98] sm:$0xff]
      %v221 = vld [vmem:[%s1 + $0xa0] sm:$0xff]
      %v222 = vld [vmem:[%s1 + $0xa8] sm:$0xff]
      %v223 = vld [vmem:[%s1 + $0xb0] sm:$0xff]
      %v224 = vld [vmem:[%s1 + $0xb8] sm:$0xff]
      %v225 = vld [vmem:[%s1 + $0xc0] sm:$0xff]
      %v226 = vld [vmem:[%s1 + $0xc8] sm:$0xff]
      %v227 = vld [vmem:[%s1 + $0xd0] sm:$0xff]
      %v228 = vld [vmem:[%s1 + $0xd8] sm:$0xff]
      %v229 = vld [vmem:[%s1 + $0xe0] sm:$0xff]
      %v230 = vld [vmem:[%s1 + $0xe8] sm:$0xff]
      %v231 = vld [vmem:[%s1 + $0xf0] sm:$0xff]
      %v232 = vld [vmem:[%s1 + $0xf8] sm:$0xff]
      %v233 = vld [vmem:[%s1 + $0x100] sm:$0xff]
      %v234 = vld [vmem:[%s1 + $0x108] sm:$0xff]
      %v235 = vld [vmem:[%s1 + $0x110] sm:$0xff]
      %v236 = vld [vmem:[%s1 + $0x118] sm:$0xff]
      %v237 = vld [vmem:[%s2] sm:$0x1]
      %v239 = vlaneseq
      %v240 = vshrl.u32 %v239, 7
      %v241 = vsub.s32 0, %v240
      %v242 = vrot.slane %v237, %v241
      %vm244 = vcmask 261120
      %v246 = vsel %vm244, %v179, 0
      %v249 = vsel %vm244, %v182, 0
      %v252 = vsel %vm244, %v185, 0
      %v255 = vsel %vm244, %v188, 0
      %v258 = vsel %vm244, %v191, 0
      %v261 = vsel %vm244, %v194, 0
      %v264 = vsel %vm244, %v197, 0
      %v267 = vsel %vm244, %v200, 0
      %269 = vmatprep.subr.mxu0 0.0
      %270 = vmatpush1.msra.mxu0 %v201
      %271 = vmatprep.subr.mxu0 0.0
      %272 = vmatpush1.msra.mxu0 %v202
      %273 = vmatprep.subr.mxu0 0.0
      %274 = vmatpush1.msra.mxu0 %v203
      %275 = vmatprep.subr.mxu0 0.0
      %276 = vmatpush1.msra.mxu0 %v204
      %277 = vmatprep.subr.mxu0 0.0
      %278 = vmatpush1.msra.mxu0 %v205
      %279 = vmatprep.subr.mxu0 0.0
      %280 = vmatpush1.msra.mxu0 %v206
      %281 = vmatprep.subr.mxu0 0.0
      %282 = vmatpush1.msra.mxu0 %v207
      %283 = vmatprep.subr.mxu0 0.0
      %284 = vmatpush1.msra.mxu0 %v208
      %285 = vmatprep.subr.mxu0 0.0
      %286 = vmatpush1.msra.mxu0 %v209
      %287 = vmatprep.subr.mxu0 0.0
      %288 = vmatpush1.msra.mxu0 %v210
      %289 = vmatprep.subr.mxu0 0.0
      %290 = vmatpush1.msra.mxu0 %v211
      %291 = vmatprep.subr.mxu0 0.0
      %292 = vmatpush1.msra.mxu0 %v212
      %293 = vmatprep.subr.mxu0 0.0
      %294 = vmatpush1.msra.mxu0 %v213
      %295 = vmatprep.subr.mxu0 0.0
      %296 = vmatpush1.msra.mxu0 %v214
      %297 = vmatprep.subr.mxu0 0.0
      %298 = vmatpush1.msra.mxu0 %v215
      %299 = vmatprep.subr.mxu0 0.0
      %300 = vmatpush1.msra.mxu0 %v216
      %301 = vmatprep.subr.mxu0 0.0
      %302 = vmatpush1.msra.mxu0 %v217
      %303 = vmatprep.subr.mxu0 0.0
      %304 = vmatpush1.msra.mxu0 %v218
      %305 = vmatprep.subr.mxu0 0.0
      %306 = vmatpush1.msra.mxu0 %v219
      %307 = vmatprep.subr.mxu0 0.0
      %308 = vmatpush1.msra.mxu0 %v220
      %309 = vmatprep.subr.mxu0 0.0
      %310 = vmatpush1.msra.mxu0 %v221
      %311 = vmatprep.subr.mxu0 0.0
      %312 = vmatpush1.msra.mxu0 %v222
      %313 = vmatprep.subr.mxu0 0.0
      %314 = vmatpush1.msra.mxu0 %v223
      %315 = vmatprep.subr.mxu0 0.0
      %316 = vmatpush1.msra.mxu0 %v224
      %317 = vmatprep.subr.mxu0 0.0
      %318 = vmatpush1.msra.mxu0 %v225
      %319 = vmatprep.subr.mxu0 0.0
      %320 = vmatpush1.msra.mxu0 %v226
      %321 = vmatprep.subr.mxu0 0.0
      %322 = vmatpush1.msra.mxu0 %v227
      %323 = vmatprep.subr.mxu0 0.0
      %324 = vmatpush1.msra.mxu0 %v228
      %325 = vmatprep.subr.mxu0 0.0
      %326 = vmatpush1.msra.mxu0 %v229
      %327 = vmatprep.subr.mxu0 0.0
      %328 = vmatpush1.msra.mxu0 %v230
      %329 = vmatprep.subr.mxu0 0.0
      %330 = vmatpush1.msra.mxu0 %v231
      %331 = vmatprep.subr.mxu0 0.0
      %332 = vmatpush1.msra.mxu0 %v232
      %333 = vmatprep.mubr.f32.mxu0 %v178
      %334 = vmatmul.mubr.f32.gmra.mrb[0].mxu0 %v177
      %v335 = vpop.f32.mrb[0].mxu0
      %v336 = vadd.f32 %v242, %v335
      %v337 = vpop.f32.mrb[0].mxu0
      %338 = vmatprep.mubr.f32.mxu0 %v181
      %339 = vmatmul.mubr.f32.gmra.mrb[0].mxu0 %v180
      %v340 = vpop.f32.mrb[0].mxu0
      %v341 = vadd.f32 %v242, %v340
      %v342 = vpop.f32.mrb[0].mxu0
      %343 = vmatprep.mubr.f32.mxu0 %v184
      %344 = vmatmul.mubr.f32.gmra.mrb[0].mxu0 %v183
      %v345 = vpop.f32.mrb[0].mxu0
      %v346 = vadd.f32 %v242, %v345
      %v347 = vpop.f32.mrb[0].mxu0
      %348 = vmatprep.mubr.f32.mxu0 %v187
      %349 = vmatmul.mubr.f32.gmra.mrb[0].mxu0 %v186
      %v350 = vpop.f32.mrb[0].mxu0
      %v351 = vadd.f32 %v242, %v350
      %v352 = vpop.f32.mrb[0].mxu0
      %353 = vmatprep.mubr.f32.mxu0 %v190
      %354 = vmatmul.mubr.f32.gmra.mrb[0].mxu0 %v189
      %v355 = vpop.f32.mrb[0].mxu0
      %v356 = vadd.f32 %v242, %v355
      %v357 = vpop.f32.mrb[0].mxu0
      %358 = vmatprep.mubr.f32.mxu0 %v193
      %359 = vmatmul.mubr.f32.gmra.mrb[0].mxu0 %v192
      %v360 = vpop.f32.mrb[0].mxu0
      %v361 = vadd.f32 %v242, %v360
      %v362 = vpop.f32.mrb[0].mxu0
      %363 = vmatprep.mubr.f32.mxu0 %v196
      %364 = vmatmul.mubr.f32.gmra.mrb[0].mxu0 %v195
      %v365 = vpop.f32.mrb[0].mxu0
      %v366 = vadd.f32 %v242, %v365
      %v367 = vpop.f32.mrb[0].mxu0
      %368 = vmatprep.mubr.f32.mxu0 %v199
      %369 = vmatmul.mubr.f32.gmra.mrb[0].mxu0 %v198
      %v370 = vpop.f32.mrb[0].mxu0
      %v371 = vadd.f32 %v242, %v370
      %v372 = vpop.f32.mrb[0].mxu0
      %373 = vdwg.mxu0
      %374 = vmatprep.subr.mxu0 0.0
      %375 = vmatpush1.msra.mxu0 %v233
      %376 = vmatprep.subr.mxu0 0.0
      %377 = vmatpush1.msra.mxu0 %v234
      %378 = vmatprep.subr.mxu0 0.0
      %379 = vmatpush1.msra.mxu0 %v235
      %380 = vmatprep.subr.mxu0 0.0
      %381 = vmatpush1.msra.mxu0 %v236
      %382 = vmatprep.subr.mxu0 0.0
      %383 = vmatpush1.msra.mxu0 0.0
      %384 = vmatprep.subr.mxu0 0.0
      %385 = vmatpush1.msra.mxu0 0.0
      %386 = vmatprep.subr.mxu0 0.0
      %387 = vmatpush1.msra.mxu0 0.0
      %388 = vmatprep.subr.mxu0 0.0
      %389 = vmatpush1.msra.mxu0 0.0
      %390 = vmatprep.subr.mxu0 0.0
      %391 = vmatpush1.msra.mxu0 0.0
      %392 = vmatprep.subr.mxu0 0.0
      %393 = vmatpush1.msra.mxu0 0.0
      %394 = vmatprep.subr.mxu0 0.0
      %395 = vmatpush1.msra.mxu0 0.0
      %396 = vmatprep.subr.mxu0 0.0
      %397 = vmatpush1.msra.mxu0 0.0
      %398 = vmatprep.subr.mxu0 0.0
      %399 = vmatpush1.msra.mxu0 0.0
      %400 = vmatprep.subr.mxu0 0.0
      %401 = vmatpush1.msra.mxu0 0.0
      %402 = vmatprep.subr.mxu0 0.0
      %403 = vmatpush1.msra.mxu0 0.0
      %404 = vmatprep.subr.mxu0 0.0
      %405 = vmatpush1.msra.mxu0 0.0
      %406 = vmatprep.subr.mxu0 0.0
      %407 = vmatpush1.msra.mxu0 0.0
      %408 = vmatprep.subr.mxu0 0.0
      %409 = vmatpush1.msra.mxu0 0.0
      %410 = vmatprep.subr.mxu0 0.0
      %411 = vmatpush1.msra.mxu0 0.0
      %412 = vmatprep.subr.mxu0 0.0
      %413 = vmatpush1.msra.mxu0 0.0
      %414 = vmatprep.subr.mxu0 0.0
      %415 = vmatpush1.msra.mxu0 0.0
      %416 = vmatprep.subr.mxu0 0.0
      %417 = vmatpush1.msra.mxu0 0.0
      %418 = vmatprep.subr.mxu0 0.0
      %419 = vmatpush1.msra.mxu0 0.0
      %420 = vmatprep.subr.mxu0 0.0
      %421 = vmatpush1.msra.mxu0 0.0
      %422 = vmatprep.subr.mxu0 0.0
      %423 = vmatpush1.msra.mxu0 0.0
      %424 = vmatprep.subr.mxu0 0.0
      %425 = vmatpush1.msra.mxu0 0.0
      %426 = vmatprep.subr.mxu0 0.0
      %427 = vmatpush1.msra.mxu0 0.0
      %428 = vmatprep.subr.mxu0 0.0
      %429 = vmatpush1.msra.mxu0 0.0
      %430 = vmatprep.subr.mxu0 0.0
      %431 = vmatpush1.msra.mxu0 0.0
      %432 = vmatprep.subr.mxu0 0.0
      %433 = vmatpush1.msra.mxu0 0.0
      %434 = vmatprep.subr.mxu0 0.0
      %435 = vmatpush1.msra.mxu0 0.0
      %436 = vmatprep.subr.mxu0 0.0
      %437 = vmatpush1.msra.mxu0 0.0
      %438 = vmatprep.mubr.f32.mxu0 0.0
      %439 = vmatmul.mubr.f32.gmra.mrb[0].mxu0 %v246
      %v440 = vpop.f32.mrb[0].mxu0
      %v441 = vadd.f32 %v336, %v440
      %v442 = vpop.f32.mrb[0].mxu0
      %443 = vmatprep.mubr.f32.mxu0 0.0
      %444 = vmatmul.mubr.f32.gmra.mrb[0].mxu0 %v249
      %v445 = vpop.f32.mrb[0].mxu0
      %v446 = vadd.f32 %v341, %v445
      %v447 = vpop.f32.mrb[0].mxu0
      %448 = vmatprep.mubr.f32.mxu0 0.0
      %449 = vmatmul.mubr.f32.gmra.mrb[0].mxu0 %v252
      %v450 = vpop.f32.mrb[0].mxu0
      %v451 = vadd.f32 %v346, %v450
      %v452 = vpop.f32.mrb[0].mxu0
      %453 = vmatprep.mubr.f32.mxu0 0.0
      %454 = vmatmul.mubr.f32.gmra.mrb[0].mxu0 %v255
      %v455 = vpop.f32.mrb[0].mxu0
      %v456 = vadd.f32 %v351, %v455
      %v457 = vpop.f32.mrb[0].mxu0
      %458 = vmatprep.mubr.f32.mxu0 0.0
      %459 = vmatmul.mubr.f32.gmra.mrb[0].mxu0 %v258
      %v460 = vpop.f32.mrb[0].mxu0
      %v461 = vadd.f32 %v356, %v460
      %v462 = vpop.f32.mrb[0].mxu0
      %463 = vmatprep.mubr.f32.mxu0 0.0
      %464 = vmatmul.mubr.f32.gmra.mrb[0].mxu0 %v261
      %v465 = vpop.f32.mrb[0].mxu0
      %v466 = vadd.f32 %v361, %v465
      %v467 = vpop.f32.mrb[0].mxu0
      %468 = vmatprep.mubr.f32.mxu0 0.0
      %469 = vmatmul.mubr.f32.gmra.mrb[0].mxu0 %v264
      %v470 = vpop.f32.mrb[0].mxu0
      %v471 = vadd.f32 %v366, %v470
      %v472 = vpop.f32.mrb[0].mxu0
      %473 = vmatprep.mubr.f32.mxu0 0.0
      %474 = vmatmul.mubr.f32.gmra.mrb[0].mxu0 %v267
      %v475 = vpop.f32.mrb[0].mxu0
      %v476 = vadd.f32 %v371, %v475
      %v477 = vpop.f32.mrb[0].mxu0
      %478 = vdwg.mxu0
      %v479 = vmul.f32 %v441, 0.2
      %v480 = vmul.f32 %v446, 0.2
      %v481 = vmul.f32 %v451, 0.2
      %v482 = vmul.f32 %v456, 0.2
      %v483 = vmul.f32 %v461, 0.2
      %v484 = vmul.f32 %v466, 0.2
      %v485 = vmul.f32 %v471, 0.2
      %v486 = vmul.f32 %v476, 0.2
      %v487 = vmax.f32 %v441, %v479
      %v488 = vmax.f32 %v446, %v480
      %v489 = vmax.f32 %v451, %v481
      %v490 = vmax.f32 %v456, %v482
      %v491 = vmax.f32 %v461, %v483
      %v492 = vmax.f32 %v466, %v484
      %v493 = vmax.f32 %v471, %v485
      %v494 = vmax.f32 %v476, %v486
      %vm495 = vcmask 523264
      %496 = vst.msk [vmem:[%s175] sm:$0xff] %vm495, %v487
      %497 = vst.msk [vmem:[%s175 + $0x8] sm:$0xff] %vm495, %v488
      %498 = vst.msk [vmem:[%s175 + $0x10] sm:$0xff] %vm495, %v489
      %499 = vst.msk [vmem:[%s175 + $0x18] sm:$0xff] %vm495, %v490
      %500 = vst.msk [vmem:[%s175 + $0x20] sm:$0xff] %vm495, %v491
      %501 = vst.msk [vmem:[%s175 + $0x28] sm:$0xff] %vm495, %v492
      %502 = vst.msk [vmem:[%s175 + $0x30] sm:$0xff] %vm495, %v493
      %503 = vst.msk [vmem:[%s175 + $0x38] sm:$0xff] %vm495, %v494
      %s504 = smul.u32 8, %s14
      %p505 = scmp.lt.s32.totalorder %s504, 15
      %s506 = scalar_select %p505, %s504, 15
      %s507 = smul.addr %s506, 8
      %s508 = scalar_lea.vmem %s3, %s507
      // Predicated region
      $region33: #{discriminator_forward.7} parent=31 // pred_check
        %p509 = pneg %p100
      $region34: #{discriminator_forward.7} parent=31 // pred_check_branch
        %511 = sbr.rel (%p509) target = $region36
      $region35: #{discriminator_forward.7} parent=31 // pred_region
        %s512 = smul.u32 8, %s14
      $region36: #{discriminator_forward.7} parent=31 // pred_fallthru
        _
    $region32: #{discriminator_forward.7} parent=5 // pred_fallthru
      _
    %p513 = scmp.le.s32.totalorder 2, %s9
    // Predicated region
    $region37: #{discriminator_forward.7} parent=5 // pred_check
      %p514 = pneg %p513
    $region38: #{discriminator_forward.7} parent=5 // pred_check_branch
      %516 = sbr.rel (%p514) target = $region40
    $region39: #{discriminator_forward.7} parent=5 // pred_region
      %s517 = ssub.s32 %s9, 2
      // Predicated region
      $region41: #{discriminator_forward.7} parent=39 // pred_check
        %p518 = pneg %p106
      $region42: #{discriminator_forward.7} parent=39 // pred_check_branch
        %520 = sbr.rel (%p518) target = $region44
      $region43: #{discriminator_forward.7} parent=39 // pred_region
        %s521 = smul.u32 8, %s15
        %p522 = scmp.lt.s32.totalorder %s521, 15
        %s523 = scalar_select %p522, %s521, 15
        %s524 = smul.addr %s523, 8
        %s525 = scalar_lea.vmem %s3, %s524
      $region44: #{discriminator_forward.7} parent=39 // pred_fallthru
        _
    $region40: #{discriminator_forward.7} parent=5 // pred_fallthru
      _
  $region6: #{discriminator_forward.7} parent=0 // loop_footer
    %s13 = sadd.s32 1, %s9
  $region7: #{discriminator_forward.7} parent=0 // loop_footer_branch
    %8 = sbr.rel target = $region3
  $region8: #{discriminator_forward.7} parent=0 // loop_exit
    _

// kernel: discriminator_forward.8
$region0: #{discriminator_forward.8}
  #allocation0 [shape = 'u32[]', space=smem, size = 0x4, offset = 0x4, fixed_abs, tag = 'smem constant byte address 0x4 - core index']
  #allocation1 [shape = 'u32[144,128]{1,0:T(1,128)}', space=vmem, size = 0x12000, scoped, tag = 'internal scratch']
  %s0 = inlined_call_operand.vmem [shape: f32[32,576], index: 0, kind: input, shape index: {}]
  %s1 = inlined_call_operand.vmem [shape: f32[576,128], index: 1, kind: input, shape index: {}]
  %s2 = inlined_call_operand.vmem [shape: f32[1,128], index: 2, kind: input, shape index: {}]
  %s3 = inlined_call_operand.vmem [shape: f32[32,128], index: 3, kind: output, shape index: {}]
  %s4 = sld [smem:[#allocation0]]
  $region45: #{discriminator_forward.8} parent=0
    _
  %s6 = ssub.s32 1, %s4
  %s7 = scalar_select 0, %s6, %s4
  loop: start=0, step=1, limit=4
  $region2: #{discriminator_forward.8} parent=0 // loop_pre_header
    _
  $region3: #{discriminator_forward.8} parent=0 // loop_header
    %s9 = sphi 0, %s13
    %p10 = scmp.ge.s32.totalorder %s9, 4
    %s19 = sphi 0, %s21
    %s22 = sphi 0, %s19
    %s23 = sphi 0, %s22
    %s39 = sphi 0, %s23
    %s43 = sphi 0, %s43
    %s45 = sphi 0, %s43
    %s46 = sphi 0, %s45
    %s60 = sphi 0, %s46
    %s64 = sphi 0, %s64
    %s66 = sphi 0, %s64
    %s67 = sphi 0, %s66
    %s81 = sphi 0, %s67
    %s87 = sphi 0, %s89
    %s90 = sphi 0, %s87
    %s91 = sphi 0, %s90
    %s107 = sphi 0, %s91
  $region4: #{discriminator_forward.8} parent=0 // loop_header_branch
    %12 = sbr.rel (%p10) target = $region8
  $region5: #{discriminator_forward.8} parent=0 // loop_body
    %s14 = ssub.s32 %s9, 1
    %s15 = ssub.s32 %s9, 2
    %s16 = sadd.s32 %s9, 1
    %s17 = ssub.s32 %s9, %s16
    %p18 = scmp.eq.s32.totalorder %s17, 0
    %s20 = sadd.s32 %s19, 1
    %s21 = scalar_select %p18, %s19, %s20
    %p24 = pneg %p18
    %p25 = scmp.eq.s32.totalorder %s9, 1
    %p26 = por %p24, %p25
    %p27 = scmp.ne.s32.totalorder %s19, %s22
    %p28 = scmp.eq.s32.totalorder %s9, 0
    %p29 = por %p27, %p28
    %p30 = scmp.ne.s32.totalorder %s19, %s22
    %p31 = scmp.eq.s32.totalorder %s14, 1
    %p32 = por %p30, %p31
    %p33 = scmp.ne.s32.totalorder %s22, %s23
    %p34 = scmp.eq.s32.totalorder %s14, 0
    %p35 = por %p33, %p34
    %p36 = scmp.ne.s32.totalorder %s22, %s23
    %p37 = scmp.eq.s32.totalorder %s15, 1
    %p38 = por %p36, %p37
    %p40 = scmp.ne.s32.totalorder %s23, %s39
    %p41 = scmp.eq.s32.totalorder %s15, 0
    %p42 = por %p40, %p41
    %s44 = sadd.s32 %s43, 1
    %p47 = scmp.eq.s32.totalorder %s9, 1
    %p48 = scmp.ne.s32.totalorder %s43, %s45
    %p49 = scmp.eq.s32.totalorder %s9, 0
    %p50 = por %p48, %p49
    %p51 = scmp.ne.s32.totalorder %s43, %s45
    %p52 = scmp.eq.s32.totalorder %s14, 1
    %p53 = por %p51, %p52
    %p54 = scmp.ne.s32.totalorder %s45, %s46
    %p55 = scmp.eq.s32.totalorder %s14, 0
    %p56 = por %p54, %p55
    %p57 = scmp.ne.s32.totalorder %s45, %s46
    %p58 = scmp.eq.s32.totalorder %s15, 1
    %p59 = por %p57, %p58
    %p61 = scmp.ne.s32.totalorder %s46, %s60
    %p62 = scmp.eq.s32.totalorder %s15, 0
    %p63 = por %p61, %p62
    %s65 = sadd.s32 %s64, 1
    %p68 = scmp.eq.s32.totalorder %s9, 1
    %p69 = scmp.ne.s32.totalorder %s64, %s66
    %p70 = scmp.eq.s32.totalorder %s9, 0
    %p71 = por %p69, %p70
    %p72 = scmp.ne.s32.totalorder %s64, %s66
    %p73 = scmp.eq.s32.totalorder %s14, 1
    %p74 = por %p72, %p73
    %p75 = scmp.ne.s32.totalorder %s66, %s67
    %p76 = scmp.eq.s32.totalorder %s14, 0
    %p77 = por %p75, %p76
    %p78 = scmp.ne.s32.totalorder %s66, %s67
    %p79 = scmp.eq.s32.totalorder %s15, 1
    %p80 = por %p78, %p79
    %p82 = scmp.ne.s32.totalorder %s67, %s81
    %p83 = scmp.eq.s32.totalorder %s15, 0
    %p84 = por %p82, %p83
    %s85 = ssub.s32 %s9, %s16
    %p86 = scmp.eq.s32.totalorder %s85, 0
    %s88 = sadd.s32 %s87, 1
    %s89 = scalar_select %p86, %s87, %s88
    %p92 = pneg %p86
    %p93 = scmp.eq.s32.totalorder %s9, 1
    %p94 = por %p92, %p93
    %p95 = scmp.ne.s32.totalorder %s87, %s90
    %p96 = scmp.eq.s32.totalorder %s9, 0
    %p97 = por %p95, %p96
    %p98 = scmp.ne.s32.totalorder %s87, %s90
    %p99 = scmp.eq.s32.totalorder %s14, 1
    %p100 = por %p98, %p99
    %p101 = scmp.ne.s32.totalorder %s90, %s91
    %p102 = scmp.eq.s32.totalorder %s14, 0
    %p103 = por %p101, %p102
    %p104 = scmp.ne.s32.totalorder %s90, %s91
    %p105 = scmp.eq.s32.totalorder %s15, 1
    %p106 = por %p104, %p105
    %p108 = scmp.ne.s32.totalorder %s91, %s107
    %p109 = scmp.eq.s32.totalorder %s15, 0
    %p110 = por %p108, %p109
    %p111 = scmp.le.s32.totalorder 1, %s9
    %p112 = scmp.lt.s32.totalorder %s9, 3
    %p113 = pnand %p111, %p112
    %p114 = pneg %p113
    // Predicated region
    $region9: #{discriminator_forward.8} parent=5 // pred_check
      _
    $region10: #{discriminator_forward.8} parent=5 // pred_check_branch
      %116 = sbr.rel (%p113) target = $region12
    $region11: #{discriminator_forward.8} parent=5 // pred_region
      %s117 = ssub.s32 %s9, 1
      // Predicated region
      $region13: #{discriminator_forward.8} parent=11 // pred_check
        %p118 = pneg %p56
      $region14: #{discriminator_forward.8} parent=11 // pred_check_branch
        %120 = sbr.rel (%p118) target = $region16
      $region15: #{discriminator_forward.8} parent=11 // pred_region
        _
      $region16: #{discriminator_forward.8} parent=11 // pred_fallthru
        _
      // Predicated region
      $region17: #{discriminator_forward.8} parent=11 // pred_check
        %p121 = pneg %p77
      $region18: #{discriminator_forward.8} parent=11 // pred_check_branch
        %123 = sbr.rel (%p121) target = $region20
      $region19: #{discriminator_forward.8} parent=11 // pred_region
        _
      $region20: #{discriminator_forward.8} parent=11 // pred_fallthru
        _
    $region12: #{discriminator_forward.8} parent=5 // pred_fallthru
      _
    %p124 = scmp.lt.s32.totalorder %s9, 2
    // Predicated region
    $region21: #{discriminator_forward.8} parent=5 // pred_check
      %p125 = pneg %p124
    $region22: #{discriminator_forward.8} parent=5 // pred_check_branch
      %127 = sbr.rel (%p125) target = $region24
    $region23: #{discriminator_forward.8} parent=5 // pred_region
      // Predicated region
      $region25: #{discriminator_forward.8} parent=23 // pred_check
        %p128 = pneg %p29
      $region26: #{discriminator_forward.8} parent=23 // pred_check_branch
        %130 = sbr.rel (%p128) target = $region28
      $region27: #{discriminator_forward.8} parent=23 // pred_region
        %s131 = smul.u32 2, %s9
        %p132 = scmp.lt.s32.totalorder %s131, 3
        %s133 = scalar_select %p132, %s131, 3
        %s134 = smul.addr %s133, 5
        %s135 = smul.addr %s134, 8
        %s136 = scalar_lea.vmem %s0, %s135
        %s137 = smul.u32 2, %s9
      $region28: #{discriminator_forward.8} parent=23 // pred_fallthru
        _
    $region24: #{discriminator_forward.8} parent=5 // pred_fallthru
      _
    %p138 = scmp.le.s32.totalorder 1, %s9
    %p139 = scmp.lt.s32.totalorder %s9, 3
    %p140 = pnand %p138, %p139
    %p141 = pneg %p140
    // Predicated region
    $region29: #{discriminator_forward.8} parent=5 // pred_check
      _
    $region30: #{discriminator_forward.8} parent=5 // pred_check_branch
      %143 = sbr.rel (%p140) target = $region32
    $region31: #{discriminator_forward.8} parent=5 // pred_region
      %s144 = ssub.s32 %s9, 1
      %s145 = smul.u32 2, %s14
      %p146 = scmp.lt.s32.totalorder %s145, 3
      %s147 = scalar_select %p146, %s145, 3
      %s148 = smul.addr %s147, 5
      %s149 = smul.addr %s148, 8
      %s150 = scalar_lea.vmem %s0, %s149
      %p151 = pneg %p35
      %p152 = pneg %p32
      %p153 = pneg %p56
      %p154 = pneg %p53
      %p155 = pneg %p77
      %p156 = pneg %p74
      %p157 = pneg %p103
      %p158 = pneg %p100
      %s159 = smul.u32 2, %s14
      %p160 = scmp.lt.s32.totalorder %s159, 3
      %s161 = scalar_select %p160, %s159, 3
      %s162 = smul.addr %s161, 8
      %s163 = scalar_lea.vmem %s3, %s162
      %s164 = smul.u32 2, %s14
      %p165 = scmp.lt.s32.totalorder %s164, 3
      %s166 = scalar_select %p165, %s164, 3
      %s167 = smul.addr %s166, 5
      %s168 = smul.addr %s167, 8
      %s169 = scalar_lea.vmem %s0, %s168
      %s170 = smul.u32 2, %s14
      %s171 = smul.u32 2, %s14
      %p172 = scmp.lt.s32.totalorder %s171, 3
      %s173 = scalar_select %p172, %s171, 3
      %s174 = smul.addr %s173, 8
      %s175 = scalar_lea.vmem %s3, %s174
      %s176 = smul.u32 2, %s14
      %v177 = vld [vmem:[%s169] sm:$0xff]
      %v178 = vld [vmem:[%s169 + $0x8] sm:$0xff]
      %v179 = vld [vmem:[%s169 + $0x10] sm:$0xff]
      %v180 = vld [vmem:[%s169 + $0x18] sm:$0xff]
      %v181 = vld [vmem:[%s169 + $0x20] sm:$0xff]
      %v182 = vld [vmem:[%s169 + $0x28] sm:$0xff]
      %v183 = vld [vmem:[%s169 + $0x30] sm:$0xff]
      %v184 = vld [vmem:[%s169 + $0x38] sm:$0xff]
      %v185 = vld [vmem:[%s169 + $0x40] sm:$0xff]
      %v186 = vld [vmem:[%s169 + $0x48] sm:$0xff]
      %v187 = vld [vmem:[%s1] sm:$0xff]
      %v188 = vld [vmem:[%s1 + $0x8] sm:$0xff]
      %v189 = vld [vmem:[%s1 + $0x10] sm:$0xff]
      %v190 = vld [vmem:[%s1 + $0x18] sm:$0xff]
      %v191 = vld [vmem:[%s1 + $0x20] sm:$0xff]
      %v192 = vld [vmem:[%s1 + $0x28] sm:$0xff]
      %v193 = vld [vmem:[%s1 + $0x30] sm:$0xff]
      %v194 = vld [vmem:[%s1 + $0x38] sm:$0xff]
      %v195 = vld [vmem:[%s1 + $0x40] sm:$0xff]
      %v196 = vld [vmem:[%s1 + $0x48] sm:$0xff]
      %v197 = vld [vmem:[%s1 + $0x50] sm:$0xff]
      %v198 = vld [vmem:[%s1 + $0x58] sm:$0xff]
      %v199 = vld [vmem:[%s1 + $0x60] sm:$0xff]
      %v200 = vld [vmem:[%s1 + $0x68] sm:$0xff]
      %v201 = vld [vmem:[%s1 + $0x70] sm:$0xff]
      %v202 = vld [vmem:[%s1 + $0x78] sm:$0xff]
      %v203 = vld [vmem:[%s1 + $0x80] sm:$0xff]
      %v204 = vld [vmem:[%s1 + $0x88] sm:$0xff]
      %v205 = vld [vmem:[%s1 + $0x90] sm:$0xff]
      %v206 = vld [vmem:[%s1 + $0x98] sm:$0xff]
      %v207 = vld [vmem:[%s1 + $0xa0] sm:$0xff]
      %v208 = vld [vmem:[%s1 + $0xa8] sm:$0xff]
      %v209 = vld [vmem:[%s1 + $0xb0] sm:$0xff]
      %v210 = vld [vmem:[%s1 + $0xb8] sm:$0xff]
      %v211 = vld [vmem:[%s1 + $0xc0] sm:$0xff]
      %v212 = vld [vmem:[%s1 + $0xc8] sm:$0xff]
      %v213 = vld [vmem:[%s1 + $0xd0] sm:$0xff]
      %v214 = vld [vmem:[%s1 + $0xd8] sm:$0xff]
      %v215 = vld [vmem:[%s1 + $0xe0] sm:$0xff]
      %v216 = vld [vmem:[%s1 + $0xe8] sm:$0xff]
      %v217 = vld [vmem:[%s1 + $0xf0] sm:$0xff]
      %v218 = vld [vmem:[%s1 + $0xf8] sm:$0xff]
      %v219 = vld [vmem:[%s1 + $0x100] sm:$0xff]
      %v220 = vld [vmem:[%s1 + $0x108] sm:$0xff]
      %v221 = vld [vmem:[%s1 + $0x110] sm:$0xff]
      %v222 = vld [vmem:[%s1 + $0x118] sm:$0xff]
      %v223 = vld [vmem:[%s1 + $0x120] sm:$0xff]
      %v224 = vld [vmem:[%s1 + $0x128] sm:$0xff]
      %v225 = vld [vmem:[%s1 + $0x130] sm:$0xff]
      %v226 = vld [vmem:[%s1 + $0x138] sm:$0xff]
      %v227 = vld [vmem:[%s1 + $0x140] sm:$0xff]
      %v228 = vld [vmem:[%s1 + $0x148] sm:$0xff]
      %v229 = vld [vmem:[%s1 + $0x150] sm:$0xff]
      %v230 = vld [vmem:[%s1 + $0x158] sm:$0xff]
      %v231 = vld [vmem:[%s1 + $0x160] sm:$0xff]
      %v232 = vld [vmem:[%s1 + $0x168] sm:$0xff]
      %v233 = vld [vmem:[%s1 + $0x170] sm:$0xff]
      %v234 = vld [vmem:[%s1 + $0x178] sm:$0xff]
      %v235 = vld [vmem:[%s1 + $0x180] sm:$0xff]
      %v236 = vld [vmem:[%s1 + $0x188] sm:$0xff]
      %v237 = vld [vmem:[%s1 + $0x190] sm:$0xff]
      %v238 = vld [vmem:[%s1 + $0x198] sm:$0xff]
      %v239 = vld [vmem:[%s1 + $0x1a0] sm:$0xff]
      %v240 = vld [vmem:[%s1 + $0x1a8] sm:$0xff]
      %v241 = vld [vmem:[%s1 + $0x1b0] sm:$0xff]
      %v242 = vld [vmem:[%s1 + $0x1b8] sm:$0xff]
      %v243 = vld [vmem:[%s1 + $0x1c0] sm:$0xff]
      %v244 = vld [vmem:[%s1 + $0x1c8] sm:$0xff]
      %v245 = vld [vmem:[%s1 + $0x1d0] sm:$0xff]
      %v246 = vld [vmem:[%s1 + $0x1d8] sm:$0xff]
      %v247 = vld [vmem:[%s1 + $0x1e0] sm:$0xff]
      %v248 = vld [vmem:[%s1 + $0x1e8] sm:$0xff]
      %v249 = vld [vmem:[%s1 + $0x1f0] sm:$0xff]
      %v250 = vld [vmem:[%s1 + $0x1f8] sm:$0xff]
      %v251 = vld [vmem:[%s1 + $0x200] sm:$0xff]
      %v252 = vld [vmem:[%s1 + $0x208] sm:$0xff]
      %v253 = vld [vmem:[%s1 + $0x210] sm:$0xff]
      %v254 = vld [vmem:[%s1 + $0x218] sm:$0xff]
      %v255 = vld [vmem:[%s1 + $0x220] sm:$0xff]
      %v256 = vld [vmem:[%s1 + $0x228] sm:$0xff]
      %v257 = vld [vmem:[%s1 + $0x230] sm:$0xff]
      %v258 = vld [vmem:[%s1 + $0x238] sm:$0xff]
      %v259 = vld [vmem:[%s2] sm:$0x1]
      %v261 = vlaneseq
      %v262 = vshrl.u32 %v261, 7
      %v263 = vsub.s32 0, %v262
      %v264 = vrot.slane %v259, %v263
      %vm266 = vcmask 523264
      %v268 = vsel %vm266, %v181, 0
      %v271 = vsel %vm266, %v186, 0
      %273 = vmatprep.subr.mxu0 0.0
      %274 = vmatpush1.msra.mxu0 %v187
      %275 = vmatprep.subr.mxu0 0.0
      %276 = vmatpush1.msra.mxu0 %v188
      %277 = vmatprep.subr.mxu0 0.0
      %278 = vmatpush1.msra.mxu0 %v189
      %279 = vmatprep.subr.mxu0 0.0
      %280 = vmatpush1.msra.mxu0 %v190
      %281 = vmatprep.subr.mxu0 0.0
      %282 = vmatpush1.msra.mxu0 %v191
      %283 = vmatprep.subr.mxu0 0.0
      %284 = vmatpush1.msra.mxu0 %v192
      %285 = vmatprep.subr.mxu0 0.0
      %286 = vmatpush1.msra.mxu0 %v193
      %287 = vmatprep.subr.mxu0 0.0
      %288 = vmatpush1.msra.mxu0 %v194
      %289 = vmatprep.subr.mxu0 0.0
      %290 = vmatpush1.msra.mxu0 %v195
      %291 = vmatprep.subr.mxu0 0.0
      %292 = vmatpush1.msra.mxu0 %v196
      %293 = vmatprep.subr.mxu0 0.0
      %294 = vmatpush1.msra.mxu0 %v197
      %295 = vmatprep.subr.mxu0 0.0
      %296 = vmatpush1.msra.mxu0 %v198
      %297 = vmatprep.subr.mxu0 0.0
      %298 = vmatpush1.msra.mxu0 %v199
      %299 = vmatprep.subr.mxu0 0.0
      %300 = vmatpush1.msra.mxu0 %v200
      %301 = vmatprep.subr.mxu0 0.0
      %302 = vmatpush1.msra.mxu0 %v201
      %303 = vmatprep.subr.mxu0 0.0
      %304 = vmatpush1.msra.mxu0 %v202
      %305 = vmatprep.subr.mxu0 0.0
      %306 = vmatpush1.msra.mxu0 %v203
      %307 = vmatprep.subr.mxu0 0.0
      %308 = vmatpush1.msra.mxu0 %v204
      %309 = vmatprep.subr.mxu0 0.0
      %310 = vmatpush1.msra.mxu0 %v205
      %311 = vmatprep.subr.mxu0 0.0
      %312 = vmatpush1.msra.mxu0 %v206
      %313 = vmatprep.subr.mxu0 0.0
      %314 = vmatpush1.msra.mxu0 %v207
      %315 = vmatprep.subr.mxu0 0.0
      %316 = vmatpush1.msra.mxu0 %v208
      %317 = vmatprep.subr.mxu0 0.0
      %318 = vmatpush1.msra.mxu0 %v209
      %319 = vmatprep.subr.mxu0 0.0
      %320 = vmatpush1.msra.mxu0 %v210
      %321 = vmatprep.subr.mxu0 0.0
      %322 = vmatpush1.msra.mxu0 %v211
      %323 = vmatprep.subr.mxu0 0.0
      %324 = vmatpush1.msra.mxu0 %v212
      %325 = vmatprep.subr.mxu0 0.0
      %326 = vmatpush1.msra.mxu0 %v213
      %327 = vmatprep.subr.mxu0 0.0
      %328 = vmatpush1.msra.mxu0 %v214
      %329 = vmatprep.subr.mxu0 0.0
      %330 = vmatpush1.msra.mxu0 %v215
      %331 = vmatprep.subr.mxu0 0.0
      %332 = vmatpush1.msra.mxu0 %v216
      %333 = vmatprep.subr.mxu0 0.0
      %334 = vmatpush1.msra.mxu0 %v217
      %335 = vmatprep.subr.mxu0 0.0
      %336 = vmatpush1.msra.mxu0 %v218
      %337 = vmatprep.mubr.f32.mxu0 %v178
      %338 = vmatmul.mubr.f32.gmra.mrb[0].mxu0 %v177
      %v339 = vpop.f32.mrb[0].mxu0
      %v340 = vadd.f32 %v264, %v339
      %v341 = vpop.f32.mrb[0].mxu0
      %342 = vmatprep.mubr.f32.mxu0 %v183
      %343 = vmatmul.mubr.f32.gmra.mrb[0].mxu0 %v182
      %v344 = vpop.f32.mrb[0].mxu0
      %v345 = vadd.f32 %v264, %v344
      %v346 = vpop.f32.mrb[0].mxu0
      %347 = vdwg.mxu0
      %348 = vmatprep.subr.mxu0 0.0
      %349 = vmatpush1.msra.mxu0 %v219
      %350 = vmatprep.subr.mxu0 0.0
      %351 = vmatpush1.msra.mxu0 %v220
      %352 = vmatprep.subr.mxu0 0.0
      %353 = vmatpush1.msra.mxu0 %v221
      %354 = vmatprep.subr.mxu0 0.0
      %355 = vmatpush1.msra.mxu0 %v222
      %356 = vmatprep.subr.mxu0 0.0
      %357 = vmatpush1.msra.mxu0 %v223
      %358 = vmatprep.subr.mxu0 0.0
      %359 = vmatpush1.msra.mxu0 %v224
      %360 = vmatprep.subr.mxu0 0.0
      %361 = vmatpush1.msra.mxu0 %v225
      %362 = vmatprep.subr.mxu0 0.0
      %363 = vmatpush1.msra.mxu0 %v226
      %364 = vmatprep.subr.mxu0 0.0
      %365 = vmatpush1.msra.mxu0 %v227
      %366 = vmatprep.subr.mxu0 0.0
      %367 = vmatpush1.msra.mxu0 %v228
      %368 = vmatprep.subr.mxu0 0.0
      %369 = vmatpush1.msra.mxu0 %v229
      %370 = vmatprep.subr.mxu0 0.0
      %371 = vmatpush1.msra.mxu0 %v230
      %372 = vmatprep.subr.mxu0 0.0
      %373 = vmatpush1.msra.mxu0 %v231
      %374 = vmatprep.subr.mxu0 0.0
      %375 = vmatpush1.msra.mxu0 %v232
      %376 = vmatprep.subr.mxu0 0.0
      %377 = vmatpush1.msra.mxu0 %v233
      %378 = vmatprep.subr.mxu0 0.0
      %379 = vmatpush1.msra.mxu0 %v234
      %380 = vmatprep.subr.mxu0 0.0
      %381 = vmatpush1.msra.mxu0 %v235
      %382 = vmatprep.subr.mxu0 0.0
      %383 = vmatpush1.msra.mxu0 %v236
      %384 = vmatprep.subr.mxu0 0.0
      %385 = vmatpush1.msra.mxu0 %v237
      %386 = vmatprep.subr.mxu0 0.0
      %387 = vmatpush1.msra.mxu0 %v238
      %388 = vmatprep.subr.mxu0 0.0
      %389 = vmatpush1.msra.mxu0 %v239
      %390 = vmatprep.subr.mxu0 0.0
      %391 = vmatpush1.msra.mxu0 %v240
      %392 = vmatprep.subr.mxu0 0.0
      %393 = vmatpush1.msra.mxu0 %v241
      %394 = vmatprep.subr.mxu0 0.0
      %395 = vmatpush1.msra.mxu0 %v242
      %396 = vmatprep.subr.mxu0 0.0
      %397 = vmatpush1.msra.mxu0 %v243
      %398 = vmatprep.subr.mxu0 0.0
      %399 = vmatpush1.msra.mxu0 %v244
      %400 = vmatprep.subr.mxu0 0.0
      %401 = vmatpush1.msra.mxu0 %v245
      %402 = vmatprep.subr.mxu0 0.0
      %403 = vmatpush1.msra.mxu0 %v246
      %404 = vmatprep.subr.mxu0 0.0
      %405 = vmatpush1.msra.mxu0 %v247
      %406 = vmatprep.subr.mxu0 0.0
      %407 = vmatpush1.msra.mxu0 %v248
      %408 = vmatprep.subr.mxu0 0.0
      %409 = vmatpush1.msra.mxu0 %v249
      %410 = vmatprep.subr.mxu0 0.0
      %411 = vmatpush1.msra.mxu0 %v250
      %412 = vmatprep.mubr.f32.mxu0 %v180
      %413 = vmatmul.mubr.f32.gmra.mrb[0].mxu0 %v179
      %v414 = vpop.f32.mrb[0].mxu0
      %v415 = vadd.f32 %v340, %v414
      %v416 = vpop.f32.mrb[0].mxu0
      %417 = vmatprep.mubr.f32.mxu0 %v185
      %418 = vmatmul.mubr.f32.gmra.mrb[0].mxu0 %v184
      %v419 = vpop.f32.mrb[0].mxu0
      %v420 = vadd.f32 %v345, %v419
      %v421 = vpop.f32.mrb[0].mxu0
      %422 = vdwg.mxu0
      %423 = vmatprep.subr.mxu0 0.0
      %424 = vmatpush1.msra.mxu0 %v251
      %425 = vmatprep.subr.mxu0 0.0
      %426 = vmatpush1.msra.mxu0 %v252
      %427 = vmatprep.subr.mxu0 0.0
      %428 = vmatpush1.msra.mxu0 %v253
      %429 = vmatprep.subr.mxu0 0.0
      %430 = vmatpush1.msra.mxu0 %v254
      %431 = vmatprep.subr.mxu0 0.0
      %432 = vmatpush1.msra.mxu0 %v255
      %433 = vmatprep.subr.mxu0 0.0
      %434 = vmatpush1.msra.mxu0 %v256
      %435 = vmatprep.subr.mxu0 0.0
      %436 = vmatpush1.msra.mxu0 %v257
      %437 = vmatprep.subr.mxu0 0.0
      %438 = vmatpush1.msra.mxu0 %v258
      %439 = vmatprep.subr.mxu0 0.0
      %440 = vmatpush1.msra.mxu0 0.0
      %441 = vmatprep.subr.mxu0 0.0
      %442 = vmatpush1.msra.mxu0 0.0
      %443 = vmatprep.subr.mxu0 0.0
      %444 = vmatpush1.msra.mxu0 0.0
      %445 = vmatprep.subr.mxu0 0.0
      %446 = vmatpush1.msra.mxu0 0.0
      %447 = vmatprep.subr.mxu0 0.0
      %448 = vmatpush1.msra.mxu0 0.0
      %449 = vmatprep.subr.mxu0 0.0
      %450 = vmatpush1.msra.mxu0 0.0
      %451 = vmatprep.subr.mxu0 0.0
      %452 = vmatpush1.msra.mxu0 0.0
      %453 = vmatprep.subr.mxu0 0.0
      %454 = vmatpush1.msra.mxu0 0.0
      %455 = vmatprep.subr.mxu0 0.0
      %456 = vmatpush1.msra.mxu0 0.0
      %457 = vmatprep.subr.mxu0 0.0
      %458 = vmatpush1.msra.mxu0 0.0
      %459 = vmatprep.subr.mxu0 0.0
      %460 = vmatpush1.msra.mxu0 0.0
      %461 = vmatprep.subr.mxu0 0.0
      %462 = vmatpush1.msra.mxu0 0.0
      %463 = vmatprep.subr.mxu0 0.0
      %464 = vmatpush1.msra.mxu0 0.0
      %465 = vmatprep.subr.mxu0 0.0
      %466 = vmatpush1.msra.mxu0 0.0
      %467 = vmatprep.subr.mxu0 0.0
      %468 = vmatpush1.msra.mxu0 0.0
      %469 = vmatprep.subr.mxu0 0.0
      %470 = vmatpush1.msra.mxu0 0.0
      %471 = vmatprep.subr.mxu0 0.0
      %472 = vmatpush1.msra.mxu0 0.0
      %473 = vmatprep.subr.mxu0 0.0
      %474 = vmatpush1.msra.mxu0 0.0
      %475 = vmatprep.subr.mxu0 0.0
      %476 = vmatpush1.msra.mxu0 0.0
      %477 = vmatprep.subr.mxu0 0.0
      %478 = vmatpush1.msra.mxu0 0.0
      %479 = vmatprep.subr.mxu0 0.0
      %480 = vmatpush1.msra.mxu0 0.0
      %481 = vmatprep.subr.mxu0 0.0
      %482 = vmatpush1.msra.mxu0 0.0
      %483 = vmatprep.subr.mxu0 0.0
      %484 = vmatpush1.msra.mxu0 0.0
      %485 = vmatprep.subr.mxu0 0.0
      %486 = vmatpush1.msra.mxu0 0.0
      %487 = vmatprep.mubr.f32.mxu0 0.0
      %488 = vmatmul.mubr.f32.gmra.mrb[0].mxu0 %v268
      %v489 = vpop.f32.mrb[0].mxu0
      %v490 = vadd.f32 %v415, %v489
      %v491 = vpop.f32.mrb[0].mxu0
      %492 = vmatprep.mubr.f32.mxu0 0.0
      %493 = vmatmul.mubr.f32.gmra.mrb[0].mxu0 %v271
      %v494 = vpop.f32.mrb[0].mxu0
      %v495 = vadd.f32 %v420, %v494
      %v496 = vpop.f32.mrb[0].mxu0
      %497 = vdwg.mxu0
      %v498 = vmul.f32 %v490, 0.2
      %v499 = vmul.f32 %v495, 0.2
      %v500 = vmax.f32 %v490, %v498
      %v501 = vmax.f32 %v495, %v499
      %502 = vst [vmem:[%s175] sm:$0xff] %v500
      %503 = vst [vmem:[%s175 + $0x8] sm:$0xff] %v501
      %s504 = smul.u32 2, %s14
      %p505 = scmp.lt.s32.totalorder %s504, 3
      %s506 = scalar_select %p505, %s504, 3
      %s507 = smul.addr %s506, 8
      %s508 = scalar_lea.vmem %s3, %s507
      // Predicated region
      $region33: #{discriminator_forward.8} parent=31 // pred_check
        %p509 = pneg %p100
      $region34: #{discriminator_forward.8} parent=31 // pred_check_branch
        %511 = sbr.rel (%p509) target = $region36
      $region35: #{discriminator_forward.8} parent=31 // pred_region
        %s512 = smul.u32 2, %s14
      $region36: #{discriminator_forward.8} parent=31 // pred_fallthru
        _
    $region32: #{discriminator_forward.8} parent=5 // pred_fallthru
      _
    %p513 = scmp.le.s32.totalorder 2, %s9
    // Predicated region
    $region37: #{discriminator_forward.8} parent=5 // pred_check
      %p514 = pneg %p513
    $region38: #{discriminator_forward.8} parent=5 // pred_check_branch
      %516 = sbr.rel (%p514) target = $region40
    $region39: #{discriminator_forward.8} parent=5 // pred_region
      %s517 = ssub.s32 %s9, 2
      // Predicated region
      $region41: #{discriminator_forward.8} parent=39 // pred_check
        %p518 = pneg %p106
      $region42: #{discriminator_forward.8} parent=39 // pred_check_branch
        %520 = sbr.rel (%p518) target = $region44
      $region43: #{discriminator_forward.8} parent=39 // pred_region
        %s521 = smul.u32 2, %s15
        %p522 = scmp.lt.s32.totalorder %s521, 3
        %s523 = scalar_select %p522, %s521, 3
        %s524 = smul.addr %s523, 8
        %s525 = scalar_lea.vmem %s3, %s524
      $region44: #{discriminator_forward.8} parent=39 // pred_fallthru
        _
    $region40: #{discriminator_forward.8} parent=5 // pred_fallthru
      _
  $region6: #{discriminator_forward.8} parent=0 // loop_footer
    %s13 = sadd.s32 1, %s9
  $region7: #{discriminator_forward.8} parent=0 // loop_footer_branch
    %8 = sbr.rel target = $region3
  $region8: #{discriminator_forward.8} parent=0 // loop_exit
    _

// kernel: discriminator_forward.9
$region0: #{discriminator_forward.9}
  #allocation0 [shape = 'u32[]', space=smem, size = 0x4, offset = 0x4, fixed_abs, tag = 'smem constant byte address 0x4 - core index']
  #allocation1 [shape = 'u32[144,128]{1,0:T(1,128)}', space=vmem, size = 0x12000, scoped, tag = 'internal scratch']
  #allocation2 [shape = 'f32[1,1]{1,0:T(1,128)S(1)}', space=vmem, size = 0x200, scoped, tag = 'scoped memory for discriminator_forward.9']
  %s0 = inlined_call_operand.vmem [shape: f32[2,2048], index: 0, kind: input, shape index: {}]
  %s1 = inlined_call_operand.vmem [shape: f32[2048,128], index: 1, kind: input, shape index: {}]
  %s2 = inlined_call_operand.vmem [shape: f32[1,128], index: 2, kind: input, shape index: {}]
  %s3 = inlined_call_operand.vmem [shape: f32[128,64], index: 3, kind: input, shape index: {}]
  %s4 = inlined_call_operand.vmem [shape: f32[1,64], index: 4, kind: input, shape index: {}]
  %s5 = inlined_call_operand.vmem [shape: f32[1,64], index: 5, kind: input, shape index: {}]
  %s6 = inlined_call_operand.<no memory space> [shape: f32[1,1], index: 6, kind: input, shape index: {}]
  %s7 = inlined_call_operand.vmem [shape: f32[2,1], index: 7, kind: output, shape index: {}]
  %s8 = sld [smem:[#allocation0]]
  $region38: #{discriminator_forward.9} parent=0
    _
  %s10 = ssub.s32 1, %s8
  %s11 = scalar_select 0, %s10, %s8
  %v12 = vstv %s6
  %13 = vst [vmem:[#allocation2] sm:$0x1] %v12
  // Predicated region
  $region2: #{discriminator_forward.9} parent=0 // pred_check
    _
  $region3: #{discriminator_forward.9} parent=0 // pred_check_branch
    %15 = sbr.rel (0) target = $region5
  $region4: #{discriminator_forward.9} parent=0 // pred_region
    _
  $region5: #{discriminator_forward.9} parent=0 // pred_fallthru
    _
  // Predicated region
  $region6: #{discriminator_forward.9} parent=0 // pred_check
    _
  $region7: #{discriminator_forward.9} parent=0 // pred_check_branch
    %17 = sbr.rel (0) target = $region9
  $region8: #{discriminator_forward.9} parent=0 // pred_region
    _
  $region9: #{discriminator_forward.9} parent=0 // pred_fallthru
    _
  // Predicated region
  $region10: #{discriminator_forward.9} parent=0 // pred_check
    _
  $region11: #{discriminator_forward.9} parent=0 // pred_check_branch
    %19 = sbr.rel (0) target = $region13
  $region12: #{discriminator_forward.9} parent=0 // pred_region
    _
  $region13: #{discriminator_forward.9} parent=0 // pred_fallthru
    _
  // Predicated region
  $region14: #{discriminator_forward.9} parent=0 // pred_check
    _
  $region15: #{discriminator_forward.9} parent=0 // pred_check_branch
    %21 = sbr.rel (0) target = $region17
  $region16: #{discriminator_forward.9} parent=0 // pred_region
    _
  $region17: #{discriminator_forward.9} parent=0 // pred_fallthru
    _
  // Predicated region
  $region18: #{discriminator_forward.9} parent=0 // pred_check
    _
  $region19: #{discriminator_forward.9} parent=0 // pred_check_branch
    %23 = sbr.rel (0) target = $region21
  $region20: #{discriminator_forward.9} parent=0 // pred_region
    _
  $region21: #{discriminator_forward.9} parent=0 // pred_fallthru
    _
  // Predicated region
  $region22: #{discriminator_forward.9} parent=0 // pred_check
    _
  $region23: #{discriminator_forward.9} parent=0 // pred_check_branch
    %25 = sbr.rel (0) target = $region25
  $region24: #{discriminator_forward.9} parent=0 // pred_region
    _
  $region25: #{discriminator_forward.9} parent=0 // pred_fallthru
    _
  // Predicated region
  $region26: #{discriminator_forward.9} parent=0 // pred_check
    _
  $region27: #{discriminator_forward.9} parent=0 // pred_check_branch
    %27 = sbr.rel (0) target = $region29
  $region28: #{discriminator_forward.9} parent=0 // pred_region
    _
  $region29: #{discriminator_forward.9} parent=0 // pred_fallthru
    _
  %v28 = vld [vmem:[%s0] sm:$0xff]
  %v29 = vld [vmem:[%s0 + $0x8] sm:$0xff]
  %v30 = vld [vmem:[%s0 + $0x10] sm:$0xff]
  %v31 = vld [vmem:[%s0 + $0x18] sm:$0xff]
  %v32 = vld [vmem:[%s1] sm:$0xff]
  %v33 = vld [vmem:[%s1 + $0x8] sm:$0xff]
  %v34 = vld [vmem:[%s1 + $0x10] sm:$0xff]
  %v35 = vld [vmem:[%s1 + $0x18] sm:$0xff]
  %v36 = vld [vmem:[%s1 + $0x20] sm:$0xff]
  %v37 = vld [vmem:[%s1 + $0x28] sm:$0xff]
  %v38 = vld [vmem:[%s1 + $0x30] sm:$0xff]
  %v39 = vld [vmem:[%s1 + $0x38] sm:$0xff]
  %v40 = vld [vmem:[%s1 + $0x40] sm:$0xff]
  %v41 = vld [vmem:[%s1 + $0x48] sm:$0xff]
  %v42 = vld [vmem:[%s1 + $0x50] sm:$0xff]
  %v43 = vld [vmem:[%s1 + $0x58] sm:$0xff]
  %v44 = vld [vmem:[%s1 + $0x60] sm:$0xff]
  %v45 = vld [vmem:[%s1 + $0x68] sm:$0xff]
  %v46 = vld [vmem:[%s1 + $0x70] sm:$0xff]
  %v47 = vld [vmem:[%s1 + $0x78] sm:$0xff]
  %v48 = vld [vmem:[%s1 + $0x80] sm:$0xff]
  %v49 = vld [vmem:[%s1 + $0x88] sm:$0xff]
  %v50 = vld [vmem:[%s1 + $0x90] sm:$0xff]
  %v51 = vld [vmem:[%s1 + $0x98] sm:$0xff]
  %v52 = vld [vmem:[%s1 + $0xa0] sm:$0xff]
  %v53 = vld [vmem:[%s1 + $0xa8] sm:$0xff]
  %v54 = vld [vmem:[%s1 + $0xb0] sm:$0xff]
  %v55 = vld [vmem:[%s1 + $0xb8] sm:$0xff]
  %v56 = vld [vmem:[%s1 + $0xc0] sm:$0xff]
  %v57 = vld [vmem:[%s1 + $0xc8] sm:$0xff]
  %v58 = vld [vmem:[%s1 + $0xd0] sm:$0xff]
  %v59 = vld [vmem:[%s1 + $0xd8] sm:$0xff]
  %v60 = vld [vmem:[%s1 + $0xe0] sm:$0xff]
  %v61 = vld [vmem:[%s1 + $0xe8] sm:$0xff]
  %v62 = vld [vmem:[%s1 + $0xf0] sm:$0xff]
  %v63 = vld [vmem:[%s1 + $0xf8] sm:$0xff]
  %v64 = vld [vmem:[%s1 + $0x100] sm:$0xff]
  %v65 = vld [vmem:[%s1 + $0x108] sm:$0xff]
  %v66 = vld [vmem:[%s1 + $0x110] sm:$0xff]
  %v67 = vld [vmem:[%s1 + $0x118] sm:$0xff]
  %v68 = vld [vmem:[%s1 + $0x120] sm:$0xff]
  %v69 = vld [vmem:[%s1 + $0x128] sm:$0xff]
  %v70 = vld [vmem:[%s1 + $0x130] sm:$0xff]
  %v71 = vld [vmem:[%s1 + $0x138] sm:$0xff]
  %v72 = vld [vmem:[%s1 + $0x140] sm:$0xff]
  %v73 = vld [vmem:[%s1 + $0x148] sm:$0xff]
  %v74 = vld [vmem:[%s1 + $0x150] sm:$0xff]
  %v75 = vld [vmem:[%s1 + $0x158] sm:$0xff]
  %v76 = vld [vmem:[%s1 + $0x160] sm:$0xff]
  %v77 = vld [vmem:[%s1 + $0x168] sm:$0xff]
  %v78 = vld [vmem:[%s1 + $0x170] sm:$0xff]
  %v79 = vld [vmem:[%s1 + $0x178] sm:$0xff]
  %v80 = vld [vmem:[%s1 + $0x180] sm:$0xff]
  %v81 = vld [vmem:[%s1 + $0x188] sm:$0xff]
  %v82 = vld [vmem:[%s1 + $0x190] sm:$0xff]
  %v83 = vld [vmem:[%s1 + $0x198] sm:$0xff]
  %v84 = vld [vmem:[%s1 + $0x1a0] sm:$0xff]
  %v85 = vld [vmem:[%s1 + $0x1a8] sm:$0xff]
  %v86 = vld [vmem:[%s1 + $0x1b0] sm:$0xff]
  %v87 = vld [vmem:[%s1 + $0x1b8] sm:$0xff]
  %v88 = vld [vmem:[%s1 + $0x1c0] sm:$0xff]
  %v89 = vld [vmem:[%s1 + $0x1c8] sm:$0xff]
  %v90 = vld [vmem:[%s1 + $0x1d0] sm:$0xff]
  %v91 = vld [vmem:[%s1 + $0x1d8] sm:$0xff]
  %v92 = vld [vmem:[%s1 + $0x1e0] sm:$0xff]
  %v93 = vld [vmem:[%s1 + $0x1e8] sm:$0xff]
  %v94 = vld [vmem:[%s1 + $0x1f0] sm:$0xff]
  %v95 = vld [vmem:[%s1 + $0x1f8] sm:$0xff]
  %v96 = vld [vmem:[%s1 + $0x200] sm:$0xff]
  %v97 = vld [vmem:[%s1 + $0x208] sm:$0xff]
  %v98 = vld [vmem:[%s1 + $0x210] sm:$0xff]
  %v99 = vld [vmem:[%s1 + $0x218] sm:$0xff]
  %v100 = vld [vmem:[%s1 + $0x220] sm:$0xff]
  %v101 = vld [vmem:[%s1 + $0x228] sm:$0xff]
  %v102 = vld [vmem:[%s1 + $0x230] sm:$0xff]
  %v103 = vld [vmem:[%s1 + $0x238] sm:$0xff]
  %v104 = vld [vmem:[%s1 + $0x240] sm:$0xff]
  %v105 = vld [vmem:[%s1 + $0x248] sm:$0xff]
  %v106 = vld [vmem:[%s1 + $0x250] sm:$0xff]
  %v107 = vld [vmem:[%s1 + $0x258] sm:$0xff]
  %v108 = vld [vmem:[%s1 + $0x260] sm:$0xff]
  %v109 = vld [vmem:[%s1 + $0x268] sm:$0xff]
  %v110 = vld [vmem:[%s1 + $0x270] sm:$0xff]
  %v111 = vld [vmem:[%s1 + $0x278] sm:$0xff]
  %v112 = vld [vmem:[%s1 + $0x280] sm:$0xff]
  %v113 = vld [vmem:[%s1 + $0x288] sm:$0xff]
  %v114 = vld [vmem:[%s1 + $0x290] sm:$0xff]
  %v115 = vld [vmem:[%s1 + $0x298] sm:$0xff]
  %v116 = vld [vmem:[%s1 + $0x2a0] sm:$0xff]
  %v117 = vld [vmem:[%s1 + $0x2a8] sm:$0xff]
  %v118 = vld [vmem:[%s1 + $0x2b0] sm:$0xff]
  %v119 = vld [vmem:[%s1 + $0x2b8] sm:$0xff]
  %v120 = vld [vmem:[%s1 + $0x2c0] sm:$0xff]
  %v121 = vld [vmem:[%s1 + $0x2c8] sm:$0xff]
  %v122 = vld [vmem:[%s1 + $0x2d0] sm:$0xff]
  %v123 = vld [vmem:[%s1 + $0x2d8] sm:$0xff]
  %v124 = vld [vmem:[%s1 + $0x2e0] sm:$0xff]
  %v125 = vld [vmem:[%s1 + $0x2e8] sm:$0xff]
  %v126 = vld [vmem:[%s1 + $0x2f0] sm:$0xff]
  %v127 = vld [vmem:[%s1 + $0x2f8] sm:$0xff]
  %v128 = vld [vmem:[%s1 + $0x300] sm:$0xff]
  %v129 = vld [vmem:[%s1 + $0x308] sm:$0xff]
  %v130 = vld [vmem:[%s1 + $0x310] sm:$0xff]
  %v131 = vld [vmem:[%s1 + $0x318] sm:$0xff]
  %v132 = vld [vmem:[%s1 + $0x320] sm:$0xff]
  %v133 = vld [vmem:[%s1 + $0x328] sm:$0xff]
  %v134 = vld [vmem:[%s1 + $0x330] sm:$0xff]
  %v135 = vld [vmem:[%s1 + $0x338] sm:$0xff]
  %v136 = vld [vmem:[%s1 + $0x340] sm:$0xff]
  %v137 = vld [vmem:[%s1 + $0x348] sm:$0xff]
  %v138 = vld [vmem:[%s1 + $0x350] sm:$0xff]
  %v139 = vld [vmem:[%s1 + $0x358] sm:$0xff]
  %v140 = vld [vmem:[%s1 + $0x360] sm:$0xff]
  %v141 = vld [vmem:[%s1 + $0x368] sm:$0xff]
  %v142 = vld [vmem:[%s1 + $0x370] sm:$0xff]
  %v143 = vld [vmem:[%s1 + $0x378] sm:$0xff]
  %v144 = vld [vmem:[%s1 + $0x380] sm:$0xff]
  %v145 = vld [vmem:[%s1 + $0x388] sm:$0xff]
  %v146 = vld [vmem:[%s1 + $0x390] sm:$0xff]
  %v147 = vld [vmem:[%s1 + $0x398] sm:$0xff]
  %v148 = vld [vmem:[%s1 + $0x3a0] sm:$0xff]
  %v149 = vld [vmem:[%s1 + $0x3a8] sm:$0xff]
  %v150 = vld [vmem:[%s1 + $0x3b0] sm:$0xff]
  %v151 = vld [vmem:[%s1 + $0x3b8] sm:$0xff]
  %v152 = vld [vmem:[%s1 + $0x3c0] sm:$0xff]
  %v153 = vld [vmem:[%s1 + $0x3c8] sm:$0xff]
  %v154 = vld [vmem:[%s1 + $0x3d0] sm:$0xff]
  %v155 = vld [vmem:[%s1 + $0x3d8] sm:$0xff]
  %v156 = vld [vmem:[%s1 + $0x3e0] sm:$0xff]
  %v157 = vld [vmem:[%s1 + $0x3e8] sm:$0xff]
  %v158 = vld [vmem:[%s1 + $0x3f0] sm:$0xff]
  %v159 = vld [vmem:[%s1 + $0x3f8] sm:$0xff]
  %v160 = vld [vmem:[%s1 + $0x400] sm:$0xff]
  %v161 = vld [vmem:[%s1 + $0x408] sm:$0xff]
  %v162 = vld [vmem:[%s1 + $0x410] sm:$0xff]
  %v163 = vld [vmem:[%s1 + $0x418] sm:$0xff]
  %v164 = vld [vmem:[%s1 + $0x420] sm:$0xff]
  %v165 = vld [vmem:[%s1 + $0x428] sm:$0xff]
  %v166 = vld [vmem:[%s1 + $0x430] sm:$0xff]
  %v167 = vld [vmem:[%s1 + $0x438] sm:$0xff]
  %v168 = vld [vmem:[%s1 + $0x440] sm:$0xff]
  %v169 = vld [vmem:[%s1 + $0x448] sm:$0xff]
  %v170 = vld [vmem:[%s1 + $0x450] sm:$0xff]
  %v171 = vld [vmem:[%s1 + $0x458] sm:$0xff]
  %v172 = vld [vmem:[%s1 + $0x460] sm:$0xff]
  %v173 = vld [vmem:[%s1 + $0x468] sm:$0xff]
  %v174 = vld [vmem:[%s1 + $0x470] sm:$0xff]
  %v175 = vld [vmem:[%s1 + $0x478] sm:$0xff]
  %v176 = vld [vmem:[%s1 + $0x480] sm:$0xff]
  %v177 = vld [vmem:[%s1 + $0x488] sm:$0xff]
  %v178 = vld [vmem:[%s1 + $0x490] sm:$0xff]
  %v179 = vld [vmem:[%s1 + $0x498] sm:$0xff]
  %v180 = vld [vmem:[%s1 + $0x4a0] sm:$0xff]
  %v181 = vld [vmem:[%s1 + $0x4a8] sm:$0xff]
  %v182 = vld [vmem:[%s1 + $0x4b0] sm:$0xff]
  %v183 = vld [vmem:[%s1 + $0x4b8] sm:$0xff]
  %v184 = vld [vmem:[%s1 + $0x4c0] sm:$0xff]
  %v185 = vld [vmem:[%s1 + $0x4c8] sm:$0xff]
  %v186 = vld [vmem:[%s1 + $0x4d0] sm:$0xff]
  %v187 = vld [vmem:[%s1 + $0x4d8] sm:$0xff]
  %v188 = vld [vmem:[%s1 + $0x4e0] sm:$0xff]
  %v189 = vld [vmem:[%s1 + $0x4e8] sm:$0xff]
  %v190 = vld [vmem:[%s1 + $0x4f0] sm:$0xff]
  %v191 = vld [vmem:[%s1 + $0x4f8] sm:$0xff]
  %v192 = vld [vmem:[%s1 + $0x500] sm:$0xff]
  %v193 = vld [vmem:[%s1 + $0x508] sm:$0xff]
  %v194 = vld [vmem:[%s1 + $0x510] sm:$0xff]
  %v195 = vld [vmem:[%s1 + $0x518] sm:$0xff]
  %v196 = vld [vmem:[%s1 + $0x520] sm:$0xff]
  %v197 = vld [vmem:[%s1 + $0x528] sm:$0xff]
  %v198 = vld [vmem:[%s1 + $0x530] sm:$0xff]
  %v199 = vld [vmem:[%s1 + $0x538] sm:$0xff]
  %v200 = vld [vmem:[%s1 + $0x540] sm:$0xff]
  %v201 = vld [vmem:[%s1 + $0x548] sm:$0xff]
  %v202 = vld [vmem:[%s1 + $0x550] sm:$0xff]
  %v203 = vld [vmem:[%s1 + $0x558] sm:$0xff]
  %v204 = vld [vmem:[%s1 + $0x560] sm:$0xff]
  %v205 = vld [vmem:[%s1 + $0x568] sm:$0xff]
  %v206 = vld [vmem:[%s1 + $0x570] sm:$0xff]
  %v207 = vld [vmem:[%s1 + $0x578] sm:$0xff]
  %v208 = vld [vmem:[%s1 + $0x580] sm:$0xff]
  %v209 = vld [vmem:[%s1 + $0x588] sm:$0xff]
  %v210 = vld [vmem:[%s1 + $0x590] sm:$0xff]
  %v211 = vld [vmem:[%s1 + $0x598] sm:$0xff]
  %v212 = vld [vmem:[%s1 + $0x5a0] sm:$0xff]
  %v213 = vld [vmem:[%s1 + $0x5a8] sm:$0xff]
  %v214 = vld [vmem:[%s1 + $0x5b0] sm:$0xff]
  %v215 = vld [vmem:[%s1 + $0x5b8] sm:$0xff]
  %v216 = vld [vmem:[%s1 + $0x5c0] sm:$0xff]
  %v217 = vld [vmem:[%s1 + $0x5c8] sm:$0xff]
  %v218 = vld [vmem:[%s1 + $0x5d0] sm:$0xff]
  %v219 = vld [vmem:[%s1 + $0x5d8] sm:$0xff]
  %v220 = vld [vmem:[%s1 + $0x5e0] sm:$0xff]
  %v221 = vld [vmem:[%s1 + $0x5e8] sm:$0xff]
  %v222 = vld [vmem:[%s1 + $0x5f0] sm:$0xff]
  %v223 = vld [vmem:[%s1 + $0x5f8] sm:$0xff]
  %v224 = vld [vmem:[%s1 + $0x600] sm:$0xff]
  %v225 = vld [vmem:[%s1 + $0x608] sm:$0xff]
  %v226 = vld [vmem:[%s1 + $0x610] sm:$0xff]
  %v227 = vld [vmem:[%s1 + $0x618] sm:$0xff]
  %v228 = vld [vmem:[%s1 + $0x620] sm:$0xff]
  %v229 = vld [vmem:[%s1 + $0x628] sm:$0xff]
  %v230 = vld [vmem:[%s1 + $0x630] sm:$0xff]
  %v231 = vld [vmem:[%s1 + $0x638] sm:$0xff]
  %v232 = vld [vmem:[%s1 + $0x640] sm:$0xff]
  %v233 = vld [vmem:[%s1 + $0x648] sm:$0xff]
  %v234 = vld [vmem:[%s1 + $0x650] sm:$0xff]
  %v235 = vld [vmem:[%s1 + $0x658] sm:$0xff]
  %v236 = vld [vmem:[%s1 + $0x660] sm:$0xff]
  %v237 = vld [vmem:[%s1 + $0x668] sm:$0xff]
  %v238 = vld [vmem:[%s1 + $0x670] sm:$0xff]
  %v239 = vld [vmem:[%s1 + $0x678] sm:$0xff]
  %v240 = vld [vmem:[%s1 + $0x680] sm:$0xff]
  %v241 = vld [vmem:[%s1 + $0x688] sm:$0xff]
  %v242 = vld [vmem:[%s1 + $0x690] sm:$0xff]
  %v243 = vld [vmem:[%s1 + $0x698] sm:$0xff]
  %v244 = vld [vmem:[%s1 + $0x6a0] sm:$0xff]
  %v245 = vld [vmem:[%s1 + $0x6a8] sm:$0xff]
  %v246 = vld [vmem:[%s1 + $0x6b0] sm:$0xff]
  %v247 = vld [vmem:[%s1 + $0x6b8] sm:$0xff]
  %v248 = vld [vmem:[%s1 + $0x6c0] sm:$0xff]
  %v249 = vld [vmem:[%s1 + $0x6c8] sm:$0xff]
  %v250 = vld [vmem:[%s1 + $0x6d0] sm:$0xff]
  %v251 = vld [vmem:[%s1 + $0x6d8] sm:$0xff]
  %v252 = vld [vmem:[%s1 + $0x6e0] sm:$0xff]
  %v253 = vld [vmem:[%s1 + $0x6e8] sm:$0xff]
  %v254 = vld [vmem:[%s1 + $0x6f0] sm:$0xff]
  %v255 = vld [vmem:[%s1 + $0x6f8] sm:$0xff]
  %v256 = vld [vmem:[%s1 + $0x700] sm:$0xff]
  %v257 = vld [vmem:[%s1 + $0x708] sm:$0xff]
  %v258 = vld [vmem:[%s1 + $0x710] sm:$0xff]
  %v259 = vld [vmem:[%s1 + $0x718] sm:$0xff]
  %v260 = vld [vmem:[%s1 + $0x720] sm:$0xff]
  %v261 = vld [vmem:[%s1 + $0x728] sm:$0xff]
  %v262 = vld [vmem:[%s1 + $0x730] sm:$0xff]
  %v263 = vld [vmem:[%s1 + $0x738] sm:$0xff]
  %v264 = vld [vmem:[%s1 + $0x740] sm:$0xff]
  %v265 = vld [vmem:[%s1 + $0x748] sm:$0xff]
  %v266 = vld [vmem:[%s1 + $0x750] sm:$0xff]
  %v267 = vld [vmem:[%s1 + $0x758] sm:$0xff]
  %v268 = vld [vmem:[%s1 + $0x760] sm:$0xff]
  %v269 = vld [vmem:[%s1 + $0x768] sm:$0xff]
  %v270 = vld [vmem:[%s1 + $0x770] sm:$0xff]
  %v271 = vld [vmem:[%s1 + $0x778] sm:$0xff]
  %v272 = vld [vmem:[%s1 + $0x780] sm:$0xff]
  %v273 = vld [vmem:[%s1 + $0x788] sm:$0xff]
  %v274 = vld [vmem:[%s1 + $0x790] sm:$0xff]
  %v275 = vld [vmem:[%s1 + $0x798] sm:$0xff]
  %v276 = vld [vmem:[%s1 + $0x7a0] sm:$0xff]
  %v277 = vld [vmem:[%s1 + $0x7a8] sm:$0xff]
  %v278 = vld [vmem:[%s1 + $0x7b0] sm:$0xff]
  %v279 = vld [vmem:[%s1 + $0x7b8] sm:$0xff]
  %v280 = vld [vmem:[%s1 + $0x7c0] sm:$0xff]
  %v281 = vld [vmem:[%s1 + $0x7c8] sm:$0xff]
  %v282 = vld [vmem:[%s1 + $0x7d0] sm:$0xff]
  %v283 = vld [vmem:[%s1 + $0x7d8] sm:$0xff]
  %v284 = vld [vmem:[%s1 + $0x7e0] sm:$0xff]
  %v285 = vld [vmem:[%s1 + $0x7e8] sm:$0xff]
  %v286 = vld [vmem:[%s1 + $0x7f0] sm:$0xff]
  %v287 = vld [vmem:[%s1 + $0x7f8] sm:$0xff]
  %v288 = vld [vmem:[%s2] sm:$0x1]
  %v290 = vlaneseq
  %v291 = vshrl.u32 %v290, 7
  %v292 = vsub.s32 0, %v291
  %v293 = vrot.slane %v288, %v292
  %v299 = vcombine.high %v28, %v28
  %v301 = vunpack.c.l.s4 1983009808
  %v302 = vunpack.c.0.s8 %v301
  %v303 = vlaneseq
  %v304 = vshrl.u32 %v303, 7
  %v305 = vsub.s32 %v302, %v304
  %v306 = vrot.slane %v28, %v305
  %v308 = vunpack.c.l.s4 1983009808
  %v309 = vunpack.c.0.s8 %v308
  %v310 = vlaneseq
  %v311 = vshrl.u32 %v310, 7
  %v312 = vsub.s32 %v309, %v311
  %v313 = vrot.slane %v299, %v312
  %v314 = vcombine.high %v306, %v306
  %v315 = vcombine.high %v313, %v313
  %v316 = vcombine.high %v29, %v29
  %v318 = vunpack.c.l.s4 1983009808
  %v319 = vunpack.c.0.s8 %v318
  %v320 = vlaneseq
  %v321 = vshrl.u32 %v320, 7
  %v322 = vsub.s32 %v319, %v321
  %v323 = vrot.slane %v29, %v322
  %v325 = vunpack.c.l.s4 1983009808
  %v326 = vunpack.c.0.s8 %v325
  %v327 = vlaneseq
  %v328 = vshrl.u32 %v327, 7
  %v329 = vsub.s32 %v326, %v328
  %v330 = vrot.slane %v316, %v329
  %v331 = vcombine.high %v323, %v323
  %v332 = vcombine.high %v330, %v330
  %v333 = vcombine.high %v30, %v30
  %v335 = vunpack.c.l.s4 1983009808
  %v336 = vunpack.c.0.s8 %v335
  %v337 = vlaneseq
  %v338 = vshrl.u32 %v337, 7
  %v339 = vsub.s32 %v336, %v338
  %v340 = vrot.slane %v30, %v339
  %v342 = vunpack.c.l.s4 1983009808
  %v343 = vunpack.c.0.s8 %v342
  %v344 = vlaneseq
  %v345 = vshrl.u32 %v344, 7
  %v346 = vsub.s32 %v343, %v345
  %v347 = vrot.slane %v333, %v346
  %v348 = vcombine.high %v340, %v340
  %v349 = vcombine.high %v347, %v347
  %v350 = vcombine.high %v31, %v31
  %v352 = vunpack.c.l.s4 1983009808
  %v353 = vunpack.c.0.s8 %v352
  %v354 = vlaneseq
  %v355 = vshrl.u32 %v354, 7
  %v356 = vsub.s32 %v353, %v355
  %v357 = vrot.slane %v31, %v356
  %v359 = vunpack.c.l.s4 1983009808
  %v360 = vunpack.c.0.s8 %v359
  %v361 = vlaneseq
  %v362 = vshrl.u32 %v361, 7
  %v363 = vsub.s32 %v360, %v362
  %v364 = vrot.slane %v350, %v363
  %v365 = vcombine.high %v357, %v357
  %v366 = vcombine.high %v364, %v364
  %383 = vmatprep.subr.mxu0 0.0
  %384 = vmatpush1.msra.mxu0 %v32
  %385 = vmatprep.subr.mxu0 0.0
  %386 = vmatpush1.msra.mxu0 %v33
  %387 = vmatprep.subr.mxu0 0.0
  %388 = vmatpush1.msra.mxu0 %v34
  %389 = vmatprep.subr.mxu0 0.0
  %390 = vmatpush1.msra.mxu0 %v35
  %391 = vmatprep.subr.mxu0 0.0
  %392 = vmatpush1.msra.mxu0 %v36
  %393 = vmatprep.subr.mxu0 0.0
  %394 = vmatpush1.msra.mxu0 %v37
  %395 = vmatprep.subr.mxu0 0.0
  %396 = vmatpush1.msra.mxu0 %v38
  %397 = vmatprep.subr.mxu0 0.0
  %398 = vmatpush1.msra.mxu0 %v39
  %399 = vmatprep.subr.mxu0 0.0
  %400 = vmatpush1.msra.mxu0 %v40
  %401 = vmatprep.subr.mxu0 0.0
  %402 = vmatpush1.msra.mxu0 %v41
  %403 = vmatprep.subr.mxu0 0.0
  %404 = vmatpush1.msra.mxu0 %v42
  %405 = vmatprep.subr.mxu0 0.0
  %406 = vmatpush1.msra.mxu0 %v43
  %407 = vmatprep.subr.mxu0 0.0
  %408 = vmatpush1.msra.mxu0 %v44
  %409 = vmatprep.subr.mxu0 0.0
  %410 = vmatpush1.msra.mxu0 %v45
  %411 = vmatprep.subr.mxu0 0.0
  %412 = vmatpush1.msra.mxu0 %v46
  %413 = vmatprep.subr.mxu0 0.0
  %414 = vmatpush1.msra.mxu0 %v47
  %415 = vmatprep.subr.mxu0 0.0
  %416 = vmatpush1.msra.mxu0 %v48
  %417 = vmatprep.subr.mxu0 0.0
  %418 = vmatpush1.msra.mxu0 %v49
  %419 = vmatprep.subr.mxu0 0.0
  %420 = vmatpush1.msra.mxu0 %v50
  %421 = vmatprep.subr.mxu0 0.0
  %422 = vmatpush1.msra.mxu0 %v51
  %423 = vmatprep.subr.mxu0 0.0
  %424 = vmatpush1.msra.mxu0 %v52
  %425 = vmatprep.subr.mxu0 0.0
  %426 = vmatpush1.msra.mxu0 %v53
  %427 = vmatprep.subr.mxu0 0.0
  %428 = vmatpush1.msra.mxu0 %v54
  %429 = vmatprep.subr.mxu0 0.0
  %430 = vmatpush1.msra.mxu0 %v55
  %431 = vmatprep.subr.mxu0 0.0
  %432 = vmatpush1.msra.mxu0 %v56
  %433 = vmatprep.subr.mxu0 0.0
  %434 = vmatpush1.msra.mxu0 %v57
  %435 = vmatprep.subr.mxu0 0.0
  %436 = vmatpush1.msra.mxu0 %v58
  %437 = vmatprep.subr.mxu0 0.0
  %438 = vmatpush1.msra.mxu0 %v59
  %439 = vmatprep.subr.mxu0 0.0
  %440 = vmatpush1.msra.mxu0 %v60
  %441 = vmatprep.subr.mxu0 0.0
  %442 = vmatpush1.msra.mxu0 %v61
  %443 = vmatprep.subr.mxu0 0.0
  %444 = vmatpush1.msra.mxu0 %v62
  %445 = vmatprep.subr.mxu0 0.0
  %446 = vmatpush1.msra.mxu0 %v63
  %447 = vmatprep.mubr.f32.mxu0 %v314
  %448 = vmatmul.mubr.f32.gmra.mrb[0].mxu0 %v306
  %v449 = vpop.f32.mrb[0].mxu0
  %v450 = vadd.f32 %v293, %v449
  %v451 = vpop.f32.mrb[0].mxu0
  %452 = vdwg.mxu0
  %453 = vmatprep.subr.mxu0 0.0
  %454 = vmatpush1.msra.mxu0 %v64
  %455 = vmatprep.subr.mxu0 0.0
  %456 = vmatpush1.msra.mxu0 %v65
  %457 = vmatprep.subr.mxu0 0.0
  %458 = vmatpush1.msra.mxu0 %v66
  %459 = vmatprep.subr.mxu0 0.0
  %460 = vmatpush1.msra.mxu0 %v67
  %461 = vmatprep.subr.mxu0 0.0
  %462 = vmatpush1.msra.mxu0 %v68
  %463 = vmatprep.subr.mxu0 0.0
  %464 = vmatpush1.msra.mxu0 %v69
  %465 = vmatprep.subr.mxu0 0.0
  %466 = vmatpush1.msra.mxu0 %v70
  %467 = vmatprep.subr.mxu0 0.0
  %468 = vmatpush1.msra.mxu0 %v71
  %469 = vmatprep.subr.mxu0 0.0
  %470 = vmatpush1.msra.mxu0 %v72
  %471 = vmatprep.subr.mxu0 0.0
  %472 = vmatpush1.msra.mxu0 %v73
  %473 = vmatprep.subr.mxu0 0.0
  %474 = vmatpush1.msra.mxu0 %v74
  %475 = vmatprep.subr.mxu0 0.0
  %476 = vmatpush1.msra.mxu0 %v75
  %477 = vmatprep.subr.mxu0 0.0
  %478 = vmatpush1.msra.mxu0 %v76
  %479 = vmatprep.subr.mxu0 0.0
  %480 = vmatpush1.msra.mxu0 %v77
  %481 = vmatprep.subr.mxu0 0.0
  %482 = vmatpush1.msra.mxu0 %v78
  %483 = vmatprep.subr.mxu0 0.0
  %484 = vmatpush1.msra.mxu0 %v79
  %485 = vmatprep.subr.mxu0 0.0
  %486 = vmatpush1.msra.mxu0 %v80
  %487 = vmatprep.subr.mxu0 0.0
  %488 = vmatpush1.msra.mxu0 %v81
  %489 = vmatprep.subr.mxu0 0.0
  %490 = vmatpush1.msra.mxu0 %v82
  %491 = vmatprep.subr.mxu0 0.0
  %492 = vmatpush1.msra.mxu0 %v83
  %493 = vmatprep.subr.mxu0 0.0
  %494 = vmatpush1.msra.mxu0 %v84
  %495 = vmatprep.subr.mxu0 0.0
  %496 = vmatpush1.msra.mxu0 %v85
  %497 = vmatprep.subr.mxu0 0.0
  %498 = vmatpush1.msra.mxu0 %v86
  %499 = vmatprep.subr.mxu0 0.0
  %500 = vmatpush1.msra.mxu0 %v87
  %501 = vmatprep.subr.mxu0 0.0
  %502 = vmatpush1.msra.mxu0 %v88
  %503 = vmatprep.subr.mxu0 0.0
  %504 = vmatpush1.msra.mxu0 %v89
  %505 = vmatprep.subr.mxu0 0.0
  %506 = vmatpush1.msra.mxu0 %v90
  %507 = vmatprep.subr.mxu0 0.0
  %508 = vmatpush1.msra.mxu0 %v91
  %509 = vmatprep.subr.mxu0 0.0
  %510 = vmatpush1.msra.mxu0 %v92
  %511 = vmatprep.subr.mxu0 0.0
  %512 = vmatpush1.msra.mxu0 %v93
  %513 = vmatprep.subr.mxu0 0.0
  %514 = vmatpush1.msra.mxu0 %v94
  %515 = vmatprep.subr.mxu0 0.0
  %516 = vmatpush1.msra.mxu0 %v95
  %517 = vmatprep.mubr.f32.mxu0 %v315
  %518 = vmatmul.mubr.f32.gmra.mrb[0].mxu0 %v313
  %v519 = vpop.f32.mrb[0].mxu0
  %v520 = vadd.f32 %v450, %v519
  %v521 = vpop.f32.mrb[0].mxu0
  %522 = vdwg.mxu0
  %523 = vmatprep.subr.mxu0 0.0
  %524 = vmatpush1.msra.mxu0 %v96
  %525 = vmatprep.subr.mxu0 0.0
  %526 = vmatpush1.msra.mxu0 %v97
  %527 = vmatprep.subr.mxu0 0.0
  %528 = vmatpush1.msra.mxu0 %v98
  %529 = vmatprep.subr.mxu0 0.0
  %530 = vmatpush1.msra.mxu0 %v99
  %531 = vmatprep.subr.mxu0 0.0
  %532 = vmatpush1.msra.mxu0 %v100
  %533 = vmatprep.subr.mxu0 0.0
  %534 = vmatpush1.msra.mxu0 %v101
  %535 = vmatprep.subr.mxu0 0.0
  %536 = vmatpush1.msra.mxu0 %v102
  %537 = vmatprep.subr.mxu0 0.0
  %538 = vmatpush1.msra.mxu0 %v103
  %539 = vmatprep.subr.mxu0 0.0
  %540 = vmatpush1.msra.mxu0 %v104
  %541 = vmatprep.subr.mxu0 0.0
  %542 = vmatpush1.msra.mxu0 %v105
  %543 = vmatprep.subr.mxu0 0.0
  %544 = vmatpush1.msra.mxu0 %v106
  %545 = vmatprep.subr.mxu0 0.0
  %546 = vmatpush1.msra.mxu0 %v107
  %547 = vmatprep.subr.mxu0 0.0
  %548 = vmatpush1.msra.mxu0 %v108
  %549 = vmatprep.subr.mxu0 0.0
  %550 = vmatpush1.msra.mxu0 %v109
  %551 = vmatprep.subr.mxu0 0.0
  %552 = vmatpush1.msra.mxu0 %v110
  %553 = vmatprep.subr.mxu0 0.0
  %554 = vmatpush1.msra.mxu0 %v111
  %555 = vmatprep.subr.mxu0 0.0
  %556 = vmatpush1.msra.mxu0 %v112
  %557 = vmatprep.subr.mxu0 0.0
  %558 = vmatpush1.msra.mxu0 %v113
  %559 = vmatprep.subr.mxu0 0.0
  %560 = vmatpush1.msra.mxu0 %v114
  %561 = vmatprep.subr.mxu0 0.0
  %562 = vmatpush1.msra.mxu0 %v115
  %563 = vmatprep.subr.mxu0 0.0
  %564 = vmatpush1.msra.mxu0 %v116
  %565 = vmatprep.subr.mxu0 0.0
  %566 = vmatpush1.msra.mxu0 %v117
  %567 = vmatprep.subr.mxu0 0.0
  %568 = vmatpush1.msra.mxu0 %v118
  %569 = vmatprep.subr.mxu0 0.0
  %570 = vmatpush1.msra.mxu0 %v119
  %571 = vmatprep.subr.mxu0 0.0
  %572 = vmatpush1.msra.mxu0 %v120
  %573 = vmatprep.subr.mxu0 0.0
  %574 = vmatpush1.msra.mxu0 %v121
  %575 = vmatprep.subr.mxu0 0.0
  %576 = vmatpush1.msra.mxu0 %v122
  %577 = vmatprep.subr.mxu0 0.0
  %578 = vmatpush1.msra.mxu0 %v123
  %579 = vmatprep.subr.mxu0 0.0
  %580 = vmatpush1.msra.mxu0 %v124
  %581 = vmatprep.subr.mxu0 0.0
  %582 = vmatpush1.msra.mxu0 %v125
  %583 = vmatprep.subr.mxu0 0.0
  %584 = vmatpush1.msra.mxu0 %v126
  %585 = vmatprep.subr.mxu0 0.0
  %586 = vmatpush1.msra.mxu0 %v127
  %587 = vmatprep.mubr.f32.mxu0 %v331
  %588 = vmatmul.mubr.f32.gmra.mrb[0].mxu0 %v323
  %v589 = vpop.f32.mrb[0].mxu0
  %v590 = vadd.f32 %v520, %v589
  %v591 = vpop.f32.mrb[0].mxu0
  %592 = vdwg.mxu0
  %593 = vmatprep.subr.mxu0 0.0
  %594 = vmatpush1.msra.mxu0 %v128
  %595 = vmatprep.subr.mxu0 0.0
  %596 = vmatpush1.msra.mxu0 %v129
  %597 = vmatprep.subr.mxu0 0.0
  %598 = vmatpush1.msra.mxu0 %v130
  %599 = vmatprep.subr.mxu0 0.0
  %600 = vmatpush1.msra.mxu0 %v131
  %601 = vmatprep.subr.mxu0 0.0
  %602 = vmatpush1.msra.mxu0 %v132
  %603 = vmatprep.subr.mxu0 0.0
  %604 = vmatpush1.msra.mxu0 %v133
  %605 = vmatprep.subr.mxu0 0.0
  %606 = vmatpush1.msra.mxu0 %v134
  %607 = vmatprep.subr.mxu0 0.0
  %608 = vmatpush1.msra.mxu0 %v135
  %609 = vmatprep.subr.mxu0 0.0
  %610 = vmatpush1.msra.mxu0 %v136
  %611 = vmatprep.subr.mxu0 0.0
  %612 = vmatpush1.msra.mxu0 %v137
  %613 = vmatprep.subr.mxu0 0.0
  %614 = vmatpush1.msra.mxu0 %v138
  %615 = vmatprep.subr.mxu0 0.0
  %616 = vmatpush1.msra.mxu0 %v139
  %617 = vmatprep.subr.mxu0 0.0
  %618 = vmatpush1.msra.mxu0 %v140
  %619 = vmatprep.subr.mxu0 0.0
  %620 = vmatpush1.msra.mxu0 %v141
  %621 = vmatprep.subr.mxu0 0.0
  %622 = vmatpush1.msra.mxu0 %v142
  %623 = vmatprep.subr.mxu0 0.0
  %624 = vmatpush1.msra.mxu0 %v143
  %625 = vmatprep.subr.mxu0 0.0
  %626 = vmatpush1.msra.mxu0 %v144
  %627 = vmatprep.subr.mxu0 0.0
  %628 = vmatpush1.msra.mxu0 %v145
  %629 = vmatprep.subr.mxu0 0.0
  %630 = vmatpush1.msra.mxu0 %v146
  %631 = vmatprep.subr.mxu0 0.0
  %632 = vmatpush1.msra.mxu0 %v147
  %633 = vmatprep.subr.mxu0 0.0
  %634 = vmatpush1.msra.mxu0 %v148
  %635 = vmatprep.subr.mxu0 0.0
  %636 = vmatpush1.msra.mxu0 %v149
  %637 = vmatprep.subr.mxu0 0.0
  %638 = vmatpush1.msra.mxu0 %v150
  %639 = vmatprep.subr.mxu0 0.0
  %640 = vmatpush1.msra.mxu0 %v151
  %641 = vmatprep.subr.mxu0 0.0
  %642 = vmatpush1.msra.mxu0 %v152
  %643 = vmatprep.subr.mxu0 0.0
  %644 = vmatpush1.msra.mxu0 %v153
  %645 = vmatprep.subr.mxu0 0.0
  %646 = vmatpush1.msra.mxu0 %v154
  %647 = vmatprep.subr.mxu0 0.0
  %648 = vmatpush1.msra.mxu0 %v155
  %649 = vmatprep.subr.mxu0 0.0
  %650 = vmatpush1.msra.mxu0 %v156
  %651 = vmatprep.subr.mxu0 0.0
  %652 = vmatpush1.msra.mxu0 %v157
  %653 = vmatprep.subr.mxu0 0.0
  %654 = vmatpush1.msra.mxu0 %v158
  %655 = vmatprep.subr.mxu0 0.0
  %656 = vmatpush1.msra.mxu0 %v159
  %657 = vmatprep.mubr.f32.mxu0 %v332
  %658 = vmatmul.mubr.f32.gmra.mrb[0].mxu0 %v330
  %v659 = vpop.f32.mrb[0].mxu0
  %v660 = vadd.f32 %v590, %v659
  %v661 = vpop.f32.mrb[0].mxu0
  %662 = vdwg.mxu0
  %663 = vmatprep.subr.mxu0 0.0
  %664 = vmatpush1.msra.mxu0 %v160
  %665 = vmatprep.subr.mxu0 0.0
  %666 = vmatpush1.msra.mxu0 %v161
  %667 = vmatprep.subr.mxu0 0.0
  %668 = vmatpush1.msra.mxu0 %v162
  %669 = vmatprep.subr.mxu0 0.0
  %670 = vmatpush1.msra.mxu0 %v163
  %671 = vmatprep.subr.mxu0 0.0
  %672 = vmatpush1.msra.mxu0 %v164
  %673 = vmatprep.subr.mxu0 0.0
  %674 = vmatpush1.msra.mxu0 %v165
  %675 = vmatprep.subr.mxu0 0.0
  %676 = vmatpush1.msra.mxu0 %v166
  %677 = vmatprep.subr.mxu0 0.0
  %678 = vmatpush1.msra.mxu0 %v167
  %679 = vmatprep.subr.mxu0 0.0
  %680 = vmatpush1.msra.mxu0 %v168
  %681 = vmatprep.subr.mxu0 0.0
  %682 = vmatpush1.msra.mxu0 %v169
  %683 = vmatprep.subr.mxu0 0.0
  %684 = vmatpush1.msra.mxu0 %v170
  %685 = vmatprep.subr.mxu0 0.0
  %686 = vmatpush1.msra.mxu0 %v171
  %687 = vmatprep.subr.mxu0 0.0
  %688 = vmatpush1.msra.mxu0 %v172
  %689 = vmatprep.subr.mxu0 0.0
  %690 = vmatpush1.msra.mxu0 %v173
  %691 = vmatprep.subr.mxu0 0.0
  %692 = vmatpush1.msra.mxu0 %v174
  %693 = vmatprep.subr.mxu0 0.0
  %694 = vmatpush1.msra.mxu0 %v175
  %695 = vmatprep.subr.mxu0 0.0
  %696 = vmatpush1.msra.mxu0 %v176
  %697 = vmatprep.subr.mxu0 0.0
  %698 = vmatpush1.msra.mxu0 %v177
  %699 = vmatprep.subr.mxu0 0.0
  %700 = vmatpush1.msra.mxu0 %v178
  %701 = vmatprep.subr.mxu0 0.0
  %702 = vmatpush1.msra.mxu0 %v179
  %703 = vmatprep.subr.mxu0 0.0
  %704 = vmatpush1.msra.mxu0 %v180
  %705 = vmatprep.subr.mxu0 0.0
  %706 = vmatpush1.msra.mxu0 %v181
  %707 = vmatprep.subr.mxu0 0.0
  %708 = vmatpush1.msra.mxu0 %v182
  %709 = vmatprep.subr.mxu0 0.0
  %710 = vmatpush1.msra.mxu0 %v183
  %711 = vmatprep.subr.mxu0 0.0
  %712 = vmatpush1.msra.mxu0 %v184
  %713 = vmatprep.subr.mxu0 0.0
  %714 = vmatpush1.msra.mxu0 %v185
  %715 = vmatprep.subr.mxu0 0.0
  %716 = vmatpush1.msra.mxu0 %v186
  %717 = vmatprep.subr.mxu0 0.0
  %718 = vmatpush1.msra.mxu0 %v187
  %719 = vmatprep.subr.mxu0 0.0
  %720 = vmatpush1.msra.mxu0 %v188
  %721 = vmatprep.subr.mxu0 0.0
  %722 = vmatpush1.msra.mxu0 %v189
  %723 = vmatprep.subr.mxu0 0.0
  %724 = vmatpush1.msra.mxu0 %v190
  %725 = vmatprep.subr.mxu0 0.0
  %726 = vmatpush1.msra.mxu0 %v191
  %727 = vmatprep.mubr.f32.mxu0 %v348
  %728 = vmatmul.mubr.f32.gmra.mrb[0].mxu0 %v340
  %v729 = vpop.f32.mrb[0].mxu0
  %v730 = vadd.f32 %v660, %v729
  %v731 = vpop.f32.mrb[0].mxu0
  %732 = vdwg.mxu0
  %733 = vmatprep.subr.mxu0 0.0
  %734 = vmatpush1.msra.mxu0 %v192
  %735 = vmatprep.subr.mxu0 0.0
  %736 = vmatpush1.msra.mxu0 %v193
  %737 = vmatprep.subr.mxu0 0.0
  %738 = vmatpush1.msra.mxu0 %v194
  %739 = vmatprep.subr.mxu0 0.0
  %740 = vmatpush1.msra.mxu0 %v195
  %741 = vmatprep.subr.mxu0 0.0
  %742 = vmatpush1.msra.mxu0 %v196
  %743 = vmatprep.subr.mxu0 0.0
  %744 = vmatpush1.msra.mxu0 %v197
  %745 = vmatprep.subr.mxu0 0.0
  %746 = vmatpush1.msra.mxu0 %v198
  %747 = vmatprep.subr.mxu0 0.0
  %748 = vmatpush1.msra.mxu0 %v199
  %749 = vmatprep.subr.mxu0 0.0
  %750 = vmatpush1.msra.mxu0 %v200
  %751 = vmatprep.subr.mxu0 0.0
  %752 = vmatpush1.msra.mxu0 %v201
  %753 = vmatprep.subr.mxu0 0.0
  %754 = vmatpush1.msra.mxu0 %v202
  %755 = vmatprep.subr.mxu0 0.0
  %756 = vmatpush1.msra.mxu0 %v203
  %757 = vmatprep.subr.mxu0 0.0
  %758 = vmatpush1.msra.mxu0 %v204
  %759 = vmatprep.subr.mxu0 0.0
  %760 = vmatpush1.msra.mxu0 %v205
  %761 = vmatprep.subr.mxu0 0.0
  %762 = vmatpush1.msra.mxu0 %v206
  %763 = vmatprep.subr.mxu0 0.0
  %764 = vmatpush1.msra.mxu0 %v207
  %765 = vmatprep.subr.mxu0 0.0
  %766 = vmatpush1.msra.mxu0 %v208
  %767 = vmatprep.subr.mxu0 0.0
  %768 = vmatpush1.msra.mxu0 %v209
  %769 = vmatprep.subr.mxu0 0.0
  %770 = vmatpush1.msra.mxu0 %v210
  %771 = vmatprep.subr.mxu0 0.0
  %772 = vmatpush1.msra.mxu0 %v211
  %773 = vmatprep.subr.mxu0 0.0
  %774 = vmatpush1.msra.mxu0 %v212
  %775 = vmatprep.subr.mxu0 0.0
  %776 = vmatpush1.msra.mxu0 %v213
  %777 = vmatprep.subr.mxu0 0.0
  %778 = vmatpush1.msra.mxu0 %v214
  %779 = vmatprep.subr.mxu0 0.0
  %780 = vmatpush1.msra.mxu0 %v215
  %781 = vmatprep.subr.mxu0 0.0
  %782 = vmatpush1.msra.mxu0 %v216
  %783 = vmatprep.subr.mxu0 0.0
  %784 = vmatpush1.msra.mxu0 %v217
  %785 = vmatprep.subr.mxu0 0.0
  %786 = vmatpush1.msra.mxu0 %v218
  %787 = vmatprep.subr.mxu0 0.0
  %788 = vmatpush1.msra.mxu0 %v219
  %789 = vmatprep.subr.mxu0 0.0
  %790 = vmatpush1.msra.mxu0 %v220
  %791 = vmatprep.subr.mxu0 0.0
  %792 = vmatpush1.msra.mxu0 %v221
  %793 = vmatprep.subr.mxu0 0.0
  %794 = vmatpush1.msra.mxu0 %v222
  %795 = vmatprep.subr.mxu0 0.0
  %796 = vmatpush1.msra.mxu0 %v223
  %797 = vmatprep.mubr.f32.mxu0 %v349
  %798 = vmatmul.mubr.f32.gmra.mrb[0].mxu0 %v347
  %v799 = vpop.f32.mrb[0].mxu0
  %v800 = vadd.f32 %v730, %v799
  %v801 = vpop.f32.mrb[0].mxu0
  %802 = vdwg.mxu0
  %803 = vmatprep.subr.mxu0 0.0
  %804 = vmatpush1.msra.mxu0 %v224
  %805 = vmatprep.subr.mxu0 0.0
  %806 = vmatpush1.msra.mxu0 %v225
  %807 = vmatprep.subr.mxu0 0.0
  %808 = vmatpush1.msra.mxu0 %v226
  %809 = vmatprep.subr.mxu0 0.0
  %810 = vmatpush1.msra.mxu0 %v227
  %811 = vmatprep.subr.mxu0 0.0
  %812 = vmatpush1.msra.mxu0 %v228
  %813 = vmatprep.subr.mxu0 0.0
  %814 = vmatpush1.msra.mxu0 %v229
  %815 = vmatprep.subr.mxu0 0.0
  %816 = vmatpush1.msra.mxu0 %v230
  %817 = vmatprep.subr.mxu0 0.0
  %818 = vmatpush1.msra.mxu0 %v231
  %819 = vmatprep.subr.mxu0 0.0
  %820 = vmatpush1.msra.mxu0 %v232
  %821 = vmatprep.subr.mxu0 0.0
  %822 = vmatpush1.msra.mxu0 %v233
  %823 = vmatprep.subr.mxu0 0.0
  %824 = vmatpush1.msra.mxu0 %v234
  %825 = vmatprep.subr.mxu0 0.0
  %826 = vmatpush1.msra.mxu0 %v235
  %827 = vmatprep.subr.mxu0 0.0
  %828 = vmatpush1.msra.mxu0 %v236
  %829 = vmatprep.subr.mxu0 0.0
  %830 = vmatpush1.msra.mxu0 %v237
  %831 = vmatprep.subr.mxu0 0.0
  %832 = vmatpush1.msra.mxu0 %v238
  %833 = vmatprep.subr.mxu0 0.0
  %834 = vmatpush1.msra.mxu0 %v239
  %835 = vmatprep.subr.mxu0 0.0
  %836 = vmatpush1.msra.mxu0 %v240
  %837 = vmatprep.subr.mxu0 0.0
  %838 = vmatpush1.msra.mxu0 %v241
  %839 = vmatprep.subr.mxu0 0.0
  %840 = vmatpush1.msra.mxu0 %v242
  %841 = vmatprep.subr.mxu0 0.0
  %842 = vmatpush1.msra.mxu0 %v243
  %843 = vmatprep.subr.mxu0 0.0
  %844 = vmatpush1.msra.mxu0 %v244
  %845 = vmatprep.subr.mxu0 0.0
  %846 = vmatpush1.msra.mxu0 %v245
  %847 = vmatprep.subr.mxu0 0.0
  %848 = vmatpush1.msra.mxu0 %v246
  %849 = vmatprep.subr.mxu0 0.0
  %850 = vmatpush1.msra.mxu0 %v247
  %851 = vmatprep.subr.mxu0 0.0
  %852 = vmatpush1.msra.mxu0 %v248
  %853 = vmatprep.subr.mxu0 0.0
  %854 = vmatpush1.msra.mxu0 %v249
  %855 = vmatprep.subr.mxu0 0.0
  %856 = vmatpush1.msra.mxu0 %v250
  %857 = vmatprep.subr.mxu0 0.0
  %858 = vmatpush1.msra.mxu0 %v251
  %859 = vmatprep.subr.mxu0 0.0
  %860 = vmatpush1.msra.mxu0 %v252
  %861 = vmatprep.subr.mxu0 0.0
  %862 = vmatpush1.msra.mxu0 %v253
  %863 = vmatprep.subr.mxu0 0.0
  %864 = vmatpush1.msra.mxu0 %v254
  %865 = vmatprep.subr.mxu0 0.0
  %866 = vmatpush1.msra.mxu0 %v255
  %867 = vmatprep.mubr.f32.mxu0 %v365
  %868 = vmatmul.mubr.f32.gmra.mrb[0].mxu0 %v357
  %v869 = vpop.f32.mrb[0].mxu0
  %v870 = vadd.f32 %v800, %v869
  %v871 = vpop.f32.mrb[0].mxu0
  %872 = vdwg.mxu0
  %873 = vmatprep.subr.mxu0 0.0
  %874 = vmatpush1.msra.mxu0 %v256
  %875 = vmatprep.subr.mxu0 0.0
  %876 = vmatpush1.msra.mxu0 %v257
  %877 = vmatprep.subr.mxu0 0.0
  %878 = vmatpush1.msra.mxu0 %v258
  %879 = vmatprep.subr.mxu0 0.0
  %880 = vmatpush1.msra.mxu0 %v259
  %881 = vmatprep.subr.mxu0 0.0
  %882 = vmatpush1.msra.mxu0 %v260
  %883 = vmatprep.subr.mxu0 0.0
  %884 = vmatpush1.msra.mxu0 %v261
  %885 = vmatprep.subr.mxu0 0.0
  %886 = vmatpush1.msra.mxu0 %v262
  %887 = vmatprep.subr.mxu0 0.0
  %888 = vmatpush1.msra.mxu0 %v263
  %889 = vmatprep.subr.mxu0 0.0
  %890 = vmatpush1.msra.mxu0 %v264
  %891 = vmatprep.subr.mxu0 0.0
  %892 = vmatpush1.msra.mxu0 %v265
  %893 = vmatprep.subr.mxu0 0.0
  %894 = vmatpush1.msra.mxu0 %v266
  %895 = vmatprep.subr.mxu0 0.0
  %896 = vmatpush1.msra.mxu0 %v267
  %897 = vmatprep.subr.mxu0 0.0
  %898 = vmatpush1.msra.mxu0 %v268
  %899 = vmatprep.subr.mxu0 0.0
  %900 = vmatpush1.msra.mxu0 %v269
  %901 = vmatprep.subr.mxu0 0.0
  %902 = vmatpush1.msra.mxu0 %v270
  %903 = vmatprep.subr.mxu0 0.0
  %904 = vmatpush1.msra.mxu0 %v271
  %905 = vmatprep.subr.mxu0 0.0
  %906 = vmatpush1.msra.mxu0 %v272
  %907 = vmatprep.subr.mxu0 0.0
  %908 = vmatpush1.msra.mxu0 %v273
  %909 = vmatprep.subr.mxu0 0.0
  %910 = vmatpush1.msra.mxu0 %v274
  %911 = vmatprep.subr.mxu0 0.0
  %912 = vmatpush1.msra.mxu0 %v275
  %913 = vmatprep.subr.mxu0 0.0
  %914 = vmatpush1.msra.mxu0 %v276
  %915 = vmatprep.subr.mxu0 0.0
  %916 = vmatpush1.msra.mxu0 %v277
  %917 = vmatprep.subr.mxu0 0.0
  %918 = vmatpush1.msra.mxu0 %v278
  %919 = vmatprep.subr.mxu0 0.0
  %920 = vmatpush1.msra.mxu0 %v279
  %921 = vmatprep.subr.mxu0 0.0
  %922 = vmatpush1.msra.mxu0 %v280
  %923 = vmatprep.subr.mxu0 0.0
  %924 = vmatpush1.msra.mxu0 %v281
  %925 = vmatprep.subr.mxu0 0.0
  %926 = vmatpush1.msra.mxu0 %v282
  %927 = vmatprep.subr.mxu0 0.0
  %928 = vmatpush1.msra.mxu0 %v283
  %929 = vmatprep.subr.mxu0 0.0
  %930 = vmatpush1.msra.mxu0 %v284
  %931 = vmatprep.subr.mxu0 0.0
  %932 = vmatpush1.msra.mxu0 %v285
  %933 = vmatprep.subr.mxu0 0.0
  %934 = vmatpush1.msra.mxu0 %v286
  %935 = vmatprep.subr.mxu0 0.0
  %936 = vmatpush1.msra.mxu0 %v287
  %937 = vmatprep.mubr.f32.mxu0 %v366
  %938 = vmatmul.mubr.f32.gmra.mrb[0].mxu0 %v364
  %v939 = vpop.f32.mrb[0].mxu0
  %v940 = vadd.f32 %v870, %v939
  %v941 = vpop.f32.mrb[0].mxu0
  %942 = vdwg.mxu0
  %v943 = vmax.f32 %v940, 0.0
  %v944 = vld [vmem:[%s3] sm:$0xff]
  %v945 = vld [vmem:[%s3 + $0x8] sm:$0xff]
  %v946 = vld [vmem:[%s3 + $0x10] sm:$0xff]
  %v947 = vld [vmem:[%s3 + $0x18] sm:$0xff]
  %v948 = vld [vmem:[%s3 + $0x20] sm:$0xff]
  %v949 = vld [vmem:[%s3 + $0x28] sm:$0xff]
  %v950 = vld [vmem:[%s3 + $0x30] sm:$0xff]
  %v951 = vld [vmem:[%s3 + $0x38] sm:$0xff]
  %v952 = vld [vmem:[%s3 + $0x40] sm:$0xff]
  %v953 = vld [vmem:[%s3 + $0x48] sm:$0xff]
  %v954 = vld [vmem:[%s3 + $0x50] sm:$0xff]
  %v955 = vld [vmem:[%s3 + $0x58] sm:$0xff]
  %v956 = vld [vmem:[%s3 + $0x60] sm:$0xff]
  %v957 = vld [vmem:[%s3 + $0x68] sm:$0xff]
  %v958 = vld [vmem:[%s3 + $0x70] sm:$0xff]
  %v959 = vld [vmem:[%s3 + $0x78] sm:$0xff]
  %v960 = vld [vmem:[%s4] sm:$0x1]
  %v962 = vlaneseq
  %v963 = vshrl.u32 %v962, 7
  %v964 = vsub.s32 0, %v963
  %v965 = vrot.slane %v960, %v964
  %967 = vmatprep.subr.mxu0 0.0
  %968 = vmatpush1.msra.mxu0 %v944
  %969 = vmatprep.subr.mxu0 0.0
  %970 = vmatpush1.msra.mxu0 %v945
  %971 = vmatprep.subr.mxu0 0.0
  %972 = vmatpush1.msra.mxu0 %v946
  %973 = vmatprep.subr.mxu0 0.0
  %974 = vmatpush1.msra.mxu0 %v947
  %975 = vmatprep.subr.mxu0 0.0
  %976 = vmatpush1.msra.mxu0 %v948
  %977 = vmatprep.subr.mxu0 0.0
  %978 = vmatpush1.msra.mxu0 %v949
  %979 = vmatprep.subr.mxu0 0.0
  %980 = vmatpush1.msra.mxu0 %v950
  %981 = vmatprep.subr.mxu0 0.0
  %982 = vmatpush1.msra.mxu0 %v951
  %983 = vmatprep.subr.mxu0 0.0
  %984 = vmatpush1.msra.mxu0 %v952
  %985 = vmatprep.subr.mxu0 0.0
  %986 = vmatpush1.msra.mxu0 %v953
  %987 = vmatprep.subr.mxu0 0.0
  %988 = vmatpush1.msra.mxu0 %v954
  %989 = vmatprep.subr.mxu0 0.0
  %990 = vmatpush1.msra.mxu0 %v955
  %991 = vmatprep.subr.mxu0 0.0
  %992 = vmatpush1.msra.mxu0 %v956
  %993 = vmatprep.subr.mxu0 0.0
  %994 = vmatpush1.msra.mxu0 %v957
  %995 = vmatprep.subr.mxu0 0.0
  %996 = vmatpush1.msra.mxu0 %v958
  %997 = vmatprep.subr.mxu0 0.0
  %998 = vmatpush1.msra.mxu0 %v959
  %999 = vmatprep.subr.mxu0 0.0
  %1000 = vmatpush1.msra.mxu0 0.0
  %1001 = vmatprep.subr.mxu0 0.0
  %1002 = vmatpush1.msra.mxu0 0.0
  %1003 = vmatprep.subr.mxu0 0.0
  %1004 = vmatpush1.msra.mxu0 0.0
  %1005 = vmatprep.subr.mxu0 0.0
  %1006 = vmatpush1.msra.mxu0 0.0
  %1007 = vmatprep.subr.mxu0 0.0
  %1008 = vmatpush1.msra.mxu0 0.0
  %1009 = vmatprep.subr.mxu0 0.0
  %1010 = vmatpush1.msra.mxu0 0.0
  %1011 = vmatprep.subr.mxu0 0.0
  %1012 = vmatpush1.msra.mxu0 0.0
  %1013 = vmatprep.subr.mxu0 0.0
  %1014 = vmatpush1.msra.mxu0 0.0
  %1015 = vmatprep.subr.mxu0 0.0
  %1016 = vmatpush1.msra.mxu0 0.0
  %1017 = vmatprep.subr.mxu0 0.0
  %1018 = vmatpush1.msra.mxu0 0.0
  %1019 = vmatprep.subr.mxu0 0.0
  %1020 = vmatpush1.msra.mxu0 0.0
  %1021 = vmatprep.subr.mxu0 0.0
  %1022 = vmatpush1.msra.mxu0 0.0
  %1023 = vmatprep.subr.mxu0 0.0
  %1024 = vmatpush1.msra.mxu0 0.0
  %1025 = vmatprep.subr.mxu0 0.0
  %1026 = vmatpush1.msra.mxu0 0.0
  %1027 = vmatprep.subr.mxu0 0.0
  %1028 = vmatpush1.msra.mxu0 0.0
  %1029 = vmatprep.subr.mxu0 0.0
  %1030 = vmatpush1.msra.mxu0 0.0
  %1031 = vmatprep.mubr.f32.mxu0 0.0
  %1032 = vmatmul.mubr.f32.gmra.mrb[0].mxu0 %v943
  %v1033 = vpop.f32.mrb[0].mxu0
  %v1034 = vadd.f32 %v965, %v1033
  %v1035 = vpop.f32.mrb[0].mxu0
  %1036 = vdwg.mxu0
  %v1037 = vmax.f32 %v1034, 0.0
  %v1038 = vld [vmem:[%s5] sm:$0x1]
  %v1040 = vlaneseq
  %v1041 = vshrl.u32 %v1040, 7
  %v1042 = vsub.s32 0, %v1041
  %v1043 = vrot.slane %v1038, %v1042
  %v1045 = vmul.f32 %v1037, %v1043
  %vm1046 = vcmask 517120
  %v1047 = vsel %vm1046, %v1045, 0.0
  %1048 = vadd.xlane.f32.xlu0 %v1047
  %v1049 = vpop.xlane.xlu0 %1048
  %v1050 = vld [vmem:[#allocation2] sm:$0x1]
  %v1052 = vlaneseq
  %v1053 = vshrl.u32 %v1052, 7
  %v1054 = vsub.s32 0, %v1053
  %v1055 = vrot.slane %v1050, %v1054
  %v1057 = vadd.f32 %v1049, %v1055
  %v1058 = vsub.f32 0.0, %v1057
  %v1059 = vmul.f32 %v1058, 1.442695
  %v1060 = vpow.pop %v1059
  %v1061 = vadd.f32 %v1060, 1.0
  %v1062 = vrcp.pop %v1061
  %v1063 = vmul.f32 1.0, %v1062
  %vm1064 = vcmask 1024
  %1065 = vst.msk [vmem:[%s7] sm:$0x3] %vm1064, %v1063
  // Predicated region
  $region30: #{discriminator_forward.9} parent=0 // pred_check
    _
  $region31: #{discriminator_forward.9} parent=0 // pred_check_branch
    %1067 = sbr.rel (0) target = $region33
  $region32: #{discriminator_forward.9} parent=0 // pred_region
    _
  $region33: #{discriminator_forward.9} parent=0 // pred_fallthru
    _
  // Predicated region
  $region34: #{discriminator_forward.9} parent=0 // pred_check
    _
  $region35: #{discriminator_forward.9} parent=0 // pred_check_branch
    %1069 = sbr.rel (0) target = $region37
  $region36: #{discriminator_forward.9} parent=0 // pred_region
    _
  $region37: #{discriminator_forward.9} parent=0 // pred_fallthru
    _

</llo_original>
